<compile_context>
chip_gen: v7x
topology: tpu7x:2x2x1
jax: 0.10.0
libtpu: 0.0.40
codegen_flags: <defaults>
</compile_context>

<pallas_src>
import functools

import jax
import jax.numpy as jnp
from jax.experimental import pallas as pl
from jax.experimental.pallas import tpu as pltpu


def _pooling_kernel(tile_g, f_pad,
                    brow_ref, bcol_ref, x_ref, o_ref,
                    sum_acc, max_acc, cnt_acc):
    gi = pl.program_id(0)          # graph-split index ("parallel")
    ni = pl.program_id(1)          # node-tile index (reduction, last)

    @pl.when(ni == 0)
    def _init():
        sum_acc[...] = jnp.zeros_like(sum_acc)
        cnt_acc[...] = jnp.zeros_like(cnt_acc)
        max_acc[...] = jnp.full(max_acc.shape, -jnp.inf, max_acc.dtype)

    xb = x_ref[...]                                    # (TN, F) f32
    brow = brow_ref[...]                               # (1, TN) int32
    bcol = bcol_ref[...]                               # (TN, 1) int32

    base = gi * tile_g
    gids_col = base + jax.lax.broadcasted_iota(jnp.int32, (tile_g, 1), 0)
    gids_row = base + jax.lax.broadcasted_iota(jnp.int32, (1, tile_g), 1)

    # sum / count: segment-sum as an MXU mask-matmul, f32 accumulation.
    mask_gn = (brow == gids_col).astype(jnp.float32)   # (TG, TN)
    sum_acc[...] += jnp.dot(mask_gn, xb, preferred_element_type=jnp.float32)
    cnt_acc[...] += jnp.sum(mask_gn, axis=1, keepdims=True)

    # max: single (TN, TG) membership compare per step, sliced per graph.
    mask_ng = bcol == gids_row                          # (TN, TG) bool
    neg_inf = jnp.float32(-jnp.inf)
    if tile_g <= 32:
        # Small graph tile: statically unrolled, static lane slices of the mask.
        rows = []
        for gg in range(tile_g):
            xm = jnp.where(mask_ng[:, gg:gg + 1], xb, neg_inf)       # (TN, F)
            rows.append(jnp.max(xm, axis=0, keepdims=True))          # (1, F)
        max_acc[...] = jnp.maximum(max_acc[...],
                                   jnp.concatenate(rows, axis=0))
    else:
        # Large graph tile: bounded code size + vreg live ranges via fori_loop.
        def body(gg, carry):
            m = bcol == (base + gg)                                  # (TN, 1)
            row = jnp.max(jnp.where(m, xb, neg_inf), axis=0, keepdims=True)
            cur = max_acc[pl.ds(gg, 1), :]
            max_acc[pl.ds(gg, 1), :] = jnp.maximum(cur, row)
            return carry
        jax.lax.fori_loop(0, tile_g, body, 0, unroll=8)

    # Finalize: three lane-dense (128-aligned) static-slice stores, no concat.
    @pl.when(ni == pl.num_programs(1) - 1)
    def _finalize():
        s = sum_acc[...]
        cnt = cnt_acc[...]
        inv = pl.reciprocal(jnp.maximum(cnt, 1.0), approx=True)      # EUP
        mx = jnp.where(cnt > 0.0, max_acc[...], 0.0)  # empty graphs -> 0 (PyG)
        o_ref[:, :f_pad] = s.astype(o_ref.dtype)
        o_ref[:, f_pad:2 * f_pad] = mx.astype(o_ref.dtype)
        o_ref[:, 2 * f_pad:3 * f_pad] = (s * inv).astype(o_ref.dtype)


def global_pooling(x, batch, num_graphs, *, tile_n=512, graph_splits=2):
    """GlobalPooling(['add','max','mean'], mode='cat') forward.

    x:     [N, F] float node features
    batch: [N]    int graph id per node (need not be sorted)
    returns [num_graphs, 3*F] = cat(sum, max, mean) per graph.
    """
    n, f = x.shape
    g = int(num_graphs)

    # Pad features to a 128 multiple (lane-dense output), nodes to a tile_n
    # multiple (padded nodes get batch id -1 -> belong to no graph), and
    # graphs so each split handles a sublane-aligned (multiple of 8) tile.
    f_pad = 128 * pl.cdiv(f, 128)
    n_pad = tile_n * pl.cdiv(n, tile_n)
    tile_g = 8 * pl.cdiv(pl.cdiv(g, graph_splits), 8)
    g_pad = tile_g * graph_splits
    out_dim = 3 * f_pad

    xp = jnp.pad(x.astype(jnp.float32), ((0, n_pad - n), (0, f_pad - f)))
    bp = jnp.pad(batch.astype(jnp.int32), (0, n_pad - n), constant_values=-1)
    # Two layouts of the same tiny int vector so the kernel never transposes.
    batch_row = bp.reshape(1, n_pad)
    batch_col = bp.reshape(n_pad, 1)

    kernel = functools.partial(_pooling_kernel, tile_g, f_pad)

    out = pl.pallas_call(
        kernel,
        out_shape=jax.ShapeDtypeStruct((g_pad, out_dim), x.dtype),
        grid_spec=pltpu.PrefetchScalarGridSpec(
            num_scalar_prefetch=0,
            grid=(graph_splits, n_pad // tile_n),
            in_specs=[
                pl.BlockSpec((1, tile_n), lambda gi, ni: (0, ni)),     # batch row
                pl.BlockSpec((tile_n, 1), lambda gi, ni: (ni, 0)),     # batch col
                pl.BlockSpec((tile_n, f_pad), lambda gi, ni: (ni, 0)),  # x tile
            ],
            out_specs=pl.BlockSpec((tile_g, out_dim), lambda gi, ni: (gi, 0)),
            scratch_shapes=[
                pltpu.VMEM((tile_g, f_pad), jnp.float32),   # sum accumulator
                pltpu.VMEM((tile_g, f_pad), jnp.float32),   # max accumulator
                pltpu.VMEM((tile_g, 1), jnp.float32),       # count accumulator
            ],
        ),
        compiler_params=pltpu.CompilerParams(
            dimension_semantics=("parallel", "arbitrary")),
    )(batch_row, batch_col, xp)

    out = out[:g]
    if f_pad != f:
        out = jnp.concatenate(
            [out[:, :f], out[:, f_pad:f_pad + f], out[:, 2 * f_pad:2 * f_pad + f]],
            axis=1)
    return out


if __name__ == "__main__":
    key = jax.random.PRNGKey(0)
    kx, kp = jax.random.split(key, 2)

    # 16 graphs x 32 nodes, 128 features -> output [16, 384] (lane-dense).
    N, F, G = 512, 128, 16
    x = jax.random.normal(kx, (N, F), dtype=jnp.float32)
    batch_sorted = jnp.repeat(jnp.arange(G, dtype=jnp.int32), N // G)
    batch = jax.random.permutation(kp, batch_sorted)   # unsorted: kernel is OK

    out = global_pooling(x, batch, G)
    jax.block_until_ready(out)
    assert out.shape == (G, 3 * F)

    # Pure-JAX reference (sum | max | mean, concatenated; empty-graph max -> 0).
    sum_ref = jnp.zeros((G, F), jnp.float32).at[batch].add(x)
    cnt_ref = jnp.zeros((G,), jnp.float32).at[batch].add(1.0)
    max_ref = jnp.full((G, F), -jnp.inf, jnp.float32).at[batch].max(x)
    max_ref = jnp.where(cnt_ref[:, None] > 0, max_ref, 0.0)
    mean_ref = sum_ref / jnp.maximum(cnt_ref, 1.0)[:, None]
    ref = jnp.concatenate([sum_ref, max_ref, mean_ref], axis=1)

    assert jnp.allclose(out, ref, atol=2e-3, rtol=2e-3), \
        float(jnp.max(jnp.abs(out - ref)))
    print("KERNEL_OK")
</pallas_src>

<mosaic_0001>
module attributes {stable_mosaic.version = 11 : i64} {
  func.func @_pooling_kernel(%arg0: i32, %arg1: i32, %arg2: memref<1x512xi32, #tpu.memory_space<vmem>>, %arg3: memref<512x1xi32, #tpu.memory_space<vmem>>, %arg4: memref<512x128xf32, #tpu.memory_space<vmem>>, %arg5: memref<8x384xf32, #tpu.memory_space<vmem>>, %arg6: memref<8x128xf32, #tpu.memory_space<vmem>>, %arg7: memref<8x128xf32, #tpu.memory_space<vmem>>, %arg8: memref<8x1xf32, #tpu.memory_space<vmem>>) attributes {dimension_semantics = [#tpu.dimension_semantics<parallel>, #tpu.dimension_semantics<arbitrary>], iteration_bounds = array<i64: 2, 1>, scalar_prefetch = 0 : i64, scratch_operands = 3 : i64, tpu.core_type = #tpu.core_type<tc>, window_params = [{transform_indices = @transform_0, window_bounds = array<i64: 1, 512>}, {transform_indices = @transform_1, window_bounds = array<i64: 512, 1>}, {transform_indices = @transform_2, window_bounds = array<i64: 512, 128>}, {transform_indices = @transform_3, window_bounds = array<i64: 8, 384>}]} {
    %c0_i32 = arith.constant 0 : i32
    %0 = arith.cmpi eq, %arg1, %c0_i32 : i32
    %1 = arith.extui %0 : i1 to i32
    %c0_i32_0 = arith.constant 0 : i32
    %2 = arith.cmpi ne, %1, %c0_i32_0 : i32
    scf.if %2 {
      %cst_37 = arith.constant 0.000000e+00 : f32
      %93 = vector.broadcast %cst_37 : f32 to vector<8x128xf32>
      %c0_38 = arith.constant 0 : index
      %c0_39 = arith.constant 0 : index
      %94 = vector.load %arg6[%c0_38, %c0_39] : memref<8x128xf32, #tpu.memory_space<vmem>>, vector<8x128xf32>
      tpu.vector_store %arg6[%c0_38, %c0_39], %93 {strides = array<i32>} : memref<8x128xf32, #tpu.memory_space<vmem>>, vector<8x128xf32>,
      %cst_40 = arith.constant 0.000000e+00 : f32
      %95 = vector.broadcast %cst_40 : f32 to vector<8x1xf32>
      %c0_41 = arith.constant 0 : index
      %c0_42 = arith.constant 0 : index
      %96 = vector.load %arg8[%c0_41, %c0_42] : memref<8x1xf32, #tpu.memory_space<vmem>>, vector<8x1xf32>
      tpu.vector_store %arg8[%c0_41, %c0_42], %95 {strides = array<i32>} : memref<8x1xf32, #tpu.memory_space<vmem>>, vector<8x1xf32>,
      %cst_43 = arith.constant 0xFF800000 : f32
      %97 = vector.broadcast %cst_43 : f32 to vector<8x128xf32>
      %c0_44 = arith.constant 0 : index
      %c0_45 = arith.constant 0 : index
      %98 = vector.load %arg7[%c0_44, %c0_45] : memref<8x128xf32, #tpu.memory_space<vmem>>, vector<8x128xf32>
      tpu.vector_store %arg7[%c0_44, %c0_45], %97 {strides = array<i32>} : memref<8x128xf32, #tpu.memory_space<vmem>>, vector<8x128xf32>,
    } else {
    }
    %c0 = arith.constant 0 : index
    %c0_1 = arith.constant 0 : index
    %3 = vector.load %arg4[%c0, %c0_1] : memref<512x128xf32, #tpu.memory_space<vmem>>, vector<512x128xf32>
    %c0_2 = arith.constant 0 : index
    %c0_3 = arith.constant 0 : index
    %4 = vector.load %arg2[%c0_2, %c0_3] : memref<1x512xi32, #tpu.memory_space<vmem>>, vector<1x512xi32>
    %c0_4 = arith.constant 0 : index
    %c0_5 = arith.constant 0 : index
    %5 = vector.load %arg3[%c0_4, %c0_5] : memref<512x1xi32, #tpu.memory_space<vmem>>, vector<512x1xi32>
    %c8_i32 = arith.constant 8 : i32
    %6 = arith.muli %arg0, %c8_i32 : i32
    %7 = tpu.iota {dimensions = array<i32: 0>} : vector<8x1xi32>
    %8 = vector.broadcast %6 : i32 to vector<8x1xi32>
    %9 = arith.addi %8, %7 : vector<8x1xi32>
    %10 = tpu.iota {dimensions = array<i32: 1>} : vector<1x8xi32>
    %11 = vector.broadcast %6 : i32 to vector<1x8xi32>
    %12 = arith.addi %11, %10 : vector<1x8xi32>
    %13 = vector.broadcast %4 : vector<1x512xi32> to vector<8x512xi32>
    %14 = vector.broadcast %9 : vector<8x1xi32> to vector<8x512xi32>
    %15 = arith.cmpi eq, %13, %14 : vector<8x512xi32>
    %16 = arith.extui %15 : vector<8x512xi1> to vector<8x512xi32>
    %17 = arith.sitofp %16 : vector<8x512xi32> to vector<8x512xf32>
    %c0_6 = arith.constant 0 : index
    %c0_7 = arith.constant 0 : index
    %18 = vector.load %arg6[%c0_6, %c0_7] : memref<8x128xf32, #tpu.memory_space<vmem>>, vector<8x128xf32>
    %cst = arith.constant dense<0.000000e+00> : vector<8x128xf32>
    %19 = tpu.matmul %17, %3, %cst {dimension_numbers = #tpu.dot_dimension_numbers<[1], [0], [0], [1], [0, 0, 1, 1], [], []>} : vector<8x512xf32>, vector<512x128xf32>, vector<8x128xf32> -> vector<8x128xf32>
    %20 = arith.addf %18, %19 : vector<8x128xf32>
    %c0_8 = arith.constant 0 : index
    %c0_9 = arith.constant 0 : index
    %21 = vector.load %arg6[%c0_8, %c0_9] : memref<8x128xf32, #tpu.memory_space<vmem>>, vector<8x128xf32>
    tpu.vector_store %arg6[%c0_8, %c0_9], %20 {strides = array<i32>} : memref<8x128xf32, #tpu.memory_space<vmem>>, vector<8x128xf32>,
    %c0_10 = arith.constant 0 : index
    %c0_11 = arith.constant 0 : index
    %22 = vector.load %arg8[%c0_10, %c0_11] : memref<8x1xf32, #tpu.memory_space<vmem>>, vector<8x1xf32>
    %cst_12 = arith.constant dense<0.000000e+00> : vector<8xf32>
    %23 = vector.multi_reduction <add>, %17, %cst_12 [1] : vector<8x512xf32> to vector<8xf32>
    %24 = vector.shape_cast %23 : vector<8xf32> to vector<8x1xf32>
    %25 = arith.addf %22, %24 : vector<8x1xf32>
    %c0_13 = arith.constant 0 : index
    %c0_14 = arith.constant 0 : index
    %26 = vector.load %arg8[%c0_13, %c0_14] : memref<8x1xf32, #tpu.memory_space<vmem>>, vector<8x1xf32>
    tpu.vector_store %arg8[%c0_13, %c0_14], %25 {strides = array<i32>} : memref<8x1xf32, #tpu.memory_space<vmem>>, vector<8x1xf32>,
    %27 = vector.broadcast %5 : vector<512x1xi32> to vector<512x8xi32>
    %28 = vector.broadcast %12 : vector<1x8xi32> to vector<512x8xi32>
    %29 = arith.cmpi eq, %27, %28 : vector<512x8xi32>
    %30 = vector.extract_strided_slice %29 {offsets = [0, 0], sizes = [512, 1], strides = [1, 1]} : vector<512x8xi1> to vector<512x1xi1>
    %cst_15 = arith.constant 0xFF800000 : f32
    %31 = vector.shape_cast %30 : vector<512x1xi1> to vector<512x1xi1>
    %32 = vector.broadcast %31 : vector<512x1xi1> to vector<512x128xi1>
    %33 = vector.broadcast %cst_15 : f32 to vector<512x128xf32>
    %34 = arith.select %32, %3, %33 : vector<512x128xi1>, vector<512x128xf32>
    %cst_16 = arith.constant dense<0xFF800000> : vector<128xf32>
    %35 = vector.multi_reduction <maximumf>, %34, %cst_16 [0] : vector<512x128xf32> to vector<128xf32>
    %36 = vector.shape_cast %35 : vector<128xf32> to vector<1x128xf32>
    %37 = vector.extract_strided_slice %29 {offsets = [0, 1], sizes = [512, 1], strides = [1, 1]} : vector<512x8xi1> to vector<512x1xi1>
    %cst_17 = arith.constant 0xFF800000 : f32
    %38 = vector.shape_cast %37 : vector<512x1xi1> to vector<512x1xi1>
    %39 = vector.broadcast %38 : vector<512x1xi1> to vector<512x128xi1>
    %40 = vector.broadcast %cst_17 : f32 to vector<512x128xf32>
    %41 = arith.select %39, %3, %40 : vector<512x128xi1>, vector<512x128xf32>
    %cst_18 = arith.constant dense<0xFF800000> : vector<128xf32>
    %42 = vector.multi_reduction <maximumf>, %41, %cst_18 [0] : vector<512x128xf32> to vector<128xf32>
    %43 = vector.shape_cast %42 : vector<128xf32> to vector<1x128xf32>
    %44 = vector.extract_strided_slice %29 {offsets = [0, 2], sizes = [512, 1], strides = [1, 1]} : vector<512x8xi1> to vector<512x1xi1>
    %cst_19 = arith.constant 0xFF800000 : f32
    %45 = vector.shape_cast %44 : vector<512x1xi1> to vector<512x1xi1>
    %46 = vector.broadcast %45 : vector<512x1xi1> to vector<512x128xi1>
    %47 = vector.broadcast %cst_19 : f32 to vector<512x128xf32>
    %48 = arith.select %46, %3, %47 : vector<512x128xi1>, vector<512x128xf32>
    %cst_20 = arith.constant dense<0xFF800000> : vector<128xf32>
    %49 = vector.multi_reduction <maximumf>, %48, %cst_20 [0] : vector<512x128xf32> to vector<128xf32>
    %50 = vector.shape_cast %49 : vector<128xf32> to vector<1x128xf32>
    %51 = vector.extract_strided_slice %29 {offsets = [0, 3], sizes = [512, 1], strides = [1, 1]} : vector<512x8xi1> to vector<512x1xi1>
    %cst_21 = arith.constant 0xFF800000 : f32
    %52 = vector.shape_cast %51 : vector<512x1xi1> to vector<512x1xi1>
    %53 = vector.broadcast %52 : vector<512x1xi1> to vector<512x128xi1>
    %54 = vector.broadcast %cst_21 : f32 to vector<512x128xf32>
    %55 = arith.select %53, %3, %54 : vector<512x128xi1>, vector<512x128xf32>
    %cst_22 = arith.constant dense<0xFF800000> : vector<128xf32>
    %56 = vector.multi_reduction <maximumf>, %55, %cst_22 [0] : vector<512x128xf32> to vector<128xf32>
    %57 = vector.shape_cast %56 : vector<128xf32> to vector<1x128xf32>
    %58 = vector.extract_strided_slice %29 {offsets = [0, 4], sizes = [512, 1], strides = [1, 1]} : vector<512x8xi1> to vector<512x1xi1>
    %cst_23 = arith.constant 0xFF800000 : f32
    %59 = vector.shape_cast %58 : vector<512x1xi1> to vector<512x1xi1>
    %60 = vector.broadcast %59 : vector<512x1xi1> to vector<512x128xi1>
    %61 = vector.broadcast %cst_23 : f32 to vector<512x128xf32>
    %62 = arith.select %60, %3, %61 : vector<512x128xi1>, vector<512x128xf32>
    %cst_24 = arith.constant dense<0xFF800000> : vector<128xf32>
    %63 = vector.multi_reduction <maximumf>, %62, %cst_24 [0] : vector<512x128xf32> to vector<128xf32>
    %64 = vector.shape_cast %63 : vector<128xf32> to vector<1x128xf32>
    %65 = vector.extract_strided_slice %29 {offsets = [0, 5], sizes = [512, 1], strides = [1, 1]} : vector<512x8xi1> to vector<512x1xi1>
    %cst_25 = arith.constant 0xFF800000 : f32
    %66 = vector.shape_cast %65 : vector<512x1xi1> to vector<512x1xi1>
    %67 = vector.broadcast %66 : vector<512x1xi1> to vector<512x128xi1>
    %68 = vector.broadcast %cst_25 : f32 to vector<512x128xf32>
    %69 = arith.select %67, %3, %68 : vector<512x128xi1>, vector<512x128xf32>
    %cst_26 = arith.constant dense<0xFF800000> : vector<128xf32>
    %70 = vector.multi_reduction <maximumf>, %69, %cst_26 [0] : vector<512x128xf32> to vector<128xf32>
    %71 = vector.shape_cast %70 : vector<128xf32> to vector<1x128xf32>
    %72 = vector.extract_strided_slice %29 {offsets = [0, 6], sizes = [512, 1], strides = [1, 1]} : vector<512x8xi1> to vector<512x1xi1>
    %cst_27 = arith.constant 0xFF800000 : f32
    %73 = vector.shape_cast %72 : vector<512x1xi1> to vector<512x1xi1>
    %74 = vector.broadcast %73 : vector<512x1xi1> to vector<512x128xi1>
    %75 = vector.broadcast %cst_27 : f32 to vector<512x128xf32>
    %76 = arith.select %74, %3, %75 : vector<512x128xi1>, vector<512x128xf32>
    %cst_28 = arith.constant dense<0xFF800000> : vector<128xf32>
    %77 = vector.multi_reduction <maximumf>, %76, %cst_28 [0] : vector<512x128xf32> to vector<128xf32>
    %78 = vector.shape_cast %77 : vector<128xf32> to vector<1x128xf32>
    %79 = vector.extract_strided_slice %29 {offsets = [0, 7], sizes = [512, 1], strides = [1, 1]} : vector<512x8xi1> to vector<512x1xi1>
    %cst_29 = arith.constant 0xFF800000 : f32
    %80 = vector.shape_cast %79 : vector<512x1xi1> to vector<512x1xi1>
    %81 = vector.broadcast %80 : vector<512x1xi1> to vector<512x128xi1>
    %82 = vector.broadcast %cst_29 : f32 to vector<512x128xf32>
    %83 = arith.select %81, %3, %82 : vector<512x128xi1>, vector<512x128xf32>
    %cst_30 = arith.constant dense<0xFF800000> : vector<128xf32>
    %84 = vector.multi_reduction <maximumf>, %83, %cst_30 [0] : vector<512x128xf32> to vector<128xf32>
    %85 = vector.shape_cast %84 : vector<128xf32> to vector<1x128xf32>
    %c0_31 = arith.constant 0 : index
    %c0_32 = arith.constant 0 : index
    %86 = vector.load %arg7[%c0_31, %c0_32] : memref<8x128xf32, #tpu.memory_space<vmem>>, vector<8x128xf32>
    %87 = tpu.concatenate %36, %43, %50, %57, %64, %71, %78, %85 in 0 : vector<1x128xf32>, vector<1x128xf32>, vector<1x128xf32>, vector<1x128xf32>, vector<1x128xf32>, vector<1x128xf32>, vector<1x128xf32>, vector<1x128xf32> -> vector<8x128xf32>
    %88 = arith.maximumf %86, %87 : vector<8x128xf32>
    %c0_33 = arith.constant 0 : index
    %c0_34 = arith.constant 0 : index
    %89 = vector.load %arg7[%c0_33, %c0_34] : memref<8x128xf32, #tpu.memory_space<vmem>>, vector<8x128xf32>
    tpu.vector_store %arg7[%c0_33, %c0_34], %88 {strides = array<i32>} : memref<8x128xf32, #tpu.memory_space<vmem>>, vector<8x128xf32>,
    %c0_i32_35 = arith.constant 0 : i32
    %90 = arith.cmpi eq, %arg1, %c0_i32_35 : i32
    %91 = arith.extui %90 : i1 to i32
    %c0_i32_36 = arith.constant 0 : i32
    %92 = arith.cmpi ne, %91, %c0_i32_36 : i32
    scf.if %92 {
      %c0_37 = arith.constant 0 : index
      %c0_38 = arith.constant 0 : index
      %93 = vector.load %arg6[%c0_37, %c0_38] : memref<8x128xf32, #tpu.memory_space<vmem>>, vector<8x128xf32>
      %c0_39 = arith.constant 0 : index
      %c0_40 = arith.constant 0 : index
      %94 = vector.load %arg8[%c0_39, %c0_40] : memref<8x1xf32, #tpu.memory_space<vmem>>, vector<8x1xf32>
      %cst_41 = arith.constant 1.000000e+00 : f32
      %95 = vector.broadcast %cst_41 : f32 to vector<8x1xf32>
      %96 = arith.maximumf %94, %95 : vector<8x1xf32>
      %97 = tpu.reciprocal %96 {approx = true} : vector<8x1xf32> -> vector<8x1xf32>
      %cst_42 = arith.constant 0.000000e+00 : f32
      %98 = vector.broadcast %cst_42 : f32 to vector<8x1xf32>
      %99 = arith.cmpf ogt, %94, %98 : vector<8x1xf32>
      %c0_43 = arith.constant 0 : index
      %c0_44 = arith.constant 0 : index
      %100 = vector.load %arg7[%c0_43, %c0_44] : memref<8x128xf32, #tpu.memory_space<vmem>>, vector<8x128xf32>
      %cst_45 = arith.constant 0.000000e+00 : f32
      %101 = vector.shape_cast %99 : vector<8x1xi1> to vector<8x1xi1>
      %102 = vector.broadcast %101 : vector<8x1xi1> to vector<8x128xi1>
      %103 = vector.broadcast %cst_45 : f32 to vector<8x128xf32>
      %104 = arith.select %102, %100, %103 : vector<8x128xi1>, vector<8x128xf32>
      %c0_46 = arith.constant 0 : index
      %c0_47 = arith.constant 0 : index
      %105 = vector.load %arg5[%c0_46, %c0_47] : memref<8x384xf32, #tpu.memory_space<vmem>>, vector<8x128xf32>
      tpu.vector_store %arg5[%c0_46, %c0_47], %93 {strides = array<i32>} : memref<8x384xf32, #tpu.memory_space<vmem>>, vector<8x128xf32>,
      %c0_48 = arith.constant 0 : index
      %c128 = arith.constant 128 : index
      %106 = vector.load %arg5[%c0_48, %c128] : memref<8x384xf32, #tpu.memory_space<vmem>>, vector<8x128xf32>
      tpu.vector_store %arg5[%c0_48, %c128], %104 {strides = array<i32>} : memref<8x384xf32, #tpu.memory_space<vmem>>, vector<8x128xf32>,
      %107 = vector.broadcast %97 : vector<8x1xf32> to vector<8x128xf32>
      %108 = arith.mulf %93, %107 : vector<8x128xf32>
      %c0_49 = arith.constant 0 : index
      %c256 = arith.constant 256 : index
      %109 = vector.load %arg5[%c0_49, %c256] : memref<8x384xf32, #tpu.memory_space<vmem>>, vector<8x128xf32>
      tpu.vector_store %arg5[%c0_49, %c256], %108 {strides = array<i32>} : memref<8x384xf32, #tpu.memory_space<vmem>>, vector<8x128xf32>,
    } else {
    }
    return
  }
  func.func @transform_0(%arg0: i32, %arg1: i32) -> (i32, i32) {
    %c0_i32 = arith.constant 0 : i32
    %c0_i32_0 = arith.constant 0 : i32
    return %c0_i32, %arg1 : i32, i32
  }
  func.func @transform_1(%arg0: i32, %arg1: i32) -> (i32, i32) {
    %c0_i32 = arith.constant 0 : i32
    %c0_i32_0 = arith.constant 0 : i32
    return %arg1, %c0_i32 : i32, i32
  }
  func.func @transform_2(%arg0: i32, %arg1: i32) -> (i32, i32) {
    %c0_i32 = arith.constant 0 : i32
    %c0_i32_0 = arith.constant 0 : i32
    return %arg1, %c0_i32 : i32, i32
  }
  func.func @transform_3(%arg0: i32, %arg1: i32) -> (i32, i32) {
    %c0_i32 = arith.constant 0 : i32
    %c0_i32_0 = arith.constant 0 : i32
    return %arg0, %c0_i32 : i32, i32
  }
}

</mosaic_0001>

<llo_original>
// kernel: tpu_custom_call.1
$region0: #{tpu_custom_call.1}
  #allocation0 [shape = 'u32[]', space=smem, size = 0x4, offset = 0x4, fixed_abs, tag = 'smem constant byte address 0x4 - core index']
  #allocation1 [shape = 'u32[144,128]{1,0:T(1,128)}', space=vmem, size = 0x12000, scoped, tag = 'internal scratch']
  #allocation2 [shape = 'f32[8,128]{1,0:T(8,128)}', space=vmem, size = 0x1000, scoped, tag = 'scratch operand']
  #allocation3 [shape = 'f32[8,128]{1,0:T(8,128)}', space=vmem, size = 0x1000, scoped, tag = 'scratch operand']
  #allocation4 [shape = 'f32[8,1]{1,0:T(8,128)}', space=vmem, size = 0x1000, scoped, tag = 'scratch operand']
  %s0 = inlined_call_operand.vmem [shape: s32[1,512], index: 0, kind: input, shape index: {}]
  %s1 = inlined_call_operand.vmem [shape: s32[512,1], index: 1, kind: input, shape index: {}]
  %s2 = inlined_call_operand.vmem [shape: f32[512,128], index: 2, kind: input, shape index: {}]
  %s3 = inlined_call_operand.hbm [shape: f32[16,384], index: 3, kind: output, shape index: {}]
  %s4 = sld [smem:[#allocation0]]
  $region53: #{tpu_custom_call.1} parent=0
    _
  %s6 = ssub.s32 1, %s4
  %s7 = scalar_select 0, %s6, %s4
  $region1: #{tpu_custom_call.1} parent=0
    #allocation5 [shape = 'u8[24576]{0}', space=vmem, size = 0x6000, scoped, tag = 'output window, operand 0']
    #allocation6 [shape = 's32[2]{0}', space=sflag, size = 0x8, scoped, tag = 'scoped memory for tpu_custom_call.1']
    %8 = vsyncpa [#allocation6], 0
    %s9 = scalar_lea.sflag [#allocation6], 1
    %10 = vsyncpa %s9, 0
    loop: start=0, step=1, limit=4
    $region2: #{tpu_custom_call.1} parent=1 // loop_pre_header
      _
    $region3: #{tpu_custom_call.1} parent=1 // loop_header
      %s12 = sphi 0, %s16
      %p13 = scmp.ge.s32.totalorder %s12, 4
      %s19 = sphi 0, %s31
      %s20 = sphi 0, %s27
      %s21 = sphi 0, %s19
      %s22 = sphi 0, %s20
      %s23 = sphi 0, %s21
      %s24 = sphi 0, %s22
      %s34 = sphi 0, %s36
      %s37 = sphi 0, %s34
      %s38 = sphi 0, %s37
      %s54 = sphi 0, %s38
      %s60 = sphi 0, %s62
      %s63 = sphi 0, %s60
      %s64 = sphi 0, %s63
      %s80 = sphi 0, %s64
      %s86 = sphi 0, %s88
      %s89 = sphi 0, %s86
      %s90 = sphi 0, %s89
      %s106 = sphi 0, %s90
      %s112 = sphi 0, %s114
      %s115 = sphi 0, %s112
      %s116 = sphi 0, %s115
      %s132 = sphi 0, %s116
    $region4: #{tpu_custom_call.1} parent=1 // loop_header_branch
      %15 = sbr.rel (%p13) target = $region8
    $region5: #{tpu_custom_call.1} parent=1 // loop_body
      %s17 = ssub.s32 %s12, 1
      %s18 = ssub.s32 %s12, 2
      %s25 = sadd.s32 1, %s20
      %p26 = scmp.ge.s32.totalorder %s25, 1
      %s27 = scalar_select %p26, 0, %s25
      %s28 = sadd.s32 1, %s19
      %s29 = scalar_select %p26, %s28, %s19
      %p30 = scmp.ge.s32.totalorder %s29, 2
      %s31 = scalar_select %p30, 0, %s29
      %s32 = ssub.s32 %s20, %s27
      %p33 = scmp.eq.s32.totalorder %s32, 0
      %s35 = sadd.s32 %s34, 1
      %s36 = scalar_select %p33, %s34, %s35
      %p39 = pneg %p33
      %p40 = scmp.eq.s32.totalorder %s12, 1
      %p41 = por %p39, %p40
      %p42 = scmp.ne.s32.totalorder %s34, %s37
      %p43 = scmp.eq.s32.totalorder %s12, 0
      %p44 = por %p42, %p43
      %p45 = scmp.ne.s32.totalorder %s34, %s37
      %p46 = scmp.eq.s32.totalorder %s17, 1
      %p47 = por %p45, %p46
      %p48 = scmp.ne.s32.totalorder %s37, %s38
      %p49 = scmp.eq.s32.totalorder %s17, 0
      %p50 = por %p48, %p49
      %p51 = scmp.ne.s32.totalorder %s37, %s38
      %p52 = scmp.eq.s32.totalorder %s18, 1
      %p53 = por %p51, %p52
      %p55 = scmp.ne.s32.totalorder %s38, %s54
      %p56 = scmp.eq.s32.totalorder %s18, 0
      %p57 = por %p55, %p56
      %s58 = ssub.s32 %s20, %s27
      %p59 = scmp.eq.s32.totalorder %s58, 0
      %s61 = sadd.s32 %s60, 1
      %s62 = scalar_select %p59, %s60, %s61
      %p65 = pneg %p59
      %p66 = scmp.eq.s32.totalorder %s12, 1
      %p67 = por %p65, %p66
      %p68 = scmp.ne.s32.totalorder %s60, %s63
      %p69 = scmp.eq.s32.totalorder %s12, 0
      %p70 = por %p68, %p69
      %p71 = scmp.ne.s32.totalorder %s60, %s63
      %p72 = scmp.eq.s32.totalorder %s17, 1
      %p73 = por %p71, %p72
      %p74 = scmp.ne.s32.totalorder %s63, %s64
      %p75 = scmp.eq.s32.totalorder %s17, 0
      %p76 = por %p74, %p75
      %p77 = scmp.ne.s32.totalorder %s63, %s64
      %p78 = scmp.eq.s32.totalorder %s18, 1
      %p79 = por %p77, %p78
      %p81 = scmp.ne.s32.totalorder %s64, %s80
      %p82 = scmp.eq.s32.totalorder %s18, 0
      %p83 = por %p81, %p82
      %s84 = ssub.s32 %s20, %s27
      %p85 = scmp.eq.s32.totalorder %s84, 0
      %s87 = sadd.s32 %s86, 1
      %s88 = scalar_select %p85, %s86, %s87
      %p91 = pneg %p85
      %p92 = scmp.eq.s32.totalorder %s12, 1
      %p93 = por %p91, %p92
      %p94 = scmp.ne.s32.totalorder %s86, %s89
      %p95 = scmp.eq.s32.totalorder %s12, 0
      %p96 = por %p94, %p95
      %p97 = scmp.ne.s32.totalorder %s86, %s89
      %p98 = scmp.eq.s32.totalorder %s17, 1
      %p99 = por %p97, %p98
      %p100 = scmp.ne.s32.totalorder %s89, %s90
      %p101 = scmp.eq.s32.totalorder %s17, 0
      %p102 = por %p100, %p101
      %p103 = scmp.ne.s32.totalorder %s89, %s90
      %p104 = scmp.eq.s32.totalorder %s18, 1
      %p105 = por %p103, %p104
      %p107 = scmp.ne.s32.totalorder %s90, %s106
      %p108 = scmp.eq.s32.totalorder %s18, 0
      %p109 = por %p107, %p108
      %s110 = ssub.s32 %s19, %s31
      %p111 = scmp.eq.s32.totalorder %s110, 0
      %s113 = sadd.s32 %s112, 1
      %s114 = scalar_select %p111, %s112, %s113
      %p117 = pneg %p111
      %p118 = scmp.eq.s32.totalorder %s12, 1
      %p119 = por %p117, %p118
      %p120 = scmp.ne.s32.totalorder %s112, %s115
      %p121 = scmp.eq.s32.totalorder %s12, 0
      %p122 = por %p120, %p121
      %p123 = scmp.ne.s32.totalorder %s112, %s115
      %p124 = scmp.eq.s32.totalorder %s17, 1
      %p125 = por %p123, %p124
      %p126 = scmp.ne.s32.totalorder %s115, %s116
      %p127 = scmp.eq.s32.totalorder %s17, 0
      %p128 = por %p126, %p127
      %p129 = scmp.ne.s32.totalorder %s115, %s116
      %p130 = scmp.eq.s32.totalorder %s18, 1
      %p131 = por %p129, %p130
      %p133 = scmp.ne.s32.totalorder %s116, %s132
      %p134 = scmp.eq.s32.totalorder %s18, 0
      %p135 = por %p133, %p134
      %p136 = scmp.le.s32.totalorder 1, %s12
      %p137 = scmp.lt.s32.totalorder %s12, 3
      %p138 = pnand %p136, %p137
      %p139 = pneg %p138
      // Predicated region
      $region9: #{tpu_custom_call.1} parent=5 // pred_check
        _
      $region10: #{tpu_custom_call.1} parent=5 // pred_check_branch
        %141 = sbr.rel (%p138) target = $region12
      $region11: #{tpu_custom_call.1} parent=5 // pred_region
        %s142 = ssub.s32 %s12, 1
        // Predicated region
        $region13: #{tpu_custom_call.1} parent=11 // pred_check
          %p143 = pneg %p50
        $region14: #{tpu_custom_call.1} parent=11 // pred_check_branch
          %145 = sbr.rel (%p143) target = $region16
        $region15: #{tpu_custom_call.1} parent=11 // pred_region
          %s146 = smul.u32 4, %s22
          %p147 = scmp.lt.s32.totalorder %s146, 3
          %s148 = scalar_select %p147, %s146, 3
          %s149 = scalar_lea.vmem %s0, %s148
          %s150 = smul.u32 4, %s22
        $region16: #{tpu_custom_call.1} parent=11 // pred_fallthru
          _
        // Predicated region
        $region17: #{tpu_custom_call.1} parent=11 // pred_check
          %p151 = pneg %p76
        $region18: #{tpu_custom_call.1} parent=11 // pred_check_branch
          %153 = sbr.rel (%p151) target = $region20
        $region19: #{tpu_custom_call.1} parent=11 // pred_region
          %s154 = smul.u32 64, %s22
          %p155 = scmp.lt.s32.totalorder %s154, 63
          %s156 = scalar_select %p155, %s154, 63
          %s157 = smul.addr %s156, 8
          %s158 = scalar_lea.vmem %s1, %s157
          %s159 = smul.u32 64, %s22
        $region20: #{tpu_custom_call.1} parent=11 // pred_fallthru
          _
        // Predicated region
        $region21: #{tpu_custom_call.1} parent=11 // pred_check
          %p160 = pneg %p102
        $region22: #{tpu_custom_call.1} parent=11 // pred_check_branch
          %162 = sbr.rel (%p160) target = $region24
        $region23: #{tpu_custom_call.1} parent=11 // pred_region
          %s163 = smul.u32 64, %s22
          %p164 = scmp.lt.s32.totalorder %s163, 63
          %s165 = scalar_select %p164, %s163, 63
          %s166 = smul.addr %s165, 8
          %s167 = scalar_lea.vmem %s2, %s166
          %s168 = smul.u32 64, %s22
        $region24: #{tpu_custom_call.1} parent=11 // pred_fallthru
          _
      $region12: #{tpu_custom_call.1} parent=5 // pred_fallthru
        _
      %p169 = scmp.lt.s32.totalorder %s12, 2
      // Predicated region
      $region25: #{tpu_custom_call.1} parent=5 // pred_check
        %p170 = pneg %p169
      $region26: #{tpu_custom_call.1} parent=5 // pred_check_branch
        %172 = sbr.rel (%p170) target = $region28
      $region27: #{tpu_custom_call.1} parent=5 // pred_region
        _
      $region28: #{tpu_custom_call.1} parent=5 // pred_fallthru
        _
      %p173 = scmp.le.s32.totalorder 1, %s12
      %p174 = scmp.lt.s32.totalorder %s12, 3
      %p175 = pnand %p173, %p174
      %p176 = pneg %p175
      // Predicated region
      $region29: #{tpu_custom_call.1} parent=5 // pred_check
        _
      $region30: #{tpu_custom_call.1} parent=5 // pred_check_branch
        %178 = sbr.rel (%p175) target = $region32
      $region31: #{tpu_custom_call.1} parent=5 // pred_region
        %s179 = ssub.s32 %s12, 1
        %s180 = smul.u32 4, %s22
        %p181 = scmp.lt.s32.totalorder %s180, 3
        %s182 = scalar_select %p181, %s180, 3
        %s183 = scalar_lea.vmem %s0, %s182
        %p184 = pneg %p50
        %p185 = pneg %p47
        %s186 = smul.u32 64, %s22
        %p187 = scmp.lt.s32.totalorder %s186, 63
        %s188 = scalar_select %p187, %s186, 63
        %s189 = smul.addr %s188, 8
        %s190 = scalar_lea.vmem %s1, %s189
        %p191 = pneg %p76
        %p192 = pneg %p73
        %s193 = smul.u32 64, %s22
        %p194 = scmp.lt.s32.totalorder %s193, 63
        %s195 = scalar_select %p194, %s193, 63
        %s196 = smul.addr %s195, 8
        %s197 = scalar_lea.vmem %s2, %s196
        %p198 = pneg %p102
        %p199 = pneg %p99
        %p200 = pneg %p128
        %p201 = pneg %p125
        %s202 = sand.u32 %s115, 1
        %s203 = scalar_lea.sflag [#allocation6], %s202
        %s204 = sand.u32 %s115, 1
        %s205 = smul.addr %s204, 24
        %s206 = scalar_lea.vmem [#allocation5], %s205
        %s207 = smul.u32 4, %s22
        %p208 = scmp.lt.s32.totalorder %s207, 3
        %s209 = scalar_select %p208, %s207, 3
        %s210 = scalar_lea.vmem %s0, %s209
        %s211 = smul.u32 4, %s22
        %s212 = smul.u32 64, %s22
        %p213 = scmp.lt.s32.totalorder %s212, 63
        %s214 = scalar_select %p213, %s212, 63
        %s215 = smul.addr %s214, 8
        %s216 = scalar_lea.vmem %s1, %s215
        %s217 = smul.u32 64, %s22
        %s218 = smul.u32 64, %s22
        %p219 = scmp.lt.s32.totalorder %s218, 63
        %s220 = scalar_select %p219, %s218, 63
        %s221 = smul.addr %s220, 8
        %s222 = scalar_lea.vmem %s2, %s221
        %s223 = smul.u32 64, %s22
        %p224 = scmp.eq.s32.totalorder %s22, 0
        // Predicated region
        $region33: #{tpu_custom_call.1} parent=31 // pred_check
          %p225 = pneg %p224
        $region34: #{tpu_custom_call.1} parent=31 // pred_check_branch
          %227 = sbr.rel (%p225) target = $region36
        $region35: #{tpu_custom_call.1} parent=31 // pred_region
          %228 = vst [vmem:[#allocation2] sm:$0xff] 0.0
          %vm229 = vcmask 7168
          %230 = vst.msk [vmem:[#allocation4] sm:$0xff] %vm229, 0.0
          %231 = vst [vmem:[#allocation3] sm:$0xff] -inf
        $region36: #{tpu_custom_call.1} parent=31 // pred_fallthru
          _
        %v232 = vld [vmem:[%s222] sm:$0xff]
        %v233 = vld [vmem:[%s222 + $0x8] sm:$0xff]
        %v234 = vld [vmem:[%s222 + $0x10] sm:$0xff]
        %v235 = vld [vmem:[%s222 + $0x18] sm:$0xff]
        %v236 = vld [vmem:[%s222 + $0x20] sm:$0xff]
        %v237 = vld [vmem:[%s222 + $0x28] sm:$0xff]
        %v238 = vld [vmem:[%s222 + $0x30] sm:$0xff]
        %v239 = vld [vmem:[%s222 + $0x38] sm:$0xff]
        %v240 = vld [vmem:[%s222 + $0x40] sm:$0xff]
        %v241 = vld [vmem:[%s222 + $0x48] sm:$0xff]
        %v242 = vld [vmem:[%s222 + $0x50] sm:$0xff]
        %v243 = vld [vmem:[%s222 + $0x58] sm:$0xff]
        %v244 = vld [vmem:[%s222 + $0x60] sm:$0xff]
        %v245 = vld [vmem:[%s222 + $0x68] sm:$0xff]
        %v246 = vld [vmem:[%s222 + $0x70] sm:$0xff]
        %v247 = vld [vmem:[%s222 + $0x78] sm:$0xff]
        %v248 = vld [vmem:[%s222 + $0x80] sm:$0xff]
        %v249 = vld [vmem:[%s222 + $0x88] sm:$0xff]
        %v250 = vld [vmem:[%s222 + $0x90] sm:$0xff]
        %v251 = vld [vmem:[%s222 + $0x98] sm:$0xff]
        %v252 = vld [vmem:[%s222 + $0xa0] sm:$0xff]
        %v253 = vld [vmem:[%s222 + $0xa8] sm:$0xff]
        %v254 = vld [vmem:[%s222 + $0xb0] sm:$0xff]
        %v255 = vld [vmem:[%s222 + $0xb8] sm:$0xff]
        %v256 = vld [vmem:[%s222 + $0xc0] sm:$0xff]
        %v257 = vld [vmem:[%s222 + $0xc8] sm:$0xff]
        %v258 = vld [vmem:[%s222 + $0xd0] sm:$0xff]
        %v259 = vld [vmem:[%s222 + $0xd8] sm:$0xff]
        %v260 = vld [vmem:[%s222 + $0xe0] sm:$0xff]
        %v261 = vld [vmem:[%s222 + $0xe8] sm:$0xff]
        %v262 = vld [vmem:[%s222 + $0xf0] sm:$0xff]
        %v263 = vld [vmem:[%s222 + $0xf8] sm:$0xff]
        %v264 = vld [vmem:[%s222 + $0x100] sm:$0xff]
        %v265 = vld [vmem:[%s222 + $0x108] sm:$0xff]
        %v266 = vld [vmem:[%s222 + $0x110] sm:$0xff]
        %v267 = vld [vmem:[%s222 + $0x118] sm:$0xff]
        %v268 = vld [vmem:[%s222 + $0x120] sm:$0xff]
        %v269 = vld [vmem:[%s222 + $0x128] sm:$0xff]
        %v270 = vld [vmem:[%s222 + $0x130] sm:$0xff]
        %v271 = vld [vmem:[%s222 + $0x138] sm:$0xff]
        %v272 = vld [vmem:[%s222 + $0x140] sm:$0xff]
        %v273 = vld [vmem:[%s222 + $0x148] sm:$0xff]
        %v274 = vld [vmem:[%s222 + $0x150] sm:$0xff]
        %v275 = vld [vmem:[%s222 + $0x158] sm:$0xff]
        %v276 = vld [vmem:[%s222 + $0x160] sm:$0xff]
        %v277 = vld [vmem:[%s222 + $0x168] sm:$0xff]
        %v278 = vld [vmem:[%s222 + $0x170] sm:$0xff]
        %v279 = vld [vmem:[%s222 + $0x178] sm:$0xff]
        %v280 = vld [vmem:[%s222 + $0x180] sm:$0xff]
        %v281 = vld [vmem:[%s222 + $0x188] sm:$0xff]
        %v282 = vld [vmem:[%s222 + $0x190] sm:$0xff]
        %v283 = vld [vmem:[%s222 + $0x198] sm:$0xff]
        %v284 = vld [vmem:[%s222 + $0x1a0] sm:$0xff]
        %v285 = vld [vmem:[%s222 + $0x1a8] sm:$0xff]
        %v286 = vld [vmem:[%s222 + $0x1b0] sm:$0xff]
        %v287 = vld [vmem:[%s222 + $0x1b8] sm:$0xff]
        %v288 = vld [vmem:[%s222 + $0x1c0] sm:$0xff]
        %v289 = vld [vmem:[%s222 + $0x1c8] sm:$0xff]
        %v290 = vld [vmem:[%s222 + $0x1d0] sm:$0xff]
        %v291 = vld [vmem:[%s222 + $0x1d8] sm:$0xff]
        %v292 = vld [vmem:[%s222 + $0x1e0] sm:$0xff]
        %v293 = vld [vmem:[%s222 + $0x1e8] sm:$0xff]
        %v294 = vld [vmem:[%s222 + $0x1f0] sm:$0xff]
        %v295 = vld [vmem:[%s222 + $0x1f8] sm:$0xff]
        %v296 = vld [vmem:[%s210] sm:$0xf]
        %v297 = vld [vmem:[%s216] sm:$0xff]
        %v298 = vld [vmem:[%s216 + $0x8] sm:$0xff]
        %v299 = vld [vmem:[%s216 + $0x10] sm:$0xff]
        %v300 = vld [vmem:[%s216 + $0x18] sm:$0xff]
        %v301 = vld [vmem:[%s216 + $0x20] sm:$0xff]
        %v302 = vld [vmem:[%s216 + $0x28] sm:$0xff]
        %v303 = vld [vmem:[%s216 + $0x30] sm:$0xff]
        %v304 = vld [vmem:[%s216 + $0x38] sm:$0xff]
        %v305 = vld [vmem:[%s216 + $0x40] sm:$0xff]
        %v306 = vld [vmem:[%s216 + $0x48] sm:$0xff]
        %v307 = vld [vmem:[%s216 + $0x50] sm:$0xff]
        %v308 = vld [vmem:[%s216 + $0x58] sm:$0xff]
        %v309 = vld [vmem:[%s216 + $0x60] sm:$0xff]
        %v310 = vld [vmem:[%s216 + $0x68] sm:$0xff]
        %v311 = vld [vmem:[%s216 + $0x70] sm:$0xff]
        %v312 = vld [vmem:[%s216 + $0x78] sm:$0xff]
        %v313 = vld [vmem:[%s216 + $0x80] sm:$0xff]
        %v314 = vld [vmem:[%s216 + $0x88] sm:$0xff]
        %v315 = vld [vmem:[%s216 + $0x90] sm:$0xff]
        %v316 = vld [vmem:[%s216 + $0x98] sm:$0xff]
        %v317 = vld [vmem:[%s216 + $0xa0] sm:$0xff]
        %v318 = vld [vmem:[%s216 + $0xa8] sm:$0xff]
        %v319 = vld [vmem:[%s216 + $0xb0] sm:$0xff]
        %v320 = vld [vmem:[%s216 + $0xb8] sm:$0xff]
        %v321 = vld [vmem:[%s216 + $0xc0] sm:$0xff]
        %v322 = vld [vmem:[%s216 + $0xc8] sm:$0xff]
        %v323 = vld [vmem:[%s216 + $0xd0] sm:$0xff]
        %v324 = vld [vmem:[%s216 + $0xd8] sm:$0xff]
        %v325 = vld [vmem:[%s216 + $0xe0] sm:$0xff]
        %v326 = vld [vmem:[%s216 + $0xe8] sm:$0xff]
        %v327 = vld [vmem:[%s216 + $0xf0] sm:$0xff]
        %v328 = vld [vmem:[%s216 + $0xf8] sm:$0xff]
        %v329 = vld [vmem:[%s216 + $0x100] sm:$0xff]
        %v330 = vld [vmem:[%s216 + $0x108] sm:$0xff]
        %v331 = vld [vmem:[%s216 + $0x110] sm:$0xff]
        %v332 = vld [vmem:[%s216 + $0x118] sm:$0xff]
        %v333 = vld [vmem:[%s216 + $0x120] sm:$0xff]
        %v334 = vld [vmem:[%s216 + $0x128] sm:$0xff]
        %v335 = vld [vmem:[%s216 + $0x130] sm:$0xff]
        %v336 = vld [vmem:[%s216 + $0x138] sm:$0xff]
        %v337 = vld [vmem:[%s216 + $0x140] sm:$0xff]
        %v338 = vld [vmem:[%s216 + $0x148] sm:$0xff]
        %v339 = vld [vmem:[%s216 + $0x150] sm:$0xff]
        %v340 = vld [vmem:[%s216 + $0x158] sm:$0xff]
        %v341 = vld [vmem:[%s216 + $0x160] sm:$0xff]
        %v342 = vld [vmem:[%s216 + $0x168] sm:$0xff]
        %v343 = vld [vmem:[%s216 + $0x170] sm:$0xff]
        %v344 = vld [vmem:[%s216 + $0x178] sm:$0xff]
        %v345 = vld [vmem:[%s216 + $0x180] sm:$0xff]
        %v346 = vld [vmem:[%s216 + $0x188] sm:$0xff]
        %v347 = vld [vmem:[%s216 + $0x190] sm:$0xff]
        %v348 = vld [vmem:[%s216 + $0x198] sm:$0xff]
        %v349 = vld [vmem:[%s216 + $0x1a0] sm:$0xff]
        %v350 = vld [vmem:[%s216 + $0x1a8] sm:$0xff]
        %v351 = vld [vmem:[%s216 + $0x1b0] sm:$0xff]
        %v352 = vld [vmem:[%s216 + $0x1b8] sm:$0xff]
        %v353 = vld [vmem:[%s216 + $0x1c0] sm:$0xff]
        %v354 = vld [vmem:[%s216 + $0x1c8] sm:$0xff]
        %v355 = vld [vmem:[%s216 + $0x1d0] sm:$0xff]
        %v356 = vld [vmem:[%s216 + $0x1d8] sm:$0xff]
        %v357 = vld [vmem:[%s216 + $0x1e0] sm:$0xff]
        %v358 = vld [vmem:[%s216 + $0x1e8] sm:$0xff]
        %v359 = vld [vmem:[%s216 + $0x1f0] sm:$0xff]
        %v360 = vld [vmem:[%s216 + $0x1f8] sm:$0xff]
        %s361 = smul.u32 %s21, 8
        %v362 = vlaneseq
        %v363 = vshrl.u32 %v362, 7
        %v364 = vstv %s361
        %v365 = vadd.s32 %v364, %v363
        %v366 = vlaneseq
        %v367 = vand.u32 %v366, 127
        %v368 = vadd.s32 %v364, %v367
        %v369 = vlaneseq
        %v370 = vshrl.u32 %v369, 7
        %v371 = vsub.s32 0, %v370
        %v372 = vrot.slane %v296, %v371
        %v373 = vlaneseq
        %v374 = vshrl.u32 %v373, 7
        %v375 = vsub.s32 1, %v374
        %v376 = vrot.slane %v296, %v375
        %v377 = vlaneseq
        %v378 = vshrl.u32 %v377, 7
        %v379 = vsub.s32 2, %v378
        %v380 = vrot.slane %v296, %v379
        %v381 = vlaneseq
        %v382 = vshrl.u32 %v381, 7
        %v383 = vsub.s32 3, %v382
        %v384 = vrot.slane %v296, %v383
        %vm385 = vcmp.eq.s32.totalorder %v372, %v365
        %vm386 = vcmp.eq.s32.totalorder %v376, %v365
        %vm387 = vcmp.eq.s32.totalorder %v380, %v365
        %vm388 = vcmp.eq.s32.totalorder %v384, %v365
        %v389 = vsel %vm385, 1, 0
        %v390 = vsel %vm386, 1, 0
        %v391 = vsel %vm387, 1, 0
        %v392 = vsel %vm388, 1, 0
        %v393 = vcvt.s32.f32 %v389
        %v394 = vcvt.s32.f32 %v390
        %v395 = vcvt.s32.f32 %v391
        %v396 = vcvt.s32.f32 %v392
        %v397 = vld [vmem:[#allocation2] sm:$0xff]
        %398 = vmatprep.subr.mxu0 0.0
        %399 = vmatpush1.msra.mxu0 %v232
        %400 = vmatprep.subr.mxu0 0.0
        %401 = vmatpush1.msra.mxu0 %v233
        %402 = vmatprep.subr.mxu0 0.0
        %403 = vmatpush1.msra.mxu0 %v234
        %404 = vmatprep.subr.mxu0 0.0
        %405 = vmatpush1.msra.mxu0 %v235
        %406 = vmatprep.subr.mxu0 0.0
        %407 = vmatpush1.msra.mxu0 %v236
        %408 = vmatprep.subr.mxu0 0.0
        %409 = vmatpush1.msra.mxu0 %v237
        %410 = vmatprep.subr.mxu0 0.0
        %411 = vmatpush1.msra.mxu0 %v238
        %412 = vmatprep.subr.mxu0 0.0
        %413 = vmatpush1.msra.mxu0 %v239
        %414 = vmatprep.subr.mxu0 0.0
        %415 = vmatpush1.msra.mxu0 %v240
        %416 = vmatprep.subr.mxu0 0.0
        %417 = vmatpush1.msra.mxu0 %v241
        %418 = vmatprep.subr.mxu0 0.0
        %419 = vmatpush1.msra.mxu0 %v242
        %420 = vmatprep.subr.mxu0 0.0
        %421 = vmatpush1.msra.mxu0 %v243
        %422 = vmatprep.subr.mxu0 0.0
        %423 = vmatpush1.msra.mxu0 %v244
        %424 = vmatprep.subr.mxu0 0.0
        %425 = vmatpush1.msra.mxu0 %v245
        %426 = vmatprep.subr.mxu0 0.0
        %427 = vmatpush1.msra.mxu0 %v246
        %428 = vmatprep.subr.mxu0 0.0
        %429 = vmatpush1.msra.mxu0 %v247
        %430 = vmatprep.subr.mxu0 0.0
        %431 = vmatpush1.msra.mxu0 %v248
        %432 = vmatprep.subr.mxu0 0.0
        %433 = vmatpush1.msra.mxu0 %v249
        %434 = vmatprep.subr.mxu0 0.0
        %435 = vmatpush1.msra.mxu0 %v250
        %436 = vmatprep.subr.mxu0 0.0
        %437 = vmatpush1.msra.mxu0 %v251
        %438 = vmatprep.subr.mxu0 0.0
        %439 = vmatpush1.msra.mxu0 %v252
        %440 = vmatprep.subr.mxu0 0.0
        %441 = vmatpush1.msra.mxu0 %v253
        %442 = vmatprep.subr.mxu0 0.0
        %443 = vmatpush1.msra.mxu0 %v254
        %444 = vmatprep.subr.mxu0 0.0
        %445 = vmatpush1.msra.mxu0 %v255
        %446 = vmatprep.subr.mxu0 0.0
        %447 = vmatpush1.msra.mxu0 %v256
        %448 = vmatprep.subr.mxu0 0.0
        %449 = vmatpush1.msra.mxu0 %v257
        %450 = vmatprep.subr.mxu0 0.0
        %451 = vmatpush1.msra.mxu0 %v258
        %452 = vmatprep.subr.mxu0 0.0
        %453 = vmatpush1.msra.mxu0 %v259
        %454 = vmatprep.subr.mxu0 0.0
        %455 = vmatpush1.msra.mxu0 %v260
        %456 = vmatprep.subr.mxu0 0.0
        %457 = vmatpush1.msra.mxu0 %v261
        %458 = vmatprep.subr.mxu0 0.0
        %459 = vmatpush1.msra.mxu0 %v262
        %460 = vmatprep.subr.mxu0 0.0
        %461 = vmatpush1.msra.mxu0 %v263
        %462 = vmatprep.mubr.f32.mxu0 %v394
        %463 = vmatmul.mubr.f32.gmra.mrb[0].mxu0 %v393
        %v464 = vpop.f32.mrb[0].mxu0
        %v465 = vadd.f32 0.0, %v464
        %v466 = vpop.f32.mrb[0].mxu0
        %467 = vdwg.mxu0
        %468 = vmatprep.subr.mxu0 0.0
        %469 = vmatpush1.msra.mxu0 %v264
        %470 = vmatprep.subr.mxu0 0.0
        %471 = vmatpush1.msra.mxu0 %v265
        %472 = vmatprep.subr.mxu0 0.0
        %473 = vmatpush1.msra.mxu0 %v266
        %474 = vmatprep.subr.mxu0 0.0
        %475 = vmatpush1.msra.mxu0 %v267
        %476 = vmatprep.subr.mxu0 0.0
        %477 = vmatpush1.msra.mxu0 %v268
        %478 = vmatprep.subr.mxu0 0.0
        %479 = vmatpush1.msra.mxu0 %v269
        %480 = vmatprep.subr.mxu0 0.0
        %481 = vmatpush1.msra.mxu0 %v270
        %482 = vmatprep.subr.mxu0 0.0
        %483 = vmatpush1.msra.mxu0 %v271
        %484 = vmatprep.subr.mxu0 0.0
        %485 = vmatpush1.msra.mxu0 %v272
        %486 = vmatprep.subr.mxu0 0.0
        %487 = vmatpush1.msra.mxu0 %v273
        %488 = vmatprep.subr.mxu0 0.0
        %489 = vmatpush1.msra.mxu0 %v274
        %490 = vmatprep.subr.mxu0 0.0
        %491 = vmatpush1.msra.mxu0 %v275
        %492 = vmatprep.subr.mxu0 0.0
        %493 = vmatpush1.msra.mxu0 %v276
        %494 = vmatprep.subr.mxu0 0.0
        %495 = vmatpush1.msra.mxu0 %v277
        %496 = vmatprep.subr.mxu0 0.0
        %497 = vmatpush1.msra.mxu0 %v278
        %498 = vmatprep.subr.mxu0 0.0
        %499 = vmatpush1.msra.mxu0 %v279
        %500 = vmatprep.subr.mxu0 0.0
        %501 = vmatpush1.msra.mxu0 %v280
        %502 = vmatprep.subr.mxu0 0.0
        %503 = vmatpush1.msra.mxu0 %v281
        %504 = vmatprep.subr.mxu0 0.0
        %505 = vmatpush1.msra.mxu0 %v282
        %506 = vmatprep.subr.mxu0 0.0
        %507 = vmatpush1.msra.mxu0 %v283
        %508 = vmatprep.subr.mxu0 0.0
        %509 = vmatpush1.msra.mxu0 %v284
        %510 = vmatprep.subr.mxu0 0.0
        %511 = vmatpush1.msra.mxu0 %v285
        %512 = vmatprep.subr.mxu0 0.0
        %513 = vmatpush1.msra.mxu0 %v286
        %514 = vmatprep.subr.mxu0 0.0
        %515 = vmatpush1.msra.mxu0 %v287
        %516 = vmatprep.subr.mxu0 0.0
        %517 = vmatpush1.msra.mxu0 %v288
        %518 = vmatprep.subr.mxu0 0.0
        %519 = vmatpush1.msra.mxu0 %v289
        %520 = vmatprep.subr.mxu0 0.0
        %521 = vmatpush1.msra.mxu0 %v290
        %522 = vmatprep.subr.mxu0 0.0
        %523 = vmatpush1.msra.mxu0 %v291
        %524 = vmatprep.subr.mxu0 0.0
        %525 = vmatpush1.msra.mxu0 %v292
        %526 = vmatprep.subr.mxu0 0.0
        %527 = vmatpush1.msra.mxu0 %v293
        %528 = vmatprep.subr.mxu0 0.0
        %529 = vmatpush1.msra.mxu0 %v294
        %530 = vmatprep.subr.mxu0 0.0
        %531 = vmatpush1.msra.mxu0 %v295
        %532 = vmatprep.mubr.f32.mxu0 %v396
        %533 = vmatmul.mubr.f32.gmra.mrb[0].mxu0 %v395
        %v534 = vpop.f32.mrb[0].mxu0
        %v535 = vadd.f32 %v465, %v534
        %v536 = vpop.f32.mrb[0].mxu0
        %537 = vdwg.mxu0
        %v538 = vadd.f32 %v397, %v535
        %539 = vst [vmem:[#allocation2] sm:$0xff] %v538
        %v540 = vld [vmem:[#allocation4] sm:$0xff]
        %v541 = vadd.f32 %v393, %v394
        %v542 = vadd.f32 %v541, %v395
        %v543 = vadd.f32 %v542, %v396
        %544 = vadd.xlane.f32.xlu0 %v543
        %v545 = vpop.xlane.xlu0 %544
        %v546 = vadd.f32 %v540, %v545
        %vm547 = vcmask 7168
        %548 = vst.msk [vmem:[#allocation4] sm:$0xff] %vm547, %v546
        %549 = vset.pattern.permute.xlu0 0
        %550 = vperm.xlu0 %549, %v297
        %v551 = vpop.permute.xlu0 %550
        %552 = vset.pattern.permute.xlu0 0
        %553 = vperm.xlu0 %552, %v298
        %v554 = vpop.permute.xlu0 %553
        %555 = vset.pattern.permute.xlu0 0
        %556 = vperm.xlu0 %555, %v299
        %v557 = vpop.permute.xlu0 %556
        %558 = vset.pattern.permute.xlu0 0
        %559 = vperm.xlu0 %558, %v300
        %v560 = vpop.permute.xlu0 %559
        %561 = vset.pattern.permute.xlu0 0
        %562 = vperm.xlu0 %561, %v301
        %v563 = vpop.permute.xlu0 %562
        %564 = vset.pattern.permute.xlu0 0
        %565 = vperm.xlu0 %564, %v302
        %v566 = vpop.permute.xlu0 %565
        %567 = vset.pattern.permute.xlu0 0
        %568 = vperm.xlu0 %567, %v303
        %v569 = vpop.permute.xlu0 %568
        %570 = vset.pattern.permute.xlu0 0
        %571 = vperm.xlu0 %570, %v304
        %v572 = vpop.permute.xlu0 %571
        %573 = vset.pattern.permute.xlu0 0
        %574 = vperm.xlu0 %573, %v305
        %v575 = vpop.permute.xlu0 %574
        %576 = vset.pattern.permute.xlu0 0
        %577 = vperm.xlu0 %576, %v306
        %v578 = vpop.permute.xlu0 %577
        %579 = vset.pattern.permute.xlu0 0
        %580 = vperm.xlu0 %579, %v307
        %v581 = vpop.permute.xlu0 %580
        %582 = vset.pattern.permute.xlu0 0
        %583 = vperm.xlu0 %582, %v308
        %v584 = vpop.permute.xlu0 %583
        %585 = vset.pattern.permute.xlu0 0
        %586 = vperm.xlu0 %585, %v309
        %v587 = vpop.permute.xlu0 %586
        %588 = vset.pattern.permute.xlu0 0
        %589 = vperm.xlu0 %588, %v310
        %v590 = vpop.permute.xlu0 %589
        %591 = vset.pattern.permute.xlu0 0
        %592 = vperm.xlu0 %591, %v311
        %v593 = vpop.permute.xlu0 %592
        %594 = vset.pattern.permute.xlu0 0
        %595 = vperm.xlu0 %594, %v312
        %v596 = vpop.permute.xlu0 %595
        %597 = vset.pattern.permute.xlu0 0
        %598 = vperm.xlu0 %597, %v313
        %v599 = vpop.permute.xlu0 %598
        %600 = vset.pattern.permute.xlu0 0
        %601 = vperm.xlu0 %600, %v314
        %v602 = vpop.permute.xlu0 %601
        %603 = vset.pattern.permute.xlu0 0
        %604 = vperm.xlu0 %603, %v315
        %v605 = vpop.permute.xlu0 %604
        %606 = vset.pattern.permute.xlu0 0
        %607 = vperm.xlu0 %606, %v316
        %v608 = vpop.permute.xlu0 %607
        %609 = vset.pattern.permute.xlu0 0
        %610 = vperm.xlu0 %609, %v317
        %v611 = vpop.permute.xlu0 %610
        %612 = vset.pattern.permute.xlu0 0
        %613 = vperm.xlu0 %612, %v318
        %v614 = vpop.permute.xlu0 %613
        %615 = vset.pattern.permute.xlu0 0
        %616 = vperm.xlu0 %615, %v319
        %v617 = vpop.permute.xlu0 %616
        %618 = vset.pattern.permute.xlu0 0
        %619 = vperm.xlu0 %618, %v320
        %v620 = vpop.permute.xlu0 %619
        %621 = vset.pattern.permute.xlu0 0
        %622 = vperm.xlu0 %621, %v321
        %v623 = vpop.permute.xlu0 %622
        %624 = vset.pattern.permute.xlu0 0
        %625 = vperm.xlu0 %624, %v322
        %v626 = vpop.permute.xlu0 %625
        %627 = vset.pattern.permute.xlu0 0
        %628 = vperm.xlu0 %627, %v323
        %v629 = vpop.permute.xlu0 %628
        %630 = vset.pattern.permute.xlu0 0
        %631 = vperm.xlu0 %630, %v324
        %v632 = vpop.permute.xlu0 %631
        %633 = vset.pattern.permute.xlu0 0
        %634 = vperm.xlu0 %633, %v325
        %v635 = vpop.permute.xlu0 %634
        %636 = vset.pattern.permute.xlu0 0
        %637 = vperm.xlu0 %636, %v326
        %v638 = vpop.permute.xlu0 %637
        %639 = vset.pattern.permute.xlu0 0
        %640 = vperm.xlu0 %639, %v327
        %v641 = vpop.permute.xlu0 %640
        %642 = vset.pattern.permute.xlu0 0
        %643 = vperm.xlu0 %642, %v328
        %v644 = vpop.permute.xlu0 %643
        %645 = vset.pattern.permute.xlu0 0
        %646 = vperm.xlu0 %645, %v329
        %v647 = vpop.permute.xlu0 %646
        %648 = vset.pattern.permute.xlu0 0
        %649 = vperm.xlu0 %648, %v330
        %v650 = vpop.permute.xlu0 %649
        %651 = vset.pattern.permute.xlu0 0
        %652 = vperm.xlu0 %651, %v331
        %v653 = vpop.permute.xlu0 %652
        %654 = vset.pattern.permute.xlu0 0
        %655 = vperm.xlu0 %654, %v332
        %v656 = vpop.permute.xlu0 %655
        %657 = vset.pattern.permute.xlu0 0
        %658 = vperm.xlu0 %657, %v333
        %v659 = vpop.permute.xlu0 %658
        %660 = vset.pattern.permute.xlu0 0
        %661 = vperm.xlu0 %660, %v334
        %v662 = vpop.permute.xlu0 %661
        %663 = vset.pattern.permute.xlu0 0
        %664 = vperm.xlu0 %663, %v335
        %v665 = vpop.permute.xlu0 %664
        %666 = vset.pattern.permute.xlu0 0
        %667 = vperm.xlu0 %666, %v336
        %v668 = vpop.permute.xlu0 %667
        %669 = vset.pattern.permute.xlu0 0
        %670 = vperm.xlu0 %669, %v337
        %v671 = vpop.permute.xlu0 %670
        %672 = vset.pattern.permute.xlu0 0
        %673 = vperm.xlu0 %672, %v338
        %v674 = vpop.permute.xlu0 %673
        %675 = vset.pattern.permute.xlu0 0
        %676 = vperm.xlu0 %675, %v339
        %v677 = vpop.permute.xlu0 %676
        %678 = vset.pattern.permute.xlu0 0
        %679 = vperm.xlu0 %678, %v340
        %v680 = vpop.permute.xlu0 %679
        %681 = vset.pattern.permute.xlu0 0
        %682 = vperm.xlu0 %681, %v341
        %v683 = vpop.permute.xlu0 %682
        %684 = vset.pattern.permute.xlu0 0
        %685 = vperm.xlu0 %684, %v342
        %v686 = vpop.permute.xlu0 %685
        %687 = vset.pattern.permute.xlu0 0
        %688 = vperm.xlu0 %687, %v343
        %v689 = vpop.permute.xlu0 %688
        %690 = vset.pattern.permute.xlu0 0
        %691 = vperm.xlu0 %690, %v344
        %v692 = vpop.permute.xlu0 %691
        %693 = vset.pattern.permute.xlu0 0
        %694 = vperm.xlu0 %693, %v345
        %v695 = vpop.permute.xlu0 %694
        %696 = vset.pattern.permute.xlu0 0
        %697 = vperm.xlu0 %696, %v346
        %v698 = vpop.permute.xlu0 %697
        %699 = vset.pattern.permute.xlu0 0
        %700 = vperm.xlu0 %699, %v347
        %v701 = vpop.permute.xlu0 %700
        %702 = vset.pattern.permute.xlu0 0
        %703 = vperm.xlu0 %702, %v348
        %v704 = vpop.permute.xlu0 %703
        %705 = vset.pattern.permute.xlu0 0
        %706 = vperm.xlu0 %705, %v349
        %v707 = vpop.permute.xlu0 %706
        %708 = vset.pattern.permute.xlu0 0
        %709 = vperm.xlu0 %708, %v350
        %v710 = vpop.permute.xlu0 %709
        %711 = vset.pattern.permute.xlu0 0
        %712 = vperm.xlu0 %711, %v351
        %v713 = vpop.permute.xlu0 %712
        %714 = vset.pattern.permute.xlu0 0
        %715 = vperm.xlu0 %714, %v352
        %v716 = vpop.permute.xlu0 %715
        %717 = vset.pattern.permute.xlu0 0
        %718 = vperm.xlu0 %717, %v353
        %v719 = vpop.permute.xlu0 %718
        %720 = vset.pattern.permute.xlu0 0
        %721 = vperm.xlu0 %720, %v354
        %v722 = vpop.permute.xlu0 %721
        %723 = vset.pattern.permute.xlu0 0
        %724 = vperm.xlu0 %723, %v355
        %v725 = vpop.permute.xlu0 %724
        %726 = vset.pattern.permute.xlu0 0
        %727 = vperm.xlu0 %726, %v356
        %v728 = vpop.permute.xlu0 %727
        %729 = vset.pattern.permute.xlu0 0
        %730 = vperm.xlu0 %729, %v357
        %v731 = vpop.permute.xlu0 %730
        %732 = vset.pattern.permute.xlu0 0
        %733 = vperm.xlu0 %732, %v358
        %v734 = vpop.permute.xlu0 %733
        %735 = vset.pattern.permute.xlu0 0
        %736 = vperm.xlu0 %735, %v359
        %v737 = vpop.permute.xlu0 %736
        %738 = vset.pattern.permute.xlu0 0
        %739 = vperm.xlu0 %738, %v360
        %v740 = vpop.permute.xlu0 %739
        %vm741 = vcmp.eq.s32.totalorder %v551, %v368
        %vm742 = vcmp.eq.s32.totalorder %v554, %v368
        %vm743 = vcmp.eq.s32.totalorder %v557, %v368
        %vm744 = vcmp.eq.s32.totalorder %v560, %v368
        %vm745 = vcmp.eq.s32.totalorder %v563, %v368
        %vm746 = vcmp.eq.s32.totalorder %v566, %v368
        %vm747 = vcmp.eq.s32.totalorder %v569, %v368
        %vm748 = vcmp.eq.s32.totalorder %v572, %v368
        %vm749 = vcmp.eq.s32.totalorder %v575, %v368
        %vm750 = vcmp.eq.s32.totalorder %v578, %v368
        %vm751 = vcmp.eq.s32.totalorder %v581, %v368
        %vm752 = vcmp.eq.s32.totalorder %v584, %v368
        %vm753 = vcmp.eq.s32.totalorder %v587, %v368
        %vm754 = vcmp.eq.s32.totalorder %v590, %v368
        %vm755 = vcmp.eq.s32.totalorder %v593, %v368
        %vm756 = vcmp.eq.s32.totalorder %v596, %v368
        %vm757 = vcmp.eq.s32.totalorder %v599, %v368
        %vm758 = vcmp.eq.s32.totalorder %v602, %v368
        %vm759 = vcmp.eq.s32.totalorder %v605, %v368
        %vm760 = vcmp.eq.s32.totalorder %v608, %v368
        %vm761 = vcmp.eq.s32.totalorder %v611, %v368
        %vm762 = vcmp.eq.s32.totalorder %v614, %v368
        %vm763 = vcmp.eq.s32.totalorder %v617, %v368
        %vm764 = vcmp.eq.s32.totalorder %v620, %v368
        %vm765 = vcmp.eq.s32.totalorder %v623, %v368
        %vm766 = vcmp.eq.s32.totalorder %v626, %v368
        %vm767 = vcmp.eq.s32.totalorder %v629, %v368
        %vm768 = vcmp.eq.s32.totalorder %v632, %v368
        %vm769 = vcmp.eq.s32.totalorder %v635, %v368
        %vm770 = vcmp.eq.s32.totalorder %v638, %v368
        %vm771 = vcmp.eq.s32.totalorder %v641, %v368
        %vm772 = vcmp.eq.s32.totalorder %v644, %v368
        %vm773 = vcmp.eq.s32.totalorder %v647, %v368
        %vm774 = vcmp.eq.s32.totalorder %v650, %v368
        %vm775 = vcmp.eq.s32.totalorder %v653, %v368
        %vm776 = vcmp.eq.s32.totalorder %v656, %v368
        %vm777 = vcmp.eq.s32.totalorder %v659, %v368
        %vm778 = vcmp.eq.s32.totalorder %v662, %v368
        %vm779 = vcmp.eq.s32.totalorder %v665, %v368
        %vm780 = vcmp.eq.s32.totalorder %v668, %v368
        %vm781 = vcmp.eq.s32.totalorder %v671, %v368
        %vm782 = vcmp.eq.s32.totalorder %v674, %v368
        %vm783 = vcmp.eq.s32.totalorder %v677, %v368
        %vm784 = vcmp.eq.s32.totalorder %v680, %v368
        %vm785 = vcmp.eq.s32.totalorder %v683, %v368
        %vm786 = vcmp.eq.s32.totalorder %v686, %v368
        %vm787 = vcmp.eq.s32.totalorder %v689, %v368
        %vm788 = vcmp.eq.s32.totalorder %v692, %v368
        %vm789 = vcmp.eq.s32.totalorder %v695, %v368
        %vm790 = vcmp.eq.s32.totalorder %v698, %v368
        %vm791 = vcmp.eq.s32.totalorder %v701, %v368
        %vm792 = vcmp.eq.s32.totalorder %v704, %v368
        %vm793 = vcmp.eq.s32.totalorder %v707, %v368
        %vm794 = vcmp.eq.s32.totalorder %v710, %v368
        %vm795 = vcmp.eq.s32.totalorder %v713, %v368
        %vm796 = vcmp.eq.s32.totalorder %v716, %v368
        %vm797 = vcmp.eq.s32.totalorder %v719, %v368
        %vm798 = vcmp.eq.s32.totalorder %v722, %v368
        %vm799 = vcmp.eq.s32.totalorder %v725, %v368
        %vm800 = vcmp.eq.s32.totalorder %v728, %v368
        %vm801 = vcmp.eq.s32.totalorder %v731, %v368
        %vm802 = vcmp.eq.s32.totalorder %v734, %v368
        %vm803 = vcmp.eq.s32.totalorder %v737, %v368
        %vm804 = vcmp.eq.s32.totalorder %v740, %v368
        %v805 = vsel %vm741, 1, 0
        %v806 = vsel %vm742, 1, 0
        %v807 = vsel %vm743, 1, 0
        %v808 = vsel %vm744, 1, 0
        %v809 = vsel %vm745, 1, 0
        %v810 = vsel %vm746, 1, 0
        %v811 = vsel %vm747, 1, 0
        %v812 = vsel %vm748, 1, 0
        %v813 = vsel %vm749, 1, 0
        %v814 = vsel %vm750, 1, 0
        %v815 = vsel %vm751, 1, 0
        %v816 = vsel %vm752, 1, 0
        %v817 = vsel %vm753, 1, 0
        %v818 = vsel %vm754, 1, 0
        %v819 = vsel %vm755, 1, 0
        %v820 = vsel %vm756, 1, 0
        %v821 = vsel %vm757, 1, 0
        %v822 = vsel %vm758, 1, 0
        %v823 = vsel %vm759, 1, 0
        %v824 = vsel %vm760, 1, 0
        %v825 = vsel %vm761, 1, 0
        %v826 = vsel %vm762, 1, 0
        %v827 = vsel %vm763, 1, 0
        %v828 = vsel %vm764, 1, 0
        %v829 = vsel %vm765, 1, 0
        %v830 = vsel %vm766, 1, 0
        %v831 = vsel %vm767, 1, 0
        %v832 = vsel %vm768, 1, 0
        %v833 = vsel %vm769, 1, 0
        %v834 = vsel %vm770, 1, 0
        %v835 = vsel %vm771, 1, 0
        %v836 = vsel %vm772, 1, 0
        %v837 = vsel %vm773, 1, 0
        %v838 = vsel %vm774, 1, 0
        %v839 = vsel %vm775, 1, 0
        %v840 = vsel %vm776, 1, 0
        %v841 = vsel %vm777, 1, 0
        %v842 = vsel %vm778, 1, 0
        %v843 = vsel %vm779, 1, 0
        %v844 = vsel %vm780, 1, 0
        %v845 = vsel %vm781, 1, 0
        %v846 = vsel %vm782, 1, 0
        %v847 = vsel %vm783, 1, 0
        %v848 = vsel %vm784, 1, 0
        %v849 = vsel %vm785, 1, 0
        %v850 = vsel %vm786, 1, 0
        %v851 = vsel %vm787, 1, 0
        %v852 = vsel %vm788, 1, 0
        %v853 = vsel %vm789, 1, 0
        %v854 = vsel %vm790, 1, 0
        %v855 = vsel %vm791, 1, 0
        %v856 = vsel %vm792, 1, 0
        %v857 = vsel %vm793, 1, 0
        %v858 = vsel %vm794, 1, 0
        %v859 = vsel %vm795, 1, 0
        %v860 = vsel %vm796, 1, 0
        %v861 = vsel %vm797, 1, 0
        %v862 = vsel %vm798, 1, 0
        %v863 = vsel %vm799, 1, 0
        %v864 = vsel %vm800, 1, 0
        %v865 = vsel %vm801, 1, 0
        %v866 = vsel %vm802, 1, 0
        %v867 = vsel %vm803, 1, 0
        %v868 = vsel %vm804, 1, 0
        %869 = vset.pattern.permute.xlu0 0
        %870 = vperm.xlu0 %869, %v805
        %v871 = vpop.permute.xlu0 %870
        %872 = vset.pattern.permute.xlu0 0
        %873 = vperm.xlu0 %872, %v806
        %v874 = vpop.permute.xlu0 %873
        %875 = vset.pattern.permute.xlu0 0
        %876 = vperm.xlu0 %875, %v807
        %v877 = vpop.permute.xlu0 %876
        %878 = vset.pattern.permute.xlu0 0
        %879 = vperm.xlu0 %878, %v808
        %v880 = vpop.permute.xlu0 %879
        %881 = vset.pattern.permute.xlu0 0
        %882 = vperm.xlu0 %881, %v809
        %v883 = vpop.permute.xlu0 %882
        %884 = vset.pattern.permute.xlu0 0
        %885 = vperm.xlu0 %884, %v810
        %v886 = vpop.permute.xlu0 %885
        %887 = vset.pattern.permute.xlu0 0
        %888 = vperm.xlu0 %887, %v811
        %v889 = vpop.permute.xlu0 %888
        %890 = vset.pattern.permute.xlu0 0
        %891 = vperm.xlu0 %890, %v812
        %v892 = vpop.permute.xlu0 %891
        %893 = vset.pattern.permute.xlu0 0
        %894 = vperm.xlu0 %893, %v813
        %v895 = vpop.permute.xlu0 %894
        %896 = vset.pattern.permute.xlu0 0
        %897 = vperm.xlu0 %896, %v814
        %v898 = vpop.permute.xlu0 %897
        %899 = vset.pattern.permute.xlu0 0
        %900 = vperm.xlu0 %899, %v815
        %v901 = vpop.permute.xlu0 %900
        %902 = vset.pattern.permute.xlu0 0
        %903 = vperm.xlu0 %902, %v816
        %v904 = vpop.permute.xlu0 %903
        %905 = vset.pattern.permute.xlu0 0
        %906 = vperm.xlu0 %905, %v817
        %v907 = vpop.permute.xlu0 %906
        %908 = vset.pattern.permute.xlu0 0
        %909 = vperm.xlu0 %908, %v818
        %v910 = vpop.permute.xlu0 %909
        %911 = vset.pattern.permute.xlu0 0
        %912 = vperm.xlu0 %911, %v819
        %v913 = vpop.permute.xlu0 %912
        %914 = vset.pattern.permute.xlu0 0
        %915 = vperm.xlu0 %914, %v820
        %v916 = vpop.permute.xlu0 %915
        %917 = vset.pattern.permute.xlu0 0
        %918 = vperm.xlu0 %917, %v821
        %v919 = vpop.permute.xlu0 %918
        %920 = vset.pattern.permute.xlu0 0
        %921 = vperm.xlu0 %920, %v822
        %v922 = vpop.permute.xlu0 %921
        %923 = vset.pattern.permute.xlu0 0
        %924 = vperm.xlu0 %923, %v823
        %v925 = vpop.permute.xlu0 %924
        %926 = vset.pattern.permute.xlu0 0
        %927 = vperm.xlu0 %926, %v824
        %v928 = vpop.permute.xlu0 %927
        %929 = vset.pattern.permute.xlu0 0
        %930 = vperm.xlu0 %929, %v825
        %v931 = vpop.permute.xlu0 %930
        %932 = vset.pattern.permute.xlu0 0
        %933 = vperm.xlu0 %932, %v826
        %v934 = vpop.permute.xlu0 %933
        %935 = vset.pattern.permute.xlu0 0
        %936 = vperm.xlu0 %935, %v827
        %v937 = vpop.permute.xlu0 %936
        %938 = vset.pattern.permute.xlu0 0
        %939 = vperm.xlu0 %938, %v828
        %v940 = vpop.permute.xlu0 %939
        %941 = vset.pattern.permute.xlu0 0
        %942 = vperm.xlu0 %941, %v829
        %v943 = vpop.permute.xlu0 %942
        %944 = vset.pattern.permute.xlu0 0
        %945 = vperm.xlu0 %944, %v830
        %v946 = vpop.permute.xlu0 %945
        %947 = vset.pattern.permute.xlu0 0
        %948 = vperm.xlu0 %947, %v831
        %v949 = vpop.permute.xlu0 %948
        %950 = vset.pattern.permute.xlu0 0
        %951 = vperm.xlu0 %950, %v832
        %v952 = vpop.permute.xlu0 %951
        %953 = vset.pattern.permute.xlu0 0
        %954 = vperm.xlu0 %953, %v833
        %v955 = vpop.permute.xlu0 %954
        %956 = vset.pattern.permute.xlu0 0
        %957 = vperm.xlu0 %956, %v834
        %v958 = vpop.permute.xlu0 %957
        %959 = vset.pattern.permute.xlu0 0
        %960 = vperm.xlu0 %959, %v835
        %v961 = vpop.permute.xlu0 %960
        %962 = vset.pattern.permute.xlu0 0
        %963 = vperm.xlu0 %962, %v836
        %v964 = vpop.permute.xlu0 %963
        %965 = vset.pattern.permute.xlu0 0
        %966 = vperm.xlu0 %965, %v837
        %v967 = vpop.permute.xlu0 %966
        %968 = vset.pattern.permute.xlu0 0
        %969 = vperm.xlu0 %968, %v838
        %v970 = vpop.permute.xlu0 %969
        %971 = vset.pattern.permute.xlu0 0
        %972 = vperm.xlu0 %971, %v839
        %v973 = vpop.permute.xlu0 %972
        %974 = vset.pattern.permute.xlu0 0
        %975 = vperm.xlu0 %974, %v840
        %v976 = vpop.permute.xlu0 %975
        %977 = vset.pattern.permute.xlu0 0
        %978 = vperm.xlu0 %977, %v841
        %v979 = vpop.permute.xlu0 %978
        %980 = vset.pattern.permute.xlu0 0
        %981 = vperm.xlu0 %980, %v842
        %v982 = vpop.permute.xlu0 %981
        %983 = vset.pattern.permute.xlu0 0
        %984 = vperm.xlu0 %983, %v843
        %v985 = vpop.permute.xlu0 %984
        %986 = vset.pattern.permute.xlu0 0
        %987 = vperm.xlu0 %986, %v844
        %v988 = vpop.permute.xlu0 %987
        %989 = vset.pattern.permute.xlu0 0
        %990 = vperm.xlu0 %989, %v845
        %v991 = vpop.permute.xlu0 %990
        %992 = vset.pattern.permute.xlu0 0
        %993 = vperm.xlu0 %992, %v846
        %v994 = vpop.permute.xlu0 %993
        %995 = vset.pattern.permute.xlu0 0
        %996 = vperm.xlu0 %995, %v847
        %v997 = vpop.permute.xlu0 %996
        %998 = vset.pattern.permute.xlu0 0
        %999 = vperm.xlu0 %998, %v848
        %v1000 = vpop.permute.xlu0 %999
        %1001 = vset.pattern.permute.xlu0 0
        %1002 = vperm.xlu0 %1001, %v849
        %v1003 = vpop.permute.xlu0 %1002
        %1004 = vset.pattern.permute.xlu0 0
        %1005 = vperm.xlu0 %1004, %v850
        %v1006 = vpop.permute.xlu0 %1005
        %1007 = vset.pattern.permute.xlu0 0
        %1008 = vperm.xlu0 %1007, %v851
        %v1009 = vpop.permute.xlu0 %1008
        %1010 = vset.pattern.permute.xlu0 0
        %1011 = vperm.xlu0 %1010, %v852
        %v1012 = vpop.permute.xlu0 %1011
        %1013 = vset.pattern.permute.xlu0 0
        %1014 = vperm.xlu0 %1013, %v853
        %v1015 = vpop.permute.xlu0 %1014
        %1016 = vset.pattern.permute.xlu0 0
        %1017 = vperm.xlu0 %1016, %v854
        %v1018 = vpop.permute.xlu0 %1017
        %1019 = vset.pattern.permute.xlu0 0
        %1020 = vperm.xlu0 %1019, %v855
        %v1021 = vpop.permute.xlu0 %1020
        %1022 = vset.pattern.permute.xlu0 0
        %1023 = vperm.xlu0 %1022, %v856
        %v1024 = vpop.permute.xlu0 %1023
        %1025 = vset.pattern.permute.xlu0 0
        %1026 = vperm.xlu0 %1025, %v857
        %v1027 = vpop.permute.xlu0 %1026
        %1028 = vset.pattern.permute.xlu0 0
        %1029 = vperm.xlu0 %1028, %v858
        %v1030 = vpop.permute.xlu0 %1029
        %1031 = vset.pattern.permute.xlu0 0
        %1032 = vperm.xlu0 %1031, %v859
        %v1033 = vpop.permute.xlu0 %1032
        %1034 = vset.pattern.permute.xlu0 0
        %1035 = vperm.xlu0 %1034, %v860
        %v1036 = vpop.permute.xlu0 %1035
        %1037 = vset.pattern.permute.xlu0 0
        %1038 = vperm.xlu0 %1037, %v861
        %v1039 = vpop.permute.xlu0 %1038
        %1040 = vset.pattern.permute.xlu0 0
        %1041 = vperm.xlu0 %1040, %v862
        %v1042 = vpop.permute.xlu0 %1041
        %1043 = vset.pattern.permute.xlu0 0
        %1044 = vperm.xlu0 %1043, %v863
        %v1045 = vpop.permute.xlu0 %1044
        %1046 = vset.pattern.permute.xlu0 0
        %1047 = vperm.xlu0 %1046, %v864
        %v1048 = vpop.permute.xlu0 %1047
        %1049 = vset.pattern.permute.xlu0 0
        %1050 = vperm.xlu0 %1049, %v865
        %v1051 = vpop.permute.xlu0 %1050
        %1052 = vset.pattern.permute.xlu0 0
        %1053 = vperm.xlu0 %1052, %v866
        %v1054 = vpop.permute.xlu0 %1053
        %1055 = vset.pattern.permute.xlu0 0
        %1056 = vperm.xlu0 %1055, %v867
        %v1057 = vpop.permute.xlu0 %1056
        %1058 = vset.pattern.permute.xlu0 0
        %1059 = vperm.xlu0 %1058, %v868
        %v1060 = vpop.permute.xlu0 %1059
        %vm1061 = vcmp.eq.s32.totalorder %v871, 1
        %vm1062 = vcmp.eq.s32.totalorder %v874, 1
        %vm1063 = vcmp.eq.s32.totalorder %v877, 1
        %vm1064 = vcmp.eq.s32.totalorder %v880, 1
        %vm1065 = vcmp.eq.s32.totalorder %v883, 1
        %vm1066 = vcmp.eq.s32.totalorder %v886, 1
        %vm1067 = vcmp.eq.s32.totalorder %v889, 1
        %vm1068 = vcmp.eq.s32.totalorder %v892, 1
        %vm1069 = vcmp.eq.s32.totalorder %v895, 1
        %vm1070 = vcmp.eq.s32.totalorder %v898, 1
        %vm1071 = vcmp.eq.s32.totalorder %v901, 1
        %vm1072 = vcmp.eq.s32.totalorder %v904, 1
        %vm1073 = vcmp.eq.s32.totalorder %v907, 1
        %vm1074 = vcmp.eq.s32.totalorder %v910, 1
        %vm1075 = vcmp.eq.s32.totalorder %v913, 1
        %vm1076 = vcmp.eq.s32.totalorder %v916, 1
        %vm1077 = vcmp.eq.s32.totalorder %v919, 1
        %vm1078 = vcmp.eq.s32.totalorder %v922, 1
        %vm1079 = vcmp.eq.s32.totalorder %v925, 1
        %vm1080 = vcmp.eq.s32.totalorder %v928, 1
        %vm1081 = vcmp.eq.s32.totalorder %v931, 1
        %vm1082 = vcmp.eq.s32.totalorder %v934, 1
        %vm1083 = vcmp.eq.s32.totalorder %v937, 1
        %vm1084 = vcmp.eq.s32.totalorder %v940, 1
        %vm1085 = vcmp.eq.s32.totalorder %v943, 1
        %vm1086 = vcmp.eq.s32.totalorder %v946, 1
        %vm1087 = vcmp.eq.s32.totalorder %v949, 1
        %vm1088 = vcmp.eq.s32.totalorder %v952, 1
        %vm1089 = vcmp.eq.s32.totalorder %v955, 1
        %vm1090 = vcmp.eq.s32.totalorder %v958, 1
        %vm1091 = vcmp.eq.s32.totalorder %v961, 1
        %vm1092 = vcmp.eq.s32.totalorder %v964, 1
        %vm1093 = vcmp.eq.s32.totalorder %v967, 1
        %vm1094 = vcmp.eq.s32.totalorder %v970, 1
        %vm1095 = vcmp.eq.s32.totalorder %v973, 1
        %vm1096 = vcmp.eq.s32.totalorder %v976, 1
        %vm1097 = vcmp.eq.s32.totalorder %v979, 1
        %vm1098 = vcmp.eq.s32.totalorder %v982, 1
        %vm1099 = vcmp.eq.s32.totalorder %v985, 1
        %vm1100 = vcmp.eq.s32.totalorder %v988, 1
        %vm1101 = vcmp.eq.s32.totalorder %v991, 1
        %vm1102 = vcmp.eq.s32.totalorder %v994, 1
        %vm1103 = vcmp.eq.s32.totalorder %v997, 1
        %vm1104 = vcmp.eq.s32.totalorder %v1000, 1
        %vm1105 = vcmp.eq.s32.totalorder %v1003, 1
        %vm1106 = vcmp.eq.s32.totalorder %v1006, 1
        %vm1107 = vcmp.eq.s32.totalorder %v1009, 1
        %vm1108 = vcmp.eq.s32.totalorder %v1012, 1
        %vm1109 = vcmp.eq.s32.totalorder %v1015, 1
        %vm1110 = vcmp.eq.s32.totalorder %v1018, 1
        %vm1111 = vcmp.eq.s32.totalorder %v1021, 1
        %vm1112 = vcmp.eq.s32.totalorder %v1024, 1
        %vm1113 = vcmp.eq.s32.totalorder %v1027, 1
        %vm1114 = vcmp.eq.s32.totalorder %v1030, 1
        %vm1115 = vcmp.eq.s32.totalorder %v1033, 1
        %vm1116 = vcmp.eq.s32.totalorder %v1036, 1
        %vm1117 = vcmp.eq.s32.totalorder %v1039, 1
        %vm1118 = vcmp.eq.s32.totalorder %v1042, 1
        %vm1119 = vcmp.eq.s32.totalorder %v1045, 1
        %vm1120 = vcmp.eq.s32.totalorder %v1048, 1
        %vm1121 = vcmp.eq.s32.totalorder %v1051, 1
        %vm1122 = vcmp.eq.s32.totalorder %v1054, 1
        %vm1123 = vcmp.eq.s32.totalorder %v1057, 1
        %vm1124 = vcmp.eq.s32.totalorder %v1060, 1
        %v1125 = vsel %vm1061, %v232, -inf
        %v1126 = vsel %vm1062, %v233, -inf
        %v1127 = vsel %vm1063, %v234, -inf
        %v1128 = vsel %vm1064, %v235, -inf
        %v1129 = vsel %vm1065, %v236, -inf
        %v1130 = vsel %vm1066, %v237, -inf
        %v1131 = vsel %vm1067, %v238, -inf
        %v1132 = vsel %vm1068, %v239, -inf
        %v1133 = vsel %vm1069, %v240, -inf
        %v1134 = vsel %vm1070, %v241, -inf
        %v1135 = vsel %vm1071, %v242, -inf
        %v1136 = vsel %vm1072, %v243, -inf
        %v1137 = vsel %vm1073, %v244, -inf
        %v1138 = vsel %vm1074, %v245, -inf
        %v1139 = vsel %vm1075, %v246, -inf
        %v1140 = vsel %vm1076, %v247, -inf
        %v1141 = vsel %vm1077, %v248, -inf
        %v1142 = vsel %vm1078, %v249, -inf
        %v1143 = vsel %vm1079, %v250, -inf
        %v1144 = vsel %vm1080, %v251, -inf
        %v1145 = vsel %vm1081, %v252, -inf
        %v1146 = vsel %vm1082, %v253, -inf
        %v1147 = vsel %vm1083, %v254, -inf
        %v1148 = vsel %vm1084, %v255, -inf
        %v1149 = vsel %vm1085, %v256, -inf
        %v1150 = vsel %vm1086, %v257, -inf
        %v1151 = vsel %vm1087, %v258, -inf
        %v1152 = vsel %vm1088, %v259, -inf
        %v1153 = vsel %vm1089, %v260, -inf
        %v1154 = vsel %vm1090, %v261, -inf
        %v1155 = vsel %vm1091, %v262, -inf
        %v1156 = vsel %vm1092, %v263, -inf
        %v1157 = vsel %vm1093, %v264, -inf
        %v1158 = vsel %vm1094, %v265, -inf
        %v1159 = vsel %vm1095, %v266, -inf
        %v1160 = vsel %vm1096, %v267, -inf
        %v1161 = vsel %vm1097, %v268, -inf
        %v1162 = vsel %vm1098, %v269, -inf
        %v1163 = vsel %vm1099, %v270, -inf
        %v1164 = vsel %vm1100, %v271, -inf
        %v1165 = vsel %vm1101, %v272, -inf
        %v1166 = vsel %vm1102, %v273, -inf
        %v1167 = vsel %vm1103, %v274, -inf
        %v1168 = vsel %vm1104, %v275, -inf
        %v1169 = vsel %vm1105, %v276, -inf
        %v1170 = vsel %vm1106, %v277, -inf
        %v1171 = vsel %vm1107, %v278, -inf
        %v1172 = vsel %vm1108, %v279, -inf
        %v1173 = vsel %vm1109, %v280, -inf
        %v1174 = vsel %vm1110, %v281, -inf
        %v1175 = vsel %vm1111, %v282, -inf
        %v1176 = vsel %vm1112, %v283, -inf
        %v1177 = vsel %vm1113, %v284, -inf
        %v1178 = vsel %vm1114, %v285, -inf
        %v1179 = vsel %vm1115, %v286, -inf
        %v1180 = vsel %vm1116, %v287, -inf
        %v1181 = vsel %vm1117, %v288, -inf
        %v1182 = vsel %vm1118, %v289, -inf
        %v1183 = vsel %vm1119, %v290, -inf
        %v1184 = vsel %vm1120, %v291, -inf
        %v1185 = vsel %vm1121, %v292, -inf
        %v1186 = vsel %vm1122, %v293, -inf
        %v1187 = vsel %vm1123, %v294, -inf
        %v1188 = vsel %vm1124, %v295, -inf
        %v1189 = vmax.f32 %v1125, %v1129
        %v1190 = vmax.f32 %v1126, %v1130
        %v1191 = vmax.f32 %v1127, %v1131
        %v1192 = vmax.f32 %v1128, %v1132
        %v1193 = vmax.f32 %v1189, %v1133
        %v1194 = vmax.f32 %v1190, %v1134
        %v1195 = vmax.f32 %v1191, %v1135
        %v1196 = vmax.f32 %v1192, %v1136
        %v1197 = vmax.f32 %v1193, %v1137
        %v1198 = vmax.f32 %v1194, %v1138
        %v1199 = vmax.f32 %v1195, %v1139
        %v1200 = vmax.f32 %v1196, %v1140
        %v1201 = vmax.f32 %v1197, %v1141
        %v1202 = vmax.f32 %v1198, %v1142
        %v1203 = vmax.f32 %v1199, %v1143
        %v1204 = vmax.f32 %v1200, %v1144
        %v1205 = vmax.f32 %v1201, %v1145
        %v1206 = vmax.f32 %v1202, %v1146
        %v1207 = vmax.f32 %v1203, %v1147
        %v1208 = vmax.f32 %v1204, %v1148
        %v1209 = vmax.f32 %v1205, %v1149
        %v1210 = vmax.f32 %v1206, %v1150
        %v1211 = vmax.f32 %v1207, %v1151
        %v1212 = vmax.f32 %v1208, %v1152
        %v1213 = vmax.f32 %v1209, %v1153
        %v1214 = vmax.f32 %v1210, %v1154
        %v1215 = vmax.f32 %v1211, %v1155
        %v1216 = vmax.f32 %v1212, %v1156
        %v1217 = vmax.f32 %v1213, %v1157
        %v1218 = vmax.f32 %v1214, %v1158
        %v1219 = vmax.f32 %v1215, %v1159
        %v1220 = vmax.f32 %v1216, %v1160
        %v1221 = vmax.f32 %v1217, %v1161
        %v1222 = vmax.f32 %v1218, %v1162
        %v1223 = vmax.f32 %v1219, %v1163
        %v1224 = vmax.f32 %v1220, %v1164
        %v1225 = vmax.f32 %v1221, %v1165
        %v1226 = vmax.f32 %v1222, %v1166
        %v1227 = vmax.f32 %v1223, %v1167
        %v1228 = vmax.f32 %v1224, %v1168
        %v1229 = vmax.f32 %v1225, %v1169
        %v1230 = vmax.f32 %v1226, %v1170
        %v1231 = vmax.f32 %v1227, %v1171
        %v1232 = vmax.f32 %v1228, %v1172
        %v1233 = vmax.f32 %v1229, %v1173
        %v1234 = vmax.f32 %v1230, %v1174
        %v1235 = vmax.f32 %v1231, %v1175
        %v1236 = vmax.f32 %v1232, %v1176
        %v1237 = vmax.f32 %v1233, %v1177
        %v1238 = vmax.f32 %v1234, %v1178
        %v1239 = vmax.f32 %v1235, %v1179
        %v1240 = vmax.f32 %v1236, %v1180
        %v1241 = vmax.f32 %v1237, %v1181
        %v1242 = vmax.f32 %v1238, %v1182
        %v1243 = vmax.f32 %v1239, %v1183
        %v1244 = vmax.f32 %v1240, %v1184
        %v1245 = vmax.f32 %v1241, %v1185
        %v1246 = vmax.f32 %v1242, %v1186
        %v1247 = vmax.f32 %v1243, %v1187
        %v1248 = vmax.f32 %v1244, %v1188
        %v1249 = vmax.f32 %v1245, %v1246
        %v1250 = vmax.f32 %v1247, %v1248
        %v1251 = vmax.f32 %v1249, %v1250
        %v1252 = vrot.slane %v1251, 4
        %v1253 = vmax.f32 %v1251, %v1252
        %v1254 = vrot.slane %v1253, 2
        %v1255 = vmax.f32 %v1253, %v1254
        %v1256 = vrot.slane %v1255, 1
        %v1257 = vmax.f32 %v1255, %v1256
        %1258 = vset.pattern.permute.xlu0 1
        %1259 = vperm.xlu0 %1258, %v805
        %v1260 = vpop.permute.xlu0 %1259
        %1261 = vset.pattern.permute.xlu0 1
        %1262 = vperm.xlu0 %1261, %v806
        %v1263 = vpop.permute.xlu0 %1262
        %1264 = vset.pattern.permute.xlu0 1
        %1265 = vperm.xlu0 %1264, %v807
        %v1266 = vpop.permute.xlu0 %1265
        %1267 = vset.pattern.permute.xlu0 1
        %1268 = vperm.xlu0 %1267, %v808
        %v1269 = vpop.permute.xlu0 %1268
        %1270 = vset.pattern.permute.xlu0 1
        %1271 = vperm.xlu0 %1270, %v809
        %v1272 = vpop.permute.xlu0 %1271
        %1273 = vset.pattern.permute.xlu0 1
        %1274 = vperm.xlu0 %1273, %v810
        %v1275 = vpop.permute.xlu0 %1274
        %1276 = vset.pattern.permute.xlu0 1
        %1277 = vperm.xlu0 %1276, %v811
        %v1278 = vpop.permute.xlu0 %1277
        %1279 = vset.pattern.permute.xlu0 1
        %1280 = vperm.xlu0 %1279, %v812
        %v1281 = vpop.permute.xlu0 %1280
        %1282 = vset.pattern.permute.xlu0 1
        %1283 = vperm.xlu0 %1282, %v813
        %v1284 = vpop.permute.xlu0 %1283
        %1285 = vset.pattern.permute.xlu0 1
        %1286 = vperm.xlu0 %1285, %v814
        %v1287 = vpop.permute.xlu0 %1286
        %1288 = vset.pattern.permute.xlu0 1
        %1289 = vperm.xlu0 %1288, %v815
        %v1290 = vpop.permute.xlu0 %1289
        %1291 = vset.pattern.permute.xlu0 1
        %1292 = vperm.xlu0 %1291, %v816
        %v1293 = vpop.permute.xlu0 %1292
        %1294 = vset.pattern.permute.xlu0 1
        %1295 = vperm.xlu0 %1294, %v817
        %v1296 = vpop.permute.xlu0 %1295
        %1297 = vset.pattern.permute.xlu0 1
        %1298 = vperm.xlu0 %1297, %v818
        %v1299 = vpop.permute.xlu0 %1298
        %1300 = vset.pattern.permute.xlu0 1
        %1301 = vperm.xlu0 %1300, %v819
        %v1302 = vpop.permute.xlu0 %1301
        %1303 = vset.pattern.permute.xlu0 1
        %1304 = vperm.xlu0 %1303, %v820
        %v1305 = vpop.permute.xlu0 %1304
        %1306 = vset.pattern.permute.xlu0 1
        %1307 = vperm.xlu0 %1306, %v821
        %v1308 = vpop.permute.xlu0 %1307
        %1309 = vset.pattern.permute.xlu0 1
        %1310 = vperm.xlu0 %1309, %v822
        %v1311 = vpop.permute.xlu0 %1310
        %1312 = vset.pattern.permute.xlu0 1
        %1313 = vperm.xlu0 %1312, %v823
        %v1314 = vpop.permute.xlu0 %1313
        %1315 = vset.pattern.permute.xlu0 1
        %1316 = vperm.xlu0 %1315, %v824
        %v1317 = vpop.permute.xlu0 %1316
        %1318 = vset.pattern.permute.xlu0 1
        %1319 = vperm.xlu0 %1318, %v825
        %v1320 = vpop.permute.xlu0 %1319
        %1321 = vset.pattern.permute.xlu0 1
        %1322 = vperm.xlu0 %1321, %v826
        %v1323 = vpop.permute.xlu0 %1322
        %1324 = vset.pattern.permute.xlu0 1
        %1325 = vperm.xlu0 %1324, %v827
        %v1326 = vpop.permute.xlu0 %1325
        %1327 = vset.pattern.permute.xlu0 1
        %1328 = vperm.xlu0 %1327, %v828
        %v1329 = vpop.permute.xlu0 %1328
        %1330 = vset.pattern.permute.xlu0 1
        %1331 = vperm.xlu0 %1330, %v829
        %v1332 = vpop.permute.xlu0 %1331
        %1333 = vset.pattern.permute.xlu0 1
        %1334 = vperm.xlu0 %1333, %v830
        %v1335 = vpop.permute.xlu0 %1334
        %1336 = vset.pattern.permute.xlu0 1
        %1337 = vperm.xlu0 %1336, %v831
        %v1338 = vpop.permute.xlu0 %1337
        %1339 = vset.pattern.permute.xlu0 1
        %1340 = vperm.xlu0 %1339, %v832
        %v1341 = vpop.permute.xlu0 %1340
        %1342 = vset.pattern.permute.xlu0 1
        %1343 = vperm.xlu0 %1342, %v833
        %v1344 = vpop.permute.xlu0 %1343
        %1345 = vset.pattern.permute.xlu0 1
        %1346 = vperm.xlu0 %1345, %v834
        %v1347 = vpop.permute.xlu0 %1346
        %1348 = vset.pattern.permute.xlu0 1
        %1349 = vperm.xlu0 %1348, %v835
        %v1350 = vpop.permute.xlu0 %1349
        %1351 = vset.pattern.permute.xlu0 1
        %1352 = vperm.xlu0 %1351, %v836
        %v1353 = vpop.permute.xlu0 %1352
        %1354 = vset.pattern.permute.xlu0 1
        %1355 = vperm.xlu0 %1354, %v837
        %v1356 = vpop.permute.xlu0 %1355
        %1357 = vset.pattern.permute.xlu0 1
        %1358 = vperm.xlu0 %1357, %v838
        %v1359 = vpop.permute.xlu0 %1358
        %1360 = vset.pattern.permute.xlu0 1
        %1361 = vperm.xlu0 %1360, %v839
        %v1362 = vpop.permute.xlu0 %1361
        %1363 = vset.pattern.permute.xlu0 1
        %1364 = vperm.xlu0 %1363, %v840
        %v1365 = vpop.permute.xlu0 %1364
        %1366 = vset.pattern.permute.xlu0 1
        %1367 = vperm.xlu0 %1366, %v841
        %v1368 = vpop.permute.xlu0 %1367
        %1369 = vset.pattern.permute.xlu0 1
        %1370 = vperm.xlu0 %1369, %v842
        %v1371 = vpop.permute.xlu0 %1370
        %1372 = vset.pattern.permute.xlu0 1
        %1373 = vperm.xlu0 %1372, %v843
        %v1374 = vpop.permute.xlu0 %1373
        %1375 = vset.pattern.permute.xlu0 1
        %1376 = vperm.xlu0 %1375, %v844
        %v1377 = vpop.permute.xlu0 %1376
        %1378 = vset.pattern.permute.xlu0 1
        %1379 = vperm.xlu0 %1378, %v845
        %v1380 = vpop.permute.xlu0 %1379
        %1381 = vset.pattern.permute.xlu0 1
        %1382 = vperm.xlu0 %1381, %v846
        %v1383 = vpop.permute.xlu0 %1382
        %1384 = vset.pattern.permute.xlu0 1
        %1385 = vperm.xlu0 %1384, %v847
        %v1386 = vpop.permute.xlu0 %1385
        %1387 = vset.pattern.permute.xlu0 1
        %1388 = vperm.xlu0 %1387, %v848
        %v1389 = vpop.permute.xlu0 %1388
        %1390 = vset.pattern.permute.xlu0 1
        %1391 = vperm.xlu0 %1390, %v849
        %v1392 = vpop.permute.xlu0 %1391
        %1393 = vset.pattern.permute.xlu0 1
        %1394 = vperm.xlu0 %1393, %v850
        %v1395 = vpop.permute.xlu0 %1394
        %1396 = vset.pattern.permute.xlu0 1
        %1397 = vperm.xlu0 %1396, %v851
        %v1398 = vpop.permute.xlu0 %1397
        %1399 = vset.pattern.permute.xlu0 1
        %1400 = vperm.xlu0 %1399, %v852
        %v1401 = vpop.permute.xlu0 %1400
        %1402 = vset.pattern.permute.xlu0 1
        %1403 = vperm.xlu0 %1402, %v853
        %v1404 = vpop.permute.xlu0 %1403
        %1405 = vset.pattern.permute.xlu0 1
        %1406 = vperm.xlu0 %1405, %v854
        %v1407 = vpop.permute.xlu0 %1406
        %1408 = vset.pattern.permute.xlu0 1
        %1409 = vperm.xlu0 %1408, %v855
        %v1410 = vpop.permute.xlu0 %1409
        %1411 = vset.pattern.permute.xlu0 1
        %1412 = vperm.xlu0 %1411, %v856
        %v1413 = vpop.permute.xlu0 %1412
        %1414 = vset.pattern.permute.xlu0 1
        %1415 = vperm.xlu0 %1414, %v857
        %v1416 = vpop.permute.xlu0 %1415
        %1417 = vset.pattern.permute.xlu0 1
        %1418 = vperm.xlu0 %1417, %v858
        %v1419 = vpop.permute.xlu0 %1418
        %1420 = vset.pattern.permute.xlu0 1
        %1421 = vperm.xlu0 %1420, %v859
        %v1422 = vpop.permute.xlu0 %1421
        %1423 = vset.pattern.permute.xlu0 1
        %1424 = vperm.xlu0 %1423, %v860
        %v1425 = vpop.permute.xlu0 %1424
        %1426 = vset.pattern.permute.xlu0 1
        %1427 = vperm.xlu0 %1426, %v861
        %v1428 = vpop.permute.xlu0 %1427
        %1429 = vset.pattern.permute.xlu0 1
        %1430 = vperm.xlu0 %1429, %v862
        %v1431 = vpop.permute.xlu0 %1430
        %1432 = vset.pattern.permute.xlu0 1
        %1433 = vperm.xlu0 %1432, %v863
        %v1434 = vpop.permute.xlu0 %1433
        %1435 = vset.pattern.permute.xlu0 1
        %1436 = vperm.xlu0 %1435, %v864
        %v1437 = vpop.permute.xlu0 %1436
        %1438 = vset.pattern.permute.xlu0 1
        %1439 = vperm.xlu0 %1438, %v865
        %v1440 = vpop.permute.xlu0 %1439
        %1441 = vset.pattern.permute.xlu0 1
        %1442 = vperm.xlu0 %1441, %v866
        %v1443 = vpop.permute.xlu0 %1442
        %1444 = vset.pattern.permute.xlu0 1
        %1445 = vperm.xlu0 %1444, %v867
        %v1446 = vpop.permute.xlu0 %1445
        %1447 = vset.pattern.permute.xlu0 1
        %1448 = vperm.xlu0 %1447, %v868
        %v1449 = vpop.permute.xlu0 %1448
        %vm1450 = vcmp.eq.s32.totalorder %v1260, 1
        %vm1451 = vcmp.eq.s32.totalorder %v1263, 1
        %vm1452 = vcmp.eq.s32.totalorder %v1266, 1
        %vm1453 = vcmp.eq.s32.totalorder %v1269, 1
        %vm1454 = vcmp.eq.s32.totalorder %v1272, 1
        %vm1455 = vcmp.eq.s32.totalorder %v1275, 1
        %vm1456 = vcmp.eq.s32.totalorder %v1278, 1
        %vm1457 = vcmp.eq.s32.totalorder %v1281, 1
        %vm1458 = vcmp.eq.s32.totalorder %v1284, 1
        %vm1459 = vcmp.eq.s32.totalorder %v1287, 1
        %vm1460 = vcmp.eq.s32.totalorder %v1290, 1
        %vm1461 = vcmp.eq.s32.totalorder %v1293, 1
        %vm1462 = vcmp.eq.s32.totalorder %v1296, 1
        %vm1463 = vcmp.eq.s32.totalorder %v1299, 1
        %vm1464 = vcmp.eq.s32.totalorder %v1302, 1
        %vm1465 = vcmp.eq.s32.totalorder %v1305, 1
        %vm1466 = vcmp.eq.s32.totalorder %v1308, 1
        %vm1467 = vcmp.eq.s32.totalorder %v1311, 1
        %vm1468 = vcmp.eq.s32.totalorder %v1314, 1
        %vm1469 = vcmp.eq.s32.totalorder %v1317, 1
        %vm1470 = vcmp.eq.s32.totalorder %v1320, 1
        %vm1471 = vcmp.eq.s32.totalorder %v1323, 1
        %vm1472 = vcmp.eq.s32.totalorder %v1326, 1
        %vm1473 = vcmp.eq.s32.totalorder %v1329, 1
        %vm1474 = vcmp.eq.s32.totalorder %v1332, 1
        %vm1475 = vcmp.eq.s32.totalorder %v1335, 1
        %vm1476 = vcmp.eq.s32.totalorder %v1338, 1
        %vm1477 = vcmp.eq.s32.totalorder %v1341, 1
        %vm1478 = vcmp.eq.s32.totalorder %v1344, 1
        %vm1479 = vcmp.eq.s32.totalorder %v1347, 1
        %vm1480 = vcmp.eq.s32.totalorder %v1350, 1
        %vm1481 = vcmp.eq.s32.totalorder %v1353, 1
        %vm1482 = vcmp.eq.s32.totalorder %v1356, 1
        %vm1483 = vcmp.eq.s32.totalorder %v1359, 1
        %vm1484 = vcmp.eq.s32.totalorder %v1362, 1
        %vm1485 = vcmp.eq.s32.totalorder %v1365, 1
        %vm1486 = vcmp.eq.s32.totalorder %v1368, 1
        %vm1487 = vcmp.eq.s32.totalorder %v1371, 1
        %vm1488 = vcmp.eq.s32.totalorder %v1374, 1
        %vm1489 = vcmp.eq.s32.totalorder %v1377, 1
        %vm1490 = vcmp.eq.s32.totalorder %v1380, 1
        %vm1491 = vcmp.eq.s32.totalorder %v1383, 1
        %vm1492 = vcmp.eq.s32.totalorder %v1386, 1
        %vm1493 = vcmp.eq.s32.totalorder %v1389, 1
        %vm1494 = vcmp.eq.s32.totalorder %v1392, 1
        %vm1495 = vcmp.eq.s32.totalorder %v1395, 1
        %vm1496 = vcmp.eq.s32.totalorder %v1398, 1
        %vm1497 = vcmp.eq.s32.totalorder %v1401, 1
        %vm1498 = vcmp.eq.s32.totalorder %v1404, 1
        %vm1499 = vcmp.eq.s32.totalorder %v1407, 1
        %vm1500 = vcmp.eq.s32.totalorder %v1410, 1
        %vm1501 = vcmp.eq.s32.totalorder %v1413, 1
        %vm1502 = vcmp.eq.s32.totalorder %v1416, 1
        %vm1503 = vcmp.eq.s32.totalorder %v1419, 1
        %vm1504 = vcmp.eq.s32.totalorder %v1422, 1
        %vm1505 = vcmp.eq.s32.totalorder %v1425, 1
        %vm1506 = vcmp.eq.s32.totalorder %v1428, 1
        %vm1507 = vcmp.eq.s32.totalorder %v1431, 1
        %vm1508 = vcmp.eq.s32.totalorder %v1434, 1
        %vm1509 = vcmp.eq.s32.totalorder %v1437, 1
        %vm1510 = vcmp.eq.s32.totalorder %v1440, 1
        %vm1511 = vcmp.eq.s32.totalorder %v1443, 1
        %vm1512 = vcmp.eq.s32.totalorder %v1446, 1
        %vm1513 = vcmp.eq.s32.totalorder %v1449, 1
        %v1514 = vsel %vm1450, %v232, -inf
        %v1515 = vsel %vm1451, %v233, -inf
        %v1516 = vsel %vm1452, %v234, -inf
        %v1517 = vsel %vm1453, %v235, -inf
        %v1518 = vsel %vm1454, %v236, -inf
        %v1519 = vsel %vm1455, %v237, -inf
        %v1520 = vsel %vm1456, %v238, -inf
        %v1521 = vsel %vm1457, %v239, -inf
        %v1522 = vsel %vm1458, %v240, -inf
        %v1523 = vsel %vm1459, %v241, -inf
        %v1524 = vsel %vm1460, %v242, -inf
        %v1525 = vsel %vm1461, %v243, -inf
        %v1526 = vsel %vm1462, %v244, -inf
        %v1527 = vsel %vm1463, %v245, -inf
        %v1528 = vsel %vm1464, %v246, -inf
        %v1529 = vsel %vm1465, %v247, -inf
        %v1530 = vsel %vm1466, %v248, -inf
        %v1531 = vsel %vm1467, %v249, -inf
        %v1532 = vsel %vm1468, %v250, -inf
        %v1533 = vsel %vm1469, %v251, -inf
        %v1534 = vsel %vm1470, %v252, -inf
        %v1535 = vsel %vm1471, %v253, -inf
        %v1536 = vsel %vm1472, %v254, -inf
        %v1537 = vsel %vm1473, %v255, -inf
        %v1538 = vsel %vm1474, %v256, -inf
        %v1539 = vsel %vm1475, %v257, -inf
        %v1540 = vsel %vm1476, %v258, -inf
        %v1541 = vsel %vm1477, %v259, -inf
        %v1542 = vsel %vm1478, %v260, -inf
        %v1543 = vsel %vm1479, %v261, -inf
        %v1544 = vsel %vm1480, %v262, -inf
        %v1545 = vsel %vm1481, %v263, -inf
        %v1546 = vsel %vm1482, %v264, -inf
        %v1547 = vsel %vm1483, %v265, -inf
        %v1548 = vsel %vm1484, %v266, -inf
        %v1549 = vsel %vm1485, %v267, -inf
        %v1550 = vsel %vm1486, %v268, -inf
        %v1551 = vsel %vm1487, %v269, -inf
        %v1552 = vsel %vm1488, %v270, -inf
        %v1553 = vsel %vm1489, %v271, -inf
        %v1554 = vsel %vm1490, %v272, -inf
        %v1555 = vsel %vm1491, %v273, -inf
        %v1556 = vsel %vm1492, %v274, -inf
        %v1557 = vsel %vm1493, %v275, -inf
        %v1558 = vsel %vm1494, %v276, -inf
        %v1559 = vsel %vm1495, %v277, -inf
        %v1560 = vsel %vm1496, %v278, -inf
        %v1561 = vsel %vm1497, %v279, -inf
        %v1562 = vsel %vm1498, %v280, -inf
        %v1563 = vsel %vm1499, %v281, -inf
        %v1564 = vsel %vm1500, %v282, -inf
        %v1565 = vsel %vm1501, %v283, -inf
        %v1566 = vsel %vm1502, %v284, -inf
        %v1567 = vsel %vm1503, %v285, -inf
        %v1568 = vsel %vm1504, %v286, -inf
        %v1569 = vsel %vm1505, %v287, -inf
        %v1570 = vsel %vm1506, %v288, -inf
        %v1571 = vsel %vm1507, %v289, -inf
        %v1572 = vsel %vm1508, %v290, -inf
        %v1573 = vsel %vm1509, %v291, -inf
        %v1574 = vsel %vm1510, %v292, -inf
        %v1575 = vsel %vm1511, %v293, -inf
        %v1576 = vsel %vm1512, %v294, -inf
        %v1577 = vsel %vm1513, %v295, -inf
        %v1578 = vmax.f32 %v1514, %v1518
        %v1579 = vmax.f32 %v1515, %v1519
        %v1580 = vmax.f32 %v1516, %v1520
        %v1581 = vmax.f32 %v1517, %v1521
        %v1582 = vmax.f32 %v1578, %v1522
        %v1583 = vmax.f32 %v1579, %v1523
        %v1584 = vmax.f32 %v1580, %v1524
        %v1585 = vmax.f32 %v1581, %v1525
        %v1586 = vmax.f32 %v1582, %v1526
        %v1587 = vmax.f32 %v1583, %v1527
        %v1588 = vmax.f32 %v1584, %v1528
        %v1589 = vmax.f32 %v1585, %v1529
        %v1590 = vmax.f32 %v1586, %v1530
        %v1591 = vmax.f32 %v1587, %v1531
        %v1592 = vmax.f32 %v1588, %v1532
        %v1593 = vmax.f32 %v1589, %v1533
        %v1594 = vmax.f32 %v1590, %v1534
        %v1595 = vmax.f32 %v1591, %v1535
        %v1596 = vmax.f32 %v1592, %v1536
        %v1597 = vmax.f32 %v1593, %v1537
        %v1598 = vmax.f32 %v1594, %v1538
        %v1599 = vmax.f32 %v1595, %v1539
        %v1600 = vmax.f32 %v1596, %v1540
        %v1601 = vmax.f32 %v1597, %v1541
        %v1602 = vmax.f32 %v1598, %v1542
        %v1603 = vmax.f32 %v1599, %v1543
        %v1604 = vmax.f32 %v1600, %v1544
        %v1605 = vmax.f32 %v1601, %v1545
        %v1606 = vmax.f32 %v1602, %v1546
        %v1607 = vmax.f32 %v1603, %v1547
        %v1608 = vmax.f32 %v1604, %v1548
        %v1609 = vmax.f32 %v1605, %v1549
        %v1610 = vmax.f32 %v1606, %v1550
        %v1611 = vmax.f32 %v1607, %v1551
        %v1612 = vmax.f32 %v1608, %v1552
        %v1613 = vmax.f32 %v1609, %v1553
        %v1614 = vmax.f32 %v1610, %v1554
        %v1615 = vmax.f32 %v1611, %v1555
        %v1616 = vmax.f32 %v1612, %v1556
        %v1617 = vmax.f32 %v1613, %v1557
        %v1618 = vmax.f32 %v1614, %v1558
        %v1619 = vmax.f32 %v1615, %v1559
        %v1620 = vmax.f32 %v1616, %v1560
        %v1621 = vmax.f32 %v1617, %v1561
        %v1622 = vmax.f32 %v1618, %v1562
        %v1623 = vmax.f32 %v1619, %v1563
        %v1624 = vmax.f32 %v1620, %v1564
        %v1625 = vmax.f32 %v1621, %v1565
        %v1626 = vmax.f32 %v1622, %v1566
        %v1627 = vmax.f32 %v1623, %v1567
        %v1628 = vmax.f32 %v1624, %v1568
        %v1629 = vmax.f32 %v1625, %v1569
        %v1630 = vmax.f32 %v1626, %v1570
        %v1631 = vmax.f32 %v1627, %v1571
        %v1632 = vmax.f32 %v1628, %v1572
        %v1633 = vmax.f32 %v1629, %v1573
        %v1634 = vmax.f32 %v1630, %v1574
        %v1635 = vmax.f32 %v1631, %v1575
        %v1636 = vmax.f32 %v1632, %v1576
        %v1637 = vmax.f32 %v1633, %v1577
        %v1638 = vmax.f32 %v1634, %v1635
        %v1639 = vmax.f32 %v1636, %v1637
        %v1640 = vmax.f32 %v1638, %v1639
        %v1641 = vrot.slane %v1640, 4
        %v1642 = vmax.f32 %v1640, %v1641
        %v1643 = vrot.slane %v1642, 2
        %v1644 = vmax.f32 %v1642, %v1643
        %v1645 = vrot.slane %v1644, 1
        %v1646 = vmax.f32 %v1644, %v1645
        %1647 = vset.pattern.permute.xlu0 2
        %1648 = vperm.xlu0 %1647, %v805
        %v1649 = vpop.permute.xlu0 %1648
        %1650 = vset.pattern.permute.xlu0 2
        %1651 = vperm.xlu0 %1650, %v806
        %v1652 = vpop.permute.xlu0 %1651
        %1653 = vset.pattern.permute.xlu0 2
        %1654 = vperm.xlu0 %1653, %v807
        %v1655 = vpop.permute.xlu0 %1654
        %1656 = vset.pattern.permute.xlu0 2
        %1657 = vperm.xlu0 %1656, %v808
        %v1658 = vpop.permute.xlu0 %1657
        %1659 = vset.pattern.permute.xlu0 2
        %1660 = vperm.xlu0 %1659, %v809
        %v1661 = vpop.permute.xlu0 %1660
        %1662 = vset.pattern.permute.xlu0 2
        %1663 = vperm.xlu0 %1662, %v810
        %v1664 = vpop.permute.xlu0 %1663
        %1665 = vset.pattern.permute.xlu0 2
        %1666 = vperm.xlu0 %1665, %v811
        %v1667 = vpop.permute.xlu0 %1666
        %1668 = vset.pattern.permute.xlu0 2
        %1669 = vperm.xlu0 %1668, %v812
        %v1670 = vpop.permute.xlu0 %1669
        %1671 = vset.pattern.permute.xlu0 2
        %1672 = vperm.xlu0 %1671, %v813
        %v1673 = vpop.permute.xlu0 %1672
        %1674 = vset.pattern.permute.xlu0 2
        %1675 = vperm.xlu0 %1674, %v814
        %v1676 = vpop.permute.xlu0 %1675
        %1677 = vset.pattern.permute.xlu0 2
        %1678 = vperm.xlu0 %1677, %v815
        %v1679 = vpop.permute.xlu0 %1678
        %1680 = vset.pattern.permute.xlu0 2
        %1681 = vperm.xlu0 %1680, %v816
        %v1682 = vpop.permute.xlu0 %1681
        %1683 = vset.pattern.permute.xlu0 2
        %1684 = vperm.xlu0 %1683, %v817
        %v1685 = vpop.permute.xlu0 %1684
        %1686 = vset.pattern.permute.xlu0 2
        %1687 = vperm.xlu0 %1686, %v818
        %v1688 = vpop.permute.xlu0 %1687
        %1689 = vset.pattern.permute.xlu0 2
        %1690 = vperm.xlu0 %1689, %v819
        %v1691 = vpop.permute.xlu0 %1690
        %1692 = vset.pattern.permute.xlu0 2
        %1693 = vperm.xlu0 %1692, %v820
        %v1694 = vpop.permute.xlu0 %1693
        %1695 = vset.pattern.permute.xlu0 2
        %1696 = vperm.xlu0 %1695, %v821
        %v1697 = vpop.permute.xlu0 %1696
        %1698 = vset.pattern.permute.xlu0 2
        %1699 = vperm.xlu0 %1698, %v822
        %v1700 = vpop.permute.xlu0 %1699
        %1701 = vset.pattern.permute.xlu0 2
        %1702 = vperm.xlu0 %1701, %v823
        %v1703 = vpop.permute.xlu0 %1702
        %1704 = vset.pattern.permute.xlu0 2
        %1705 = vperm.xlu0 %1704, %v824
        %v1706 = vpop.permute.xlu0 %1705
        %1707 = vset.pattern.permute.xlu0 2
        %1708 = vperm.xlu0 %1707, %v825
        %v1709 = vpop.permute.xlu0 %1708
        %1710 = vset.pattern.permute.xlu0 2
        %1711 = vperm.xlu0 %1710, %v826
        %v1712 = vpop.permute.xlu0 %1711
        %1713 = vset.pattern.permute.xlu0 2
        %1714 = vperm.xlu0 %1713, %v827
        %v1715 = vpop.permute.xlu0 %1714
        %1716 = vset.pattern.permute.xlu0 2
        %1717 = vperm.xlu0 %1716, %v828
        %v1718 = vpop.permute.xlu0 %1717
        %1719 = vset.pattern.permute.xlu0 2
        %1720 = vperm.xlu0 %1719, %v829
        %v1721 = vpop.permute.xlu0 %1720
        %1722 = vset.pattern.permute.xlu0 2
        %1723 = vperm.xlu0 %1722, %v830
        %v1724 = vpop.permute.xlu0 %1723
        %1725 = vset.pattern.permute.xlu0 2
        %1726 = vperm.xlu0 %1725, %v831
        %v1727 = vpop.permute.xlu0 %1726
        %1728 = vset.pattern.permute.xlu0 2
        %1729 = vperm.xlu0 %1728, %v832
        %v1730 = vpop.permute.xlu0 %1729
        %1731 = vset.pattern.permute.xlu0 2
        %1732 = vperm.xlu0 %1731, %v833
        %v1733 = vpop.permute.xlu0 %1732
        %1734 = vset.pattern.permute.xlu0 2
        %1735 = vperm.xlu0 %1734, %v834
        %v1736 = vpop.permute.xlu0 %1735
        %1737 = vset.pattern.permute.xlu0 2
        %1738 = vperm.xlu0 %1737, %v835
        %v1739 = vpop.permute.xlu0 %1738
        %1740 = vset.pattern.permute.xlu0 2
        %1741 = vperm.xlu0 %1740, %v836
        %v1742 = vpop.permute.xlu0 %1741
        %1743 = vset.pattern.permute.xlu0 2
        %1744 = vperm.xlu0 %1743, %v837
        %v1745 = vpop.permute.xlu0 %1744
        %1746 = vset.pattern.permute.xlu0 2
        %1747 = vperm.xlu0 %1746, %v838
        %v1748 = vpop.permute.xlu0 %1747
        %1749 = vset.pattern.permute.xlu0 2
        %1750 = vperm.xlu0 %1749, %v839
        %v1751 = vpop.permute.xlu0 %1750
        %1752 = vset.pattern.permute.xlu0 2
        %1753 = vperm.xlu0 %1752, %v840
        %v1754 = vpop.permute.xlu0 %1753
        %1755 = vset.pattern.permute.xlu0 2
        %1756 = vperm.xlu0 %1755, %v841
        %v1757 = vpop.permute.xlu0 %1756
        %1758 = vset.pattern.permute.xlu0 2
        %1759 = vperm.xlu0 %1758, %v842
        %v1760 = vpop.permute.xlu0 %1759
        %1761 = vset.pattern.permute.xlu0 2
        %1762 = vperm.xlu0 %1761, %v843
        %v1763 = vpop.permute.xlu0 %1762
        %1764 = vset.pattern.permute.xlu0 2
        %1765 = vperm.xlu0 %1764, %v844
        %v1766 = vpop.permute.xlu0 %1765
        %1767 = vset.pattern.permute.xlu0 2
        %1768 = vperm.xlu0 %1767, %v845
        %v1769 = vpop.permute.xlu0 %1768
        %1770 = vset.pattern.permute.xlu0 2
        %1771 = vperm.xlu0 %1770, %v846
        %v1772 = vpop.permute.xlu0 %1771
        %1773 = vset.pattern.permute.xlu0 2
        %1774 = vperm.xlu0 %1773, %v847
        %v1775 = vpop.permute.xlu0 %1774
        %1776 = vset.pattern.permute.xlu0 2
        %1777 = vperm.xlu0 %1776, %v848
        %v1778 = vpop.permute.xlu0 %1777
        %1779 = vset.pattern.permute.xlu0 2
        %1780 = vperm.xlu0 %1779, %v849
        %v1781 = vpop.permute.xlu0 %1780
        %1782 = vset.pattern.permute.xlu0 2
        %1783 = vperm.xlu0 %1782, %v850
        %v1784 = vpop.permute.xlu0 %1783
        %1785 = vset.pattern.permute.xlu0 2
        %1786 = vperm.xlu0 %1785, %v851
        %v1787 = vpop.permute.xlu0 %1786
        %1788 = vset.pattern.permute.xlu0 2
        %1789 = vperm.xlu0 %1788, %v852
        %v1790 = vpop.permute.xlu0 %1789
        %1791 = vset.pattern.permute.xlu0 2
        %1792 = vperm.xlu0 %1791, %v853
        %v1793 = vpop.permute.xlu0 %1792
        %1794 = vset.pattern.permute.xlu0 2
        %1795 = vperm.xlu0 %1794, %v854
        %v1796 = vpop.permute.xlu0 %1795
        %1797 = vset.pattern.permute.xlu0 2
        %1798 = vperm.xlu0 %1797, %v855
        %v1799 = vpop.permute.xlu0 %1798
        %1800 = vset.pattern.permute.xlu0 2
        %1801 = vperm.xlu0 %1800, %v856
        %v1802 = vpop.permute.xlu0 %1801
        %1803 = vset.pattern.permute.xlu0 2
        %1804 = vperm.xlu0 %1803, %v857
        %v1805 = vpop.permute.xlu0 %1804
        %1806 = vset.pattern.permute.xlu0 2
        %1807 = vperm.xlu0 %1806, %v858
        %v1808 = vpop.permute.xlu0 %1807
        %1809 = vset.pattern.permute.xlu0 2
        %1810 = vperm.xlu0 %1809, %v859
        %v1811 = vpop.permute.xlu0 %1810
        %1812 = vset.pattern.permute.xlu0 2
        %1813 = vperm.xlu0 %1812, %v860
        %v1814 = vpop.permute.xlu0 %1813
        %1815 = vset.pattern.permute.xlu0 2
        %1816 = vperm.xlu0 %1815, %v861
        %v1817 = vpop.permute.xlu0 %1816
        %1818 = vset.pattern.permute.xlu0 2
        %1819 = vperm.xlu0 %1818, %v862
        %v1820 = vpop.permute.xlu0 %1819
        %1821 = vset.pattern.permute.xlu0 2
        %1822 = vperm.xlu0 %1821, %v863
        %v1823 = vpop.permute.xlu0 %1822
        %1824 = vset.pattern.permute.xlu0 2
        %1825 = vperm.xlu0 %1824, %v864
        %v1826 = vpop.permute.xlu0 %1825
        %1827 = vset.pattern.permute.xlu0 2
        %1828 = vperm.xlu0 %1827, %v865
        %v1829 = vpop.permute.xlu0 %1828
        %1830 = vset.pattern.permute.xlu0 2
        %1831 = vperm.xlu0 %1830, %v866
        %v1832 = vpop.permute.xlu0 %1831
        %1833 = vset.pattern.permute.xlu0 2
        %1834 = vperm.xlu0 %1833, %v867
        %v1835 = vpop.permute.xlu0 %1834
        %1836 = vset.pattern.permute.xlu0 2
        %1837 = vperm.xlu0 %1836, %v868
        %v1838 = vpop.permute.xlu0 %1837
        %vm1839 = vcmp.eq.s32.totalorder %v1649, 1
        %vm1840 = vcmp.eq.s32.totalorder %v1652, 1
        %vm1841 = vcmp.eq.s32.totalorder %v1655, 1
        %vm1842 = vcmp.eq.s32.totalorder %v1658, 1
        %vm1843 = vcmp.eq.s32.totalorder %v1661, 1
        %vm1844 = vcmp.eq.s32.totalorder %v1664, 1
        %vm1845 = vcmp.eq.s32.totalorder %v1667, 1
        %vm1846 = vcmp.eq.s32.totalorder %v1670, 1
        %vm1847 = vcmp.eq.s32.totalorder %v1673, 1
        %vm1848 = vcmp.eq.s32.totalorder %v1676, 1
        %vm1849 = vcmp.eq.s32.totalorder %v1679, 1
        %vm1850 = vcmp.eq.s32.totalorder %v1682, 1
        %vm1851 = vcmp.eq.s32.totalorder %v1685, 1
        %vm1852 = vcmp.eq.s32.totalorder %v1688, 1
        %vm1853 = vcmp.eq.s32.totalorder %v1691, 1
        %vm1854 = vcmp.eq.s32.totalorder %v1694, 1
        %vm1855 = vcmp.eq.s32.totalorder %v1697, 1
        %vm1856 = vcmp.eq.s32.totalorder %v1700, 1
        %vm1857 = vcmp.eq.s32.totalorder %v1703, 1
        %vm1858 = vcmp.eq.s32.totalorder %v1706, 1
        %vm1859 = vcmp.eq.s32.totalorder %v1709, 1
        %vm1860 = vcmp.eq.s32.totalorder %v1712, 1
        %vm1861 = vcmp.eq.s32.totalorder %v1715, 1
        %vm1862 = vcmp.eq.s32.totalorder %v1718, 1
        %vm1863 = vcmp.eq.s32.totalorder %v1721, 1
        %vm1864 = vcmp.eq.s32.totalorder %v1724, 1
        %vm1865 = vcmp.eq.s32.totalorder %v1727, 1
        %vm1866 = vcmp.eq.s32.totalorder %v1730, 1
        %vm1867 = vcmp.eq.s32.totalorder %v1733, 1
        %vm1868 = vcmp.eq.s32.totalorder %v1736, 1
        %vm1869 = vcmp.eq.s32.totalorder %v1739, 1
        %vm1870 = vcmp.eq.s32.totalorder %v1742, 1
        %vm1871 = vcmp.eq.s32.totalorder %v1745, 1
        %vm1872 = vcmp.eq.s32.totalorder %v1748, 1
        %vm1873 = vcmp.eq.s32.totalorder %v1751, 1
        %vm1874 = vcmp.eq.s32.totalorder %v1754, 1
        %vm1875 = vcmp.eq.s32.totalorder %v1757, 1
        %vm1876 = vcmp.eq.s32.totalorder %v1760, 1
        %vm1877 = vcmp.eq.s32.totalorder %v1763, 1
        %vm1878 = vcmp.eq.s32.totalorder %v1766, 1
        %vm1879 = vcmp.eq.s32.totalorder %v1769, 1
        %vm1880 = vcmp.eq.s32.totalorder %v1772, 1
        %vm1881 = vcmp.eq.s32.totalorder %v1775, 1
        %vm1882 = vcmp.eq.s32.totalorder %v1778, 1
        %vm1883 = vcmp.eq.s32.totalorder %v1781, 1
        %vm1884 = vcmp.eq.s32.totalorder %v1784, 1
        %vm1885 = vcmp.eq.s32.totalorder %v1787, 1
        %vm1886 = vcmp.eq.s32.totalorder %v1790, 1
        %vm1887 = vcmp.eq.s32.totalorder %v1793, 1
        %vm1888 = vcmp.eq.s32.totalorder %v1796, 1
        %vm1889 = vcmp.eq.s32.totalorder %v1799, 1
        %vm1890 = vcmp.eq.s32.totalorder %v1802, 1
        %vm1891 = vcmp.eq.s32.totalorder %v1805, 1
        %vm1892 = vcmp.eq.s32.totalorder %v1808, 1
        %vm1893 = vcmp.eq.s32.totalorder %v1811, 1
        %vm1894 = vcmp.eq.s32.totalorder %v1814, 1
        %vm1895 = vcmp.eq.s32.totalorder %v1817, 1
        %vm1896 = vcmp.eq.s32.totalorder %v1820, 1
        %vm1897 = vcmp.eq.s32.totalorder %v1823, 1
        %vm1898 = vcmp.eq.s32.totalorder %v1826, 1
        %vm1899 = vcmp.eq.s32.totalorder %v1829, 1
        %vm1900 = vcmp.eq.s32.totalorder %v1832, 1
        %vm1901 = vcmp.eq.s32.totalorder %v1835, 1
        %vm1902 = vcmp.eq.s32.totalorder %v1838, 1
        %v1903 = vsel %vm1839, %v232, -inf
        %v1904 = vsel %vm1840, %v233, -inf
        %v1905 = vsel %vm1841, %v234, -inf
        %v1906 = vsel %vm1842, %v235, -inf
        %v1907 = vsel %vm1843, %v236, -inf
        %v1908 = vsel %vm1844, %v237, -inf
        %v1909 = vsel %vm1845, %v238, -inf
        %v1910 = vsel %vm1846, %v239, -inf
        %v1911 = vsel %vm1847, %v240, -inf
        %v1912 = vsel %vm1848, %v241, -inf
        %v1913 = vsel %vm1849, %v242, -inf
        %v1914 = vsel %vm1850, %v243, -inf
        %v1915 = vsel %vm1851, %v244, -inf
        %v1916 = vsel %vm1852, %v245, -inf
        %v1917 = vsel %vm1853, %v246, -inf
        %v1918 = vsel %vm1854, %v247, -inf
        %v1919 = vsel %vm1855, %v248, -inf
        %v1920 = vsel %vm1856, %v249, -inf
        %v1921 = vsel %vm1857, %v250, -inf
        %v1922 = vsel %vm1858, %v251, -inf
        %v1923 = vsel %vm1859, %v252, -inf
        %v1924 = vsel %vm1860, %v253, -inf
        %v1925 = vsel %vm1861, %v254, -inf
        %v1926 = vsel %vm1862, %v255, -inf
        %v1927 = vsel %vm1863, %v256, -inf
        %v1928 = vsel %vm1864, %v257, -inf
        %v1929 = vsel %vm1865, %v258, -inf
        %v1930 = vsel %vm1866, %v259, -inf
        %v1931 = vsel %vm1867, %v260, -inf
        %v1932 = vsel %vm1868, %v261, -inf
        %v1933 = vsel %vm1869, %v262, -inf
        %v1934 = vsel %vm1870, %v263, -inf
        %v1935 = vsel %vm1871, %v264, -inf
        %v1936 = vsel %vm1872, %v265, -inf
        %v1937 = vsel %vm1873, %v266, -inf
        %v1938 = vsel %vm1874, %v267, -inf
        %v1939 = vsel %vm1875, %v268, -inf
        %v1940 = vsel %vm1876, %v269, -inf
        %v1941 = vsel %vm1877, %v270, -inf
        %v1942 = vsel %vm1878, %v271, -inf
        %v1943 = vsel %vm1879, %v272, -inf
        %v1944 = vsel %vm1880, %v273, -inf
        %v1945 = vsel %vm1881, %v274, -inf
        %v1946 = vsel %vm1882, %v275, -inf
        %v1947 = vsel %vm1883, %v276, -inf
        %v1948 = vsel %vm1884, %v277, -inf
        %v1949 = vsel %vm1885, %v278, -inf
        %v1950 = vsel %vm1886, %v279, -inf
        %v1951 = vsel %vm1887, %v280, -inf
        %v1952 = vsel %vm1888, %v281, -inf
        %v1953 = vsel %vm1889, %v282, -inf
        %v1954 = vsel %vm1890, %v283, -inf
        %v1955 = vsel %vm1891, %v284, -inf
        %v1956 = vsel %vm1892, %v285, -inf
        %v1957 = vsel %vm1893, %v286, -inf
        %v1958 = vsel %vm1894, %v287, -inf
        %v1959 = vsel %vm1895, %v288, -inf
        %v1960 = vsel %vm1896, %v289, -inf
        %v1961 = vsel %vm1897, %v290, -inf
        %v1962 = vsel %vm1898, %v291, -inf
        %v1963 = vsel %vm1899, %v292, -inf
        %v1964 = vsel %vm1900, %v293, -inf
        %v1965 = vsel %vm1901, %v294, -inf
        %v1966 = vsel %vm1902, %v295, -inf
        %v1967 = vmax.f32 %v1903, %v1907
        %v1968 = vmax.f32 %v1904, %v1908
        %v1969 = vmax.f32 %v1905, %v1909
        %v1970 = vmax.f32 %v1906, %v1910
        %v1971 = vmax.f32 %v1967, %v1911
        %v1972 = vmax.f32 %v1968, %v1912
        %v1973 = vmax.f32 %v1969, %v1913
        %v1974 = vmax.f32 %v1970, %v1914
        %v1975 = vmax.f32 %v1971, %v1915
        %v1976 = vmax.f32 %v1972, %v1916
        %v1977 = vmax.f32 %v1973, %v1917
        %v1978 = vmax.f32 %v1974, %v1918
        %v1979 = vmax.f32 %v1975, %v1919
        %v1980 = vmax.f32 %v1976, %v1920
        %v1981 = vmax.f32 %v1977, %v1921
        %v1982 = vmax.f32 %v1978, %v1922
        %v1983 = vmax.f32 %v1979, %v1923
        %v1984 = vmax.f32 %v1980, %v1924
        %v1985 = vmax.f32 %v1981, %v1925
        %v1986 = vmax.f32 %v1982, %v1926
        %v1987 = vmax.f32 %v1983, %v1927
        %v1988 = vmax.f32 %v1984, %v1928
        %v1989 = vmax.f32 %v1985, %v1929
        %v1990 = vmax.f32 %v1986, %v1930
        %v1991 = vmax.f32 %v1987, %v1931
        %v1992 = vmax.f32 %v1988, %v1932
        %v1993 = vmax.f32 %v1989, %v1933
        %v1994 = vmax.f32 %v1990, %v1934
        %v1995 = vmax.f32 %v1991, %v1935
        %v1996 = vmax.f32 %v1992, %v1936
        %v1997 = vmax.f32 %v1993, %v1937
        %v1998 = vmax.f32 %v1994, %v1938
        %v1999 = vmax.f32 %v1995, %v1939
        %v2000 = vmax.f32 %v1996, %v1940
        %v2001 = vmax.f32 %v1997, %v1941
        %v2002 = vmax.f32 %v1998, %v1942
        %v2003 = vmax.f32 %v1999, %v1943
        %v2004 = vmax.f32 %v2000, %v1944
        %v2005 = vmax.f32 %v2001, %v1945
        %v2006 = vmax.f32 %v2002, %v1946
        %v2007 = vmax.f32 %v2003, %v1947
        %v2008 = vmax.f32 %v2004, %v1948
        %v2009 = vmax.f32 %v2005, %v1949
        %v2010 = vmax.f32 %v2006, %v1950
        %v2011 = vmax.f32 %v2007, %v1951
        %v2012 = vmax.f32 %v2008, %v1952
        %v2013 = vmax.f32 %v2009, %v1953
        %v2014 = vmax.f32 %v2010, %v1954
        %v2015 = vmax.f32 %v2011, %v1955
        %v2016 = vmax.f32 %v2012, %v1956
        %v2017 = vmax.f32 %v2013, %v1957
        %v2018 = vmax.f32 %v2014, %v1958
        %v2019 = vmax.f32 %v2015, %v1959
        %v2020 = vmax.f32 %v2016, %v1960
        %v2021 = vmax.f32 %v2017, %v1961
        %v2022 = vmax.f32 %v2018, %v1962
        %v2023 = vmax.f32 %v2019, %v1963
        %v2024 = vmax.f32 %v2020, %v1964
        %v2025 = vmax.f32 %v2021, %v1965
        %v2026 = vmax.f32 %v2022, %v1966
        %v2027 = vmax.f32 %v2023, %v2024
        %v2028 = vmax.f32 %v2025, %v2026
        %v2029 = vmax.f32 %v2027, %v2028
        %v2030 = vrot.slane %v2029, 4
        %v2031 = vmax.f32 %v2029, %v2030
        %v2032 = vrot.slane %v2031, 2
        %v2033 = vmax.f32 %v2031, %v2032
        %v2034 = vrot.slane %v2033, 1
        %v2035 = vmax.f32 %v2033, %v2034
        %2036 = vset.pattern.permute.xlu0 3
        %2037 = vperm.xlu0 %2036, %v805
        %v2038 = vpop.permute.xlu0 %2037
        %2039 = vset.pattern.permute.xlu0 3
        %2040 = vperm.xlu0 %2039, %v806
        %v2041 = vpop.permute.xlu0 %2040
        %2042 = vset.pattern.permute.xlu0 3
        %2043 = vperm.xlu0 %2042, %v807
        %v2044 = vpop.permute.xlu0 %2043
        %2045 = vset.pattern.permute.xlu0 3
        %2046 = vperm.xlu0 %2045, %v808
        %v2047 = vpop.permute.xlu0 %2046
        %2048 = vset.pattern.permute.xlu0 3
        %2049 = vperm.xlu0 %2048, %v809
        %v2050 = vpop.permute.xlu0 %2049
        %2051 = vset.pattern.permute.xlu0 3
        %2052 = vperm.xlu0 %2051, %v810
        %v2053 = vpop.permute.xlu0 %2052
        %2054 = vset.pattern.permute.xlu0 3
        %2055 = vperm.xlu0 %2054, %v811
        %v2056 = vpop.permute.xlu0 %2055
        %2057 = vset.pattern.permute.xlu0 3
        %2058 = vperm.xlu0 %2057, %v812
        %v2059 = vpop.permute.xlu0 %2058
        %2060 = vset.pattern.permute.xlu0 3
        %2061 = vperm.xlu0 %2060, %v813
        %v2062 = vpop.permute.xlu0 %2061
        %2063 = vset.pattern.permute.xlu0 3
        %2064 = vperm.xlu0 %2063, %v814
        %v2065 = vpop.permute.xlu0 %2064
        %2066 = vset.pattern.permute.xlu0 3
        %2067 = vperm.xlu0 %2066, %v815
        %v2068 = vpop.permute.xlu0 %2067
        %2069 = vset.pattern.permute.xlu0 3
        %2070 = vperm.xlu0 %2069, %v816
        %v2071 = vpop.permute.xlu0 %2070
        %2072 = vset.pattern.permute.xlu0 3
        %2073 = vperm.xlu0 %2072, %v817
        %v2074 = vpop.permute.xlu0 %2073
        %2075 = vset.pattern.permute.xlu0 3
        %2076 = vperm.xlu0 %2075, %v818
        %v2077 = vpop.permute.xlu0 %2076
        %2078 = vset.pattern.permute.xlu0 3
        %2079 = vperm.xlu0 %2078, %v819
        %v2080 = vpop.permute.xlu0 %2079
        %2081 = vset.pattern.permute.xlu0 3
        %2082 = vperm.xlu0 %2081, %v820
        %v2083 = vpop.permute.xlu0 %2082
        %2084 = vset.pattern.permute.xlu0 3
        %2085 = vperm.xlu0 %2084, %v821
        %v2086 = vpop.permute.xlu0 %2085
        %2087 = vset.pattern.permute.xlu0 3
        %2088 = vperm.xlu0 %2087, %v822
        %v2089 = vpop.permute.xlu0 %2088
        %2090 = vset.pattern.permute.xlu0 3
        %2091 = vperm.xlu0 %2090, %v823
        %v2092 = vpop.permute.xlu0 %2091
        %2093 = vset.pattern.permute.xlu0 3
        %2094 = vperm.xlu0 %2093, %v824
        %v2095 = vpop.permute.xlu0 %2094
        %2096 = vset.pattern.permute.xlu0 3
        %2097 = vperm.xlu0 %2096, %v825
        %v2098 = vpop.permute.xlu0 %2097
        %2099 = vset.pattern.permute.xlu0 3
        %2100 = vperm.xlu0 %2099, %v826
        %v2101 = vpop.permute.xlu0 %2100
        %2102 = vset.pattern.permute.xlu0 3
        %2103 = vperm.xlu0 %2102, %v827
        %v2104 = vpop.permute.xlu0 %2103
        %2105 = vset.pattern.permute.xlu0 3
        %2106 = vperm.xlu0 %2105, %v828
        %v2107 = vpop.permute.xlu0 %2106
        %2108 = vset.pattern.permute.xlu0 3
        %2109 = vperm.xlu0 %2108, %v829
        %v2110 = vpop.permute.xlu0 %2109
        %2111 = vset.pattern.permute.xlu0 3
        %2112 = vperm.xlu0 %2111, %v830
        %v2113 = vpop.permute.xlu0 %2112
        %2114 = vset.pattern.permute.xlu0 3
        %2115 = vperm.xlu0 %2114, %v831
        %v2116 = vpop.permute.xlu0 %2115
        %2117 = vset.pattern.permute.xlu0 3
        %2118 = vperm.xlu0 %2117, %v832
        %v2119 = vpop.permute.xlu0 %2118
        %2120 = vset.pattern.permute.xlu0 3
        %2121 = vperm.xlu0 %2120, %v833
        %v2122 = vpop.permute.xlu0 %2121
        %2123 = vset.pattern.permute.xlu0 3
        %2124 = vperm.xlu0 %2123, %v834
        %v2125 = vpop.permute.xlu0 %2124
        %2126 = vset.pattern.permute.xlu0 3
        %2127 = vperm.xlu0 %2126, %v835
        %v2128 = vpop.permute.xlu0 %2127
        %2129 = vset.pattern.permute.xlu0 3
        %2130 = vperm.xlu0 %2129, %v836
        %v2131 = vpop.permute.xlu0 %2130
        %2132 = vset.pattern.permute.xlu0 3
        %2133 = vperm.xlu0 %2132, %v837
        %v2134 = vpop.permute.xlu0 %2133
        %2135 = vset.pattern.permute.xlu0 3
        %2136 = vperm.xlu0 %2135, %v838
        %v2137 = vpop.permute.xlu0 %2136
        %2138 = vset.pattern.permute.xlu0 3
        %2139 = vperm.xlu0 %2138, %v839
        %v2140 = vpop.permute.xlu0 %2139
        %2141 = vset.pattern.permute.xlu0 3
        %2142 = vperm.xlu0 %2141, %v840
        %v2143 = vpop.permute.xlu0 %2142
        %2144 = vset.pattern.permute.xlu0 3
        %2145 = vperm.xlu0 %2144, %v841
        %v2146 = vpop.permute.xlu0 %2145
        %2147 = vset.pattern.permute.xlu0 3
        %2148 = vperm.xlu0 %2147, %v842
        %v2149 = vpop.permute.xlu0 %2148
        %2150 = vset.pattern.permute.xlu0 3
        %2151 = vperm.xlu0 %2150, %v843
        %v2152 = vpop.permute.xlu0 %2151
        %2153 = vset.pattern.permute.xlu0 3
        %2154 = vperm.xlu0 %2153, %v844
        %v2155 = vpop.permute.xlu0 %2154
        %2156 = vset.pattern.permute.xlu0 3
        %2157 = vperm.xlu0 %2156, %v845
        %v2158 = vpop.permute.xlu0 %2157
        %2159 = vset.pattern.permute.xlu0 3
        %2160 = vperm.xlu0 %2159, %v846
        %v2161 = vpop.permute.xlu0 %2160
        %2162 = vset.pattern.permute.xlu0 3
        %2163 = vperm.xlu0 %2162, %v847
        %v2164 = vpop.permute.xlu0 %2163
        %2165 = vset.pattern.permute.xlu0 3
        %2166 = vperm.xlu0 %2165, %v848
        %v2167 = vpop.permute.xlu0 %2166
        %2168 = vset.pattern.permute.xlu0 3
        %2169 = vperm.xlu0 %2168, %v849
        %v2170 = vpop.permute.xlu0 %2169
        %2171 = vset.pattern.permute.xlu0 3
        %2172 = vperm.xlu0 %2171, %v850
        %v2173 = vpop.permute.xlu0 %2172
        %2174 = vset.pattern.permute.xlu0 3
        %2175 = vperm.xlu0 %2174, %v851
        %v2176 = vpop.permute.xlu0 %2175
        %2177 = vset.pattern.permute.xlu0 3
        %2178 = vperm.xlu0 %2177, %v852
        %v2179 = vpop.permute.xlu0 %2178
        %2180 = vset.pattern.permute.xlu0 3
        %2181 = vperm.xlu0 %2180, %v853
        %v2182 = vpop.permute.xlu0 %2181
        %2183 = vset.pattern.permute.xlu0 3
        %2184 = vperm.xlu0 %2183, %v854
        %v2185 = vpop.permute.xlu0 %2184
        %2186 = vset.pattern.permute.xlu0 3
        %2187 = vperm.xlu0 %2186, %v855
        %v2188 = vpop.permute.xlu0 %2187
        %2189 = vset.pattern.permute.xlu0 3
        %2190 = vperm.xlu0 %2189, %v856
        %v2191 = vpop.permute.xlu0 %2190
        %2192 = vset.pattern.permute.xlu0 3
        %2193 = vperm.xlu0 %2192, %v857
        %v2194 = vpop.permute.xlu0 %2193
        %2195 = vset.pattern.permute.xlu0 3
        %2196 = vperm.xlu0 %2195, %v858
        %v2197 = vpop.permute.xlu0 %2196
        %2198 = vset.pattern.permute.xlu0 3
        %2199 = vperm.xlu0 %2198, %v859
        %v2200 = vpop.permute.xlu0 %2199
        %2201 = vset.pattern.permute.xlu0 3
        %2202 = vperm.xlu0 %2201, %v860
        %v2203 = vpop.permute.xlu0 %2202
        %2204 = vset.pattern.permute.xlu0 3
        %2205 = vperm.xlu0 %2204, %v861
        %v2206 = vpop.permute.xlu0 %2205
        %2207 = vset.pattern.permute.xlu0 3
        %2208 = vperm.xlu0 %2207, %v862
        %v2209 = vpop.permute.xlu0 %2208
        %2210 = vset.pattern.permute.xlu0 3
        %2211 = vperm.xlu0 %2210, %v863
        %v2212 = vpop.permute.xlu0 %2211
        %2213 = vset.pattern.permute.xlu0 3
        %2214 = vperm.xlu0 %2213, %v864
        %v2215 = vpop.permute.xlu0 %2214
        %2216 = vset.pattern.permute.xlu0 3
        %2217 = vperm.xlu0 %2216, %v865
        %v2218 = vpop.permute.xlu0 %2217
        %2219 = vset.pattern.permute.xlu0 3
        %2220 = vperm.xlu0 %2219, %v866
        %v2221 = vpop.permute.xlu0 %2220
        %2222 = vset.pattern.permute.xlu0 3
        %2223 = vperm.xlu0 %2222, %v867
        %v2224 = vpop.permute.xlu0 %2223
        %2225 = vset.pattern.permute.xlu0 3
        %2226 = vperm.xlu0 %2225, %v868
        %v2227 = vpop.permute.xlu0 %2226
        %vm2228 = vcmp.eq.s32.totalorder %v2038, 1
        %vm2229 = vcmp.eq.s32.totalorder %v2041, 1
        %vm2230 = vcmp.eq.s32.totalorder %v2044, 1
        %vm2231 = vcmp.eq.s32.totalorder %v2047, 1
        %vm2232 = vcmp.eq.s32.totalorder %v2050, 1
        %vm2233 = vcmp.eq.s32.totalorder %v2053, 1
        %vm2234 = vcmp.eq.s32.totalorder %v2056, 1
        %vm2235 = vcmp.eq.s32.totalorder %v2059, 1
        %vm2236 = vcmp.eq.s32.totalorder %v2062, 1
        %vm2237 = vcmp.eq.s32.totalorder %v2065, 1
        %vm2238 = vcmp.eq.s32.totalorder %v2068, 1
        %vm2239 = vcmp.eq.s32.totalorder %v2071, 1
        %vm2240 = vcmp.eq.s32.totalorder %v2074, 1
        %vm2241 = vcmp.eq.s32.totalorder %v2077, 1
        %vm2242 = vcmp.eq.s32.totalorder %v2080, 1
        %vm2243 = vcmp.eq.s32.totalorder %v2083, 1
        %vm2244 = vcmp.eq.s32.totalorder %v2086, 1
        %vm2245 = vcmp.eq.s32.totalorder %v2089, 1
        %vm2246 = vcmp.eq.s32.totalorder %v2092, 1
        %vm2247 = vcmp.eq.s32.totalorder %v2095, 1
        %vm2248 = vcmp.eq.s32.totalorder %v2098, 1
        %vm2249 = vcmp.eq.s32.totalorder %v2101, 1
        %vm2250 = vcmp.eq.s32.totalorder %v2104, 1
        %vm2251 = vcmp.eq.s32.totalorder %v2107, 1
        %vm2252 = vcmp.eq.s32.totalorder %v2110, 1
        %vm2253 = vcmp.eq.s32.totalorder %v2113, 1
        %vm2254 = vcmp.eq.s32.totalorder %v2116, 1
        %vm2255 = vcmp.eq.s32.totalorder %v2119, 1
        %vm2256 = vcmp.eq.s32.totalorder %v2122, 1
        %vm2257 = vcmp.eq.s32.totalorder %v2125, 1
        %vm2258 = vcmp.eq.s32.totalorder %v2128, 1
        %vm2259 = vcmp.eq.s32.totalorder %v2131, 1
        %vm2260 = vcmp.eq.s32.totalorder %v2134, 1
        %vm2261 = vcmp.eq.s32.totalorder %v2137, 1
        %vm2262 = vcmp.eq.s32.totalorder %v2140, 1
        %vm2263 = vcmp.eq.s32.totalorder %v2143, 1
        %vm2264 = vcmp.eq.s32.totalorder %v2146, 1
        %vm2265 = vcmp.eq.s32.totalorder %v2149, 1
        %vm2266 = vcmp.eq.s32.totalorder %v2152, 1
        %vm2267 = vcmp.eq.s32.totalorder %v2155, 1
        %vm2268 = vcmp.eq.s32.totalorder %v2158, 1
        %vm2269 = vcmp.eq.s32.totalorder %v2161, 1
        %vm2270 = vcmp.eq.s32.totalorder %v2164, 1
        %vm2271 = vcmp.eq.s32.totalorder %v2167, 1
        %vm2272 = vcmp.eq.s32.totalorder %v2170, 1
        %vm2273 = vcmp.eq.s32.totalorder %v2173, 1
        %vm2274 = vcmp.eq.s32.totalorder %v2176, 1
        %vm2275 = vcmp.eq.s32.totalorder %v2179, 1
        %vm2276 = vcmp.eq.s32.totalorder %v2182, 1
        %vm2277 = vcmp.eq.s32.totalorder %v2185, 1
        %vm2278 = vcmp.eq.s32.totalorder %v2188, 1
        %vm2279 = vcmp.eq.s32.totalorder %v2191, 1
        %vm2280 = vcmp.eq.s32.totalorder %v2194, 1
        %vm2281 = vcmp.eq.s32.totalorder %v2197, 1
        %vm2282 = vcmp.eq.s32.totalorder %v2200, 1
        %vm2283 = vcmp.eq.s32.totalorder %v2203, 1
        %vm2284 = vcmp.eq.s32.totalorder %v2206, 1
        %vm2285 = vcmp.eq.s32.totalorder %v2209, 1
        %vm2286 = vcmp.eq.s32.totalorder %v2212, 1
        %vm2287 = vcmp.eq.s32.totalorder %v2215, 1
        %vm2288 = vcmp.eq.s32.totalorder %v2218, 1
        %vm2289 = vcmp.eq.s32.totalorder %v2221, 1
        %vm2290 = vcmp.eq.s32.totalorder %v2224, 1
        %vm2291 = vcmp.eq.s32.totalorder %v2227, 1
        %v2292 = vsel %vm2228, %v232, -inf
        %v2293 = vsel %vm2229, %v233, -inf
        %v2294 = vsel %vm2230, %v234, -inf
        %v2295 = vsel %vm2231, %v235, -inf
        %v2296 = vsel %vm2232, %v236, -inf
        %v2297 = vsel %vm2233, %v237, -inf
        %v2298 = vsel %vm2234, %v238, -inf
        %v2299 = vsel %vm2235, %v239, -inf
        %v2300 = vsel %vm2236, %v240, -inf
        %v2301 = vsel %vm2237, %v241, -inf
        %v2302 = vsel %vm2238, %v242, -inf
        %v2303 = vsel %vm2239, %v243, -inf
        %v2304 = vsel %vm2240, %v244, -inf
        %v2305 = vsel %vm2241, %v245, -inf
        %v2306 = vsel %vm2242, %v246, -inf
        %v2307 = vsel %vm2243, %v247, -inf
        %v2308 = vsel %vm2244, %v248, -inf
        %v2309 = vsel %vm2245, %v249, -inf
        %v2310 = vsel %vm2246, %v250, -inf
        %v2311 = vsel %vm2247, %v251, -inf
        %v2312 = vsel %vm2248, %v252, -inf
        %v2313 = vsel %vm2249, %v253, -inf
        %v2314 = vsel %vm2250, %v254, -inf
        %v2315 = vsel %vm2251, %v255, -inf
        %v2316 = vsel %vm2252, %v256, -inf
        %v2317 = vsel %vm2253, %v257, -inf
        %v2318 = vsel %vm2254, %v258, -inf
        %v2319 = vsel %vm2255, %v259, -inf
        %v2320 = vsel %vm2256, %v260, -inf
        %v2321 = vsel %vm2257, %v261, -inf
        %v2322 = vsel %vm2258, %v262, -inf
        %v2323 = vsel %vm2259, %v263, -inf
        %v2324 = vsel %vm2260, %v264, -inf
        %v2325 = vsel %vm2261, %v265, -inf
        %v2326 = vsel %vm2262, %v266, -inf
        %v2327 = vsel %vm2263, %v267, -inf
        %v2328 = vsel %vm2264, %v268, -inf
        %v2329 = vsel %vm2265, %v269, -inf
        %v2330 = vsel %vm2266, %v270, -inf
        %v2331 = vsel %vm2267, %v271, -inf
        %v2332 = vsel %vm2268, %v272, -inf
        %v2333 = vsel %vm2269, %v273, -inf
        %v2334 = vsel %vm2270, %v274, -inf
        %v2335 = vsel %vm2271, %v275, -inf
        %v2336 = vsel %vm2272, %v276, -inf
        %v2337 = vsel %vm2273, %v277, -inf
        %v2338 = vsel %vm2274, %v278, -inf
        %v2339 = vsel %vm2275, %v279, -inf
        %v2340 = vsel %vm2276, %v280, -inf
        %v2341 = vsel %vm2277, %v281, -inf
        %v2342 = vsel %vm2278, %v282, -inf
        %v2343 = vsel %vm2279, %v283, -inf
        %v2344 = vsel %vm2280, %v284, -inf
        %v2345 = vsel %vm2281, %v285, -inf
        %v2346 = vsel %vm2282, %v286, -inf
        %v2347 = vsel %vm2283, %v287, -inf
        %v2348 = vsel %vm2284, %v288, -inf
        %v2349 = vsel %vm2285, %v289, -inf
        %v2350 = vsel %vm2286, %v290, -inf
        %v2351 = vsel %vm2287, %v291, -inf
        %v2352 = vsel %vm2288, %v292, -inf
        %v2353 = vsel %vm2289, %v293, -inf
        %v2354 = vsel %vm2290, %v294, -inf
        %v2355 = vsel %vm2291, %v295, -inf
        %v2356 = vmax.f32 %v2292, %v2296
        %v2357 = vmax.f32 %v2293, %v2297
        %v2358 = vmax.f32 %v2294, %v2298
        %v2359 = vmax.f32 %v2295, %v2299
        %v2360 = vmax.f32 %v2356, %v2300
        %v2361 = vmax.f32 %v2357, %v2301
        %v2362 = vmax.f32 %v2358, %v2302
        %v2363 = vmax.f32 %v2359, %v2303
        %v2364 = vmax.f32 %v2360, %v2304
        %v2365 = vmax.f32 %v2361, %v2305
        %v2366 = vmax.f32 %v2362, %v2306
        %v2367 = vmax.f32 %v2363, %v2307
        %v2368 = vmax.f32 %v2364, %v2308
        %v2369 = vmax.f32 %v2365, %v2309
        %v2370 = vmax.f32 %v2366, %v2310
        %v2371 = vmax.f32 %v2367, %v2311
        %v2372 = vmax.f32 %v2368, %v2312
        %v2373 = vmax.f32 %v2369, %v2313
        %v2374 = vmax.f32 %v2370, %v2314
        %v2375 = vmax.f32 %v2371, %v2315
        %v2376 = vmax.f32 %v2372, %v2316
        %v2377 = vmax.f32 %v2373, %v2317
        %v2378 = vmax.f32 %v2374, %v2318
        %v2379 = vmax.f32 %v2375, %v2319
        %v2380 = vmax.f32 %v2376, %v2320
        %v2381 = vmax.f32 %v2377, %v2321
        %v2382 = vmax.f32 %v2378, %v2322
        %v2383 = vmax.f32 %v2379, %v2323
        %v2384 = vmax.f32 %v2380, %v2324
        %v2385 = vmax.f32 %v2381, %v2325
        %v2386 = vmax.f32 %v2382, %v2326
        %v2387 = vmax.f32 %v2383, %v2327
        %v2388 = vmax.f32 %v2384, %v2328
        %v2389 = vmax.f32 %v2385, %v2329
        %v2390 = vmax.f32 %v2386, %v2330
        %v2391 = vmax.f32 %v2387, %v2331
        %v2392 = vmax.f32 %v2388, %v2332
        %v2393 = vmax.f32 %v2389, %v2333
        %v2394 = vmax.f32 %v2390, %v2334
        %v2395 = vmax.f32 %v2391, %v2335
        %v2396 = vmax.f32 %v2392, %v2336
        %v2397 = vmax.f32 %v2393, %v2337
        %v2398 = vmax.f32 %v2394, %v2338
        %v2399 = vmax.f32 %v2395, %v2339
        %v2400 = vmax.f32 %v2396, %v2340
        %v2401 = vmax.f32 %v2397, %v2341
        %v2402 = vmax.f32 %v2398, %v2342
        %v2403 = vmax.f32 %v2399, %v2343
        %v2404 = vmax.f32 %v2400, %v2344
        %v2405 = vmax.f32 %v2401, %v2345
        %v2406 = vmax.f32 %v2402, %v2346
        %v2407 = vmax.f32 %v2403, %v2347
        %v2408 = vmax.f32 %v2404, %v2348
        %v2409 = vmax.f32 %v2405, %v2349
        %v2410 = vmax.f32 %v2406, %v2350
        %v2411 = vmax.f32 %v2407, %v2351
        %v2412 = vmax.f32 %v2408, %v2352
        %v2413 = vmax.f32 %v2409, %v2353
        %v2414 = vmax.f32 %v2410, %v2354
        %v2415 = vmax.f32 %v2411, %v2355
        %v2416 = vmax.f32 %v2412, %v2413
        %v2417 = vmax.f32 %v2414, %v2415
        %v2418 = vmax.f32 %v2416, %v2417
        %v2419 = vrot.slane %v2418, 4
        %v2420 = vmax.f32 %v2418, %v2419
        %v2421 = vrot.slane %v2420, 2
        %v2422 = vmax.f32 %v2420, %v2421
        %v2423 = vrot.slane %v2422, 1
        %v2424 = vmax.f32 %v2422, %v2423
        %2425 = vset.pattern.permute.xlu0 4
        %2426 = vperm.xlu0 %2425, %v805
        %v2427 = vpop.permute.xlu0 %2426
        %2428 = vset.pattern.permute.xlu0 4
        %2429 = vperm.xlu0 %2428, %v806
        %v2430 = vpop.permute.xlu0 %2429
        %2431 = vset.pattern.permute.xlu0 4
        %2432 = vperm.xlu0 %2431, %v807
        %v2433 = vpop.permute.xlu0 %2432
        %2434 = vset.pattern.permute.xlu0 4
        %2435 = vperm.xlu0 %2434, %v808
        %v2436 = vpop.permute.xlu0 %2435
        %2437 = vset.pattern.permute.xlu0 4
        %2438 = vperm.xlu0 %2437, %v809
        %v2439 = vpop.permute.xlu0 %2438
        %2440 = vset.pattern.permute.xlu0 4
        %2441 = vperm.xlu0 %2440, %v810
        %v2442 = vpop.permute.xlu0 %2441
        %2443 = vset.pattern.permute.xlu0 4
        %2444 = vperm.xlu0 %2443, %v811
        %v2445 = vpop.permute.xlu0 %2444
        %2446 = vset.pattern.permute.xlu0 4
        %2447 = vperm.xlu0 %2446, %v812
        %v2448 = vpop.permute.xlu0 %2447
        %2449 = vset.pattern.permute.xlu0 4
        %2450 = vperm.xlu0 %2449, %v813
        %v2451 = vpop.permute.xlu0 %2450
        %2452 = vset.pattern.permute.xlu0 4
        %2453 = vperm.xlu0 %2452, %v814
        %v2454 = vpop.permute.xlu0 %2453
        %2455 = vset.pattern.permute.xlu0 4
        %2456 = vperm.xlu0 %2455, %v815
        %v2457 = vpop.permute.xlu0 %2456
        %2458 = vset.pattern.permute.xlu0 4
        %2459 = vperm.xlu0 %2458, %v816
        %v2460 = vpop.permute.xlu0 %2459
        %2461 = vset.pattern.permute.xlu0 4
        %2462 = vperm.xlu0 %2461, %v817
        %v2463 = vpop.permute.xlu0 %2462
        %2464 = vset.pattern.permute.xlu0 4
        %2465 = vperm.xlu0 %2464, %v818
        %v2466 = vpop.permute.xlu0 %2465
        %2467 = vset.pattern.permute.xlu0 4
        %2468 = vperm.xlu0 %2467, %v819
        %v2469 = vpop.permute.xlu0 %2468
        %2470 = vset.pattern.permute.xlu0 4
        %2471 = vperm.xlu0 %2470, %v820
        %v2472 = vpop.permute.xlu0 %2471
        %2473 = vset.pattern.permute.xlu0 4
        %2474 = vperm.xlu0 %2473, %v821
        %v2475 = vpop.permute.xlu0 %2474
        %2476 = vset.pattern.permute.xlu0 4
        %2477 = vperm.xlu0 %2476, %v822
        %v2478 = vpop.permute.xlu0 %2477
        %2479 = vset.pattern.permute.xlu0 4
        %2480 = vperm.xlu0 %2479, %v823
        %v2481 = vpop.permute.xlu0 %2480
        %2482 = vset.pattern.permute.xlu0 4
        %2483 = vperm.xlu0 %2482, %v824
        %v2484 = vpop.permute.xlu0 %2483
        %2485 = vset.pattern.permute.xlu0 4
        %2486 = vperm.xlu0 %2485, %v825
        %v2487 = vpop.permute.xlu0 %2486
        %2488 = vset.pattern.permute.xlu0 4
        %2489 = vperm.xlu0 %2488, %v826
        %v2490 = vpop.permute.xlu0 %2489
        %2491 = vset.pattern.permute.xlu0 4
        %2492 = vperm.xlu0 %2491, %v827
        %v2493 = vpop.permute.xlu0 %2492
        %2494 = vset.pattern.permute.xlu0 4
        %2495 = vperm.xlu0 %2494, %v828
        %v2496 = vpop.permute.xlu0 %2495
        %2497 = vset.pattern.permute.xlu0 4
        %2498 = vperm.xlu0 %2497, %v829
        %v2499 = vpop.permute.xlu0 %2498
        %2500 = vset.pattern.permute.xlu0 4
        %2501 = vperm.xlu0 %2500, %v830
        %v2502 = vpop.permute.xlu0 %2501
        %2503 = vset.pattern.permute.xlu0 4
        %2504 = vperm.xlu0 %2503, %v831
        %v2505 = vpop.permute.xlu0 %2504
        %2506 = vset.pattern.permute.xlu0 4
        %2507 = vperm.xlu0 %2506, %v832
        %v2508 = vpop.permute.xlu0 %2507
        %2509 = vset.pattern.permute.xlu0 4
        %2510 = vperm.xlu0 %2509, %v833
        %v2511 = vpop.permute.xlu0 %2510
        %2512 = vset.pattern.permute.xlu0 4
        %2513 = vperm.xlu0 %2512, %v834
        %v2514 = vpop.permute.xlu0 %2513
        %2515 = vset.pattern.permute.xlu0 4
        %2516 = vperm.xlu0 %2515, %v835
        %v2517 = vpop.permute.xlu0 %2516
        %2518 = vset.pattern.permute.xlu0 4
        %2519 = vperm.xlu0 %2518, %v836
        %v2520 = vpop.permute.xlu0 %2519
        %2521 = vset.pattern.permute.xlu0 4
        %2522 = vperm.xlu0 %2521, %v837
        %v2523 = vpop.permute.xlu0 %2522
        %2524 = vset.pattern.permute.xlu0 4
        %2525 = vperm.xlu0 %2524, %v838
        %v2526 = vpop.permute.xlu0 %2525
        %2527 = vset.pattern.permute.xlu0 4
        %2528 = vperm.xlu0 %2527, %v839
        %v2529 = vpop.permute.xlu0 %2528
        %2530 = vset.pattern.permute.xlu0 4
        %2531 = vperm.xlu0 %2530, %v840
        %v2532 = vpop.permute.xlu0 %2531
        %2533 = vset.pattern.permute.xlu0 4
        %2534 = vperm.xlu0 %2533, %v841
        %v2535 = vpop.permute.xlu0 %2534
        %2536 = vset.pattern.permute.xlu0 4
        %2537 = vperm.xlu0 %2536, %v842
        %v2538 = vpop.permute.xlu0 %2537
        %2539 = vset.pattern.permute.xlu0 4
        %2540 = vperm.xlu0 %2539, %v843
        %v2541 = vpop.permute.xlu0 %2540
        %2542 = vset.pattern.permute.xlu0 4
        %2543 = vperm.xlu0 %2542, %v844
        %v2544 = vpop.permute.xlu0 %2543
        %2545 = vset.pattern.permute.xlu0 4
        %2546 = vperm.xlu0 %2545, %v845
        %v2547 = vpop.permute.xlu0 %2546
        %2548 = vset.pattern.permute.xlu0 4
        %2549 = vperm.xlu0 %2548, %v846
        %v2550 = vpop.permute.xlu0 %2549
        %2551 = vset.pattern.permute.xlu0 4
        %2552 = vperm.xlu0 %2551, %v847
        %v2553 = vpop.permute.xlu0 %2552
        %2554 = vset.pattern.permute.xlu0 4
        %2555 = vperm.xlu0 %2554, %v848
        %v2556 = vpop.permute.xlu0 %2555
        %2557 = vset.pattern.permute.xlu0 4
        %2558 = vperm.xlu0 %2557, %v849
        %v2559 = vpop.permute.xlu0 %2558
        %2560 = vset.pattern.permute.xlu0 4
        %2561 = vperm.xlu0 %2560, %v850
        %v2562 = vpop.permute.xlu0 %2561
        %2563 = vset.pattern.permute.xlu0 4
        %2564 = vperm.xlu0 %2563, %v851
        %v2565 = vpop.permute.xlu0 %2564
        %2566 = vset.pattern.permute.xlu0 4
        %2567 = vperm.xlu0 %2566, %v852
        %v2568 = vpop.permute.xlu0 %2567
        %2569 = vset.pattern.permute.xlu0 4
        %2570 = vperm.xlu0 %2569, %v853
        %v2571 = vpop.permute.xlu0 %2570
        %2572 = vset.pattern.permute.xlu0 4
        %2573 = vperm.xlu0 %2572, %v854
        %v2574 = vpop.permute.xlu0 %2573
        %2575 = vset.pattern.permute.xlu0 4
        %2576 = vperm.xlu0 %2575, %v855
        %v2577 = vpop.permute.xlu0 %2576
        %2578 = vset.pattern.permute.xlu0 4
        %2579 = vperm.xlu0 %2578, %v856
        %v2580 = vpop.permute.xlu0 %2579
        %2581 = vset.pattern.permute.xlu0 4
        %2582 = vperm.xlu0 %2581, %v857
        %v2583 = vpop.permute.xlu0 %2582
        %2584 = vset.pattern.permute.xlu0 4
        %2585 = vperm.xlu0 %2584, %v858
        %v2586 = vpop.permute.xlu0 %2585
        %2587 = vset.pattern.permute.xlu0 4
        %2588 = vperm.xlu0 %2587, %v859
        %v2589 = vpop.permute.xlu0 %2588
        %2590 = vset.pattern.permute.xlu0 4
        %2591 = vperm.xlu0 %2590, %v860
        %v2592 = vpop.permute.xlu0 %2591
        %2593 = vset.pattern.permute.xlu0 4
        %2594 = vperm.xlu0 %2593, %v861
        %v2595 = vpop.permute.xlu0 %2594
        %2596 = vset.pattern.permute.xlu0 4
        %2597 = vperm.xlu0 %2596, %v862
        %v2598 = vpop.permute.xlu0 %2597
        %2599 = vset.pattern.permute.xlu0 4
        %2600 = vperm.xlu0 %2599, %v863
        %v2601 = vpop.permute.xlu0 %2600
        %2602 = vset.pattern.permute.xlu0 4
        %2603 = vperm.xlu0 %2602, %v864
        %v2604 = vpop.permute.xlu0 %2603
        %2605 = vset.pattern.permute.xlu0 4
        %2606 = vperm.xlu0 %2605, %v865
        %v2607 = vpop.permute.xlu0 %2606
        %2608 = vset.pattern.permute.xlu0 4
        %2609 = vperm.xlu0 %2608, %v866
        %v2610 = vpop.permute.xlu0 %2609
        %2611 = vset.pattern.permute.xlu0 4
        %2612 = vperm.xlu0 %2611, %v867
        %v2613 = vpop.permute.xlu0 %2612
        %2614 = vset.pattern.permute.xlu0 4
        %2615 = vperm.xlu0 %2614, %v868
        %v2616 = vpop.permute.xlu0 %2615
        %vm2617 = vcmp.eq.s32.totalorder %v2427, 1
        %vm2618 = vcmp.eq.s32.totalorder %v2430, 1
        %vm2619 = vcmp.eq.s32.totalorder %v2433, 1
        %vm2620 = vcmp.eq.s32.totalorder %v2436, 1
        %vm2621 = vcmp.eq.s32.totalorder %v2439, 1
        %vm2622 = vcmp.eq.s32.totalorder %v2442, 1
        %vm2623 = vcmp.eq.s32.totalorder %v2445, 1
        %vm2624 = vcmp.eq.s32.totalorder %v2448, 1
        %vm2625 = vcmp.eq.s32.totalorder %v2451, 1
        %vm2626 = vcmp.eq.s32.totalorder %v2454, 1
        %vm2627 = vcmp.eq.s32.totalorder %v2457, 1
        %vm2628 = vcmp.eq.s32.totalorder %v2460, 1
        %vm2629 = vcmp.eq.s32.totalorder %v2463, 1
        %vm2630 = vcmp.eq.s32.totalorder %v2466, 1
        %vm2631 = vcmp.eq.s32.totalorder %v2469, 1
        %vm2632 = vcmp.eq.s32.totalorder %v2472, 1
        %vm2633 = vcmp.eq.s32.totalorder %v2475, 1
        %vm2634 = vcmp.eq.s32.totalorder %v2478, 1
        %vm2635 = vcmp.eq.s32.totalorder %v2481, 1
        %vm2636 = vcmp.eq.s32.totalorder %v2484, 1
        %vm2637 = vcmp.eq.s32.totalorder %v2487, 1
        %vm2638 = vcmp.eq.s32.totalorder %v2490, 1
        %vm2639 = vcmp.eq.s32.totalorder %v2493, 1
        %vm2640 = vcmp.eq.s32.totalorder %v2496, 1
        %vm2641 = vcmp.eq.s32.totalorder %v2499, 1
        %vm2642 = vcmp.eq.s32.totalorder %v2502, 1
        %vm2643 = vcmp.eq.s32.totalorder %v2505, 1
        %vm2644 = vcmp.eq.s32.totalorder %v2508, 1
        %vm2645 = vcmp.eq.s32.totalorder %v2511, 1
        %vm2646 = vcmp.eq.s32.totalorder %v2514, 1
        %vm2647 = vcmp.eq.s32.totalorder %v2517, 1
        %vm2648 = vcmp.eq.s32.totalorder %v2520, 1
        %vm2649 = vcmp.eq.s32.totalorder %v2523, 1
        %vm2650 = vcmp.eq.s32.totalorder %v2526, 1
        %vm2651 = vcmp.eq.s32.totalorder %v2529, 1
        %vm2652 = vcmp.eq.s32.totalorder %v2532, 1
        %vm2653 = vcmp.eq.s32.totalorder %v2535, 1
        %vm2654 = vcmp.eq.s32.totalorder %v2538, 1
        %vm2655 = vcmp.eq.s32.totalorder %v2541, 1
        %vm2656 = vcmp.eq.s32.totalorder %v2544, 1
        %vm2657 = vcmp.eq.s32.totalorder %v2547, 1
        %vm2658 = vcmp.eq.s32.totalorder %v2550, 1
        %vm2659 = vcmp.eq.s32.totalorder %v2553, 1
        %vm2660 = vcmp.eq.s32.totalorder %v2556, 1
        %vm2661 = vcmp.eq.s32.totalorder %v2559, 1
        %vm2662 = vcmp.eq.s32.totalorder %v2562, 1
        %vm2663 = vcmp.eq.s32.totalorder %v2565, 1
        %vm2664 = vcmp.eq.s32.totalorder %v2568, 1
        %vm2665 = vcmp.eq.s32.totalorder %v2571, 1
        %vm2666 = vcmp.eq.s32.totalorder %v2574, 1
        %vm2667 = vcmp.eq.s32.totalorder %v2577, 1
        %vm2668 = vcmp.eq.s32.totalorder %v2580, 1
        %vm2669 = vcmp.eq.s32.totalorder %v2583, 1
        %vm2670 = vcmp.eq.s32.totalorder %v2586, 1
        %vm2671 = vcmp.eq.s32.totalorder %v2589, 1
        %vm2672 = vcmp.eq.s32.totalorder %v2592, 1
        %vm2673 = vcmp.eq.s32.totalorder %v2595, 1
        %vm2674 = vcmp.eq.s32.totalorder %v2598, 1
        %vm2675 = vcmp.eq.s32.totalorder %v2601, 1
        %vm2676 = vcmp.eq.s32.totalorder %v2604, 1
        %vm2677 = vcmp.eq.s32.totalorder %v2607, 1
        %vm2678 = vcmp.eq.s32.totalorder %v2610, 1
        %vm2679 = vcmp.eq.s32.totalorder %v2613, 1
        %vm2680 = vcmp.eq.s32.totalorder %v2616, 1
        %v2681 = vsel %vm2617, %v232, -inf
        %v2682 = vsel %vm2618, %v233, -inf
        %v2683 = vsel %vm2619, %v234, -inf
        %v2684 = vsel %vm2620, %v235, -inf
        %v2685 = vsel %vm2621, %v236, -inf
        %v2686 = vsel %vm2622, %v237, -inf
        %v2687 = vsel %vm2623, %v238, -inf
        %v2688 = vsel %vm2624, %v239, -inf
        %v2689 = vsel %vm2625, %v240, -inf
        %v2690 = vsel %vm2626, %v241, -inf
        %v2691 = vsel %vm2627, %v242, -inf
        %v2692 = vsel %vm2628, %v243, -inf
        %v2693 = vsel %vm2629, %v244, -inf
        %v2694 = vsel %vm2630, %v245, -inf
        %v2695 = vsel %vm2631, %v246, -inf
        %v2696 = vsel %vm2632, %v247, -inf
        %v2697 = vsel %vm2633, %v248, -inf
        %v2698 = vsel %vm2634, %v249, -inf
        %v2699 = vsel %vm2635, %v250, -inf
        %v2700 = vsel %vm2636, %v251, -inf
        %v2701 = vsel %vm2637, %v252, -inf
        %v2702 = vsel %vm2638, %v253, -inf
        %v2703 = vsel %vm2639, %v254, -inf
        %v2704 = vsel %vm2640, %v255, -inf
        %v2705 = vsel %vm2641, %v256, -inf
        %v2706 = vsel %vm2642, %v257, -inf
        %v2707 = vsel %vm2643, %v258, -inf
        %v2708 = vsel %vm2644, %v259, -inf
        %v2709 = vsel %vm2645, %v260, -inf
        %v2710 = vsel %vm2646, %v261, -inf
        %v2711 = vsel %vm2647, %v262, -inf
        %v2712 = vsel %vm2648, %v263, -inf
        %v2713 = vsel %vm2649, %v264, -inf
        %v2714 = vsel %vm2650, %v265, -inf
        %v2715 = vsel %vm2651, %v266, -inf
        %v2716 = vsel %vm2652, %v267, -inf
        %v2717 = vsel %vm2653, %v268, -inf
        %v2718 = vsel %vm2654, %v269, -inf
        %v2719 = vsel %vm2655, %v270, -inf
        %v2720 = vsel %vm2656, %v271, -inf
        %v2721 = vsel %vm2657, %v272, -inf
        %v2722 = vsel %vm2658, %v273, -inf
        %v2723 = vsel %vm2659, %v274, -inf
        %v2724 = vsel %vm2660, %v275, -inf
        %v2725 = vsel %vm2661, %v276, -inf
        %v2726 = vsel %vm2662, %v277, -inf
        %v2727 = vsel %vm2663, %v278, -inf
        %v2728 = vsel %vm2664, %v279, -inf
        %v2729 = vsel %vm2665, %v280, -inf
        %v2730 = vsel %vm2666, %v281, -inf
        %v2731 = vsel %vm2667, %v282, -inf
        %v2732 = vsel %vm2668, %v283, -inf
        %v2733 = vsel %vm2669, %v284, -inf
        %v2734 = vsel %vm2670, %v285, -inf
        %v2735 = vsel %vm2671, %v286, -inf
        %v2736 = vsel %vm2672, %v287, -inf
        %v2737 = vsel %vm2673, %v288, -inf
        %v2738 = vsel %vm2674, %v289, -inf
        %v2739 = vsel %vm2675, %v290, -inf
        %v2740 = vsel %vm2676, %v291, -inf
        %v2741 = vsel %vm2677, %v292, -inf
        %v2742 = vsel %vm2678, %v293, -inf
        %v2743 = vsel %vm2679, %v294, -inf
        %v2744 = vsel %vm2680, %v295, -inf
        %v2745 = vmax.f32 %v2681, %v2685
        %v2746 = vmax.f32 %v2682, %v2686
        %v2747 = vmax.f32 %v2683, %v2687
        %v2748 = vmax.f32 %v2684, %v2688
        %v2749 = vmax.f32 %v2745, %v2689
        %v2750 = vmax.f32 %v2746, %v2690
        %v2751 = vmax.f32 %v2747, %v2691
        %v2752 = vmax.f32 %v2748, %v2692
        %v2753 = vmax.f32 %v2749, %v2693
        %v2754 = vmax.f32 %v2750, %v2694
        %v2755 = vmax.f32 %v2751, %v2695
        %v2756 = vmax.f32 %v2752, %v2696
        %v2757 = vmax.f32 %v2753, %v2697
        %v2758 = vmax.f32 %v2754, %v2698
        %v2759 = vmax.f32 %v2755, %v2699
        %v2760 = vmax.f32 %v2756, %v2700
        %v2761 = vmax.f32 %v2757, %v2701
        %v2762 = vmax.f32 %v2758, %v2702
        %v2763 = vmax.f32 %v2759, %v2703
        %v2764 = vmax.f32 %v2760, %v2704
        %v2765 = vmax.f32 %v2761, %v2705
        %v2766 = vmax.f32 %v2762, %v2706
        %v2767 = vmax.f32 %v2763, %v2707
        %v2768 = vmax.f32 %v2764, %v2708
        %v2769 = vmax.f32 %v2765, %v2709
        %v2770 = vmax.f32 %v2766, %v2710
        %v2771 = vmax.f32 %v2767, %v2711
        %v2772 = vmax.f32 %v2768, %v2712
        %v2773 = vmax.f32 %v2769, %v2713
        %v2774 = vmax.f32 %v2770, %v2714
        %v2775 = vmax.f32 %v2771, %v2715
        %v2776 = vmax.f32 %v2772, %v2716
        %v2777 = vmax.f32 %v2773, %v2717
        %v2778 = vmax.f32 %v2774, %v2718
        %v2779 = vmax.f32 %v2775, %v2719
        %v2780 = vmax.f32 %v2776, %v2720
        %v2781 = vmax.f32 %v2777, %v2721
        %v2782 = vmax.f32 %v2778, %v2722
        %v2783 = vmax.f32 %v2779, %v2723
        %v2784 = vmax.f32 %v2780, %v2724
        %v2785 = vmax.f32 %v2781, %v2725
        %v2786 = vmax.f32 %v2782, %v2726
        %v2787 = vmax.f32 %v2783, %v2727
        %v2788 = vmax.f32 %v2784, %v2728
        %v2789 = vmax.f32 %v2785, %v2729
        %v2790 = vmax.f32 %v2786, %v2730
        %v2791 = vmax.f32 %v2787, %v2731
        %v2792 = vmax.f32 %v2788, %v2732
        %v2793 = vmax.f32 %v2789, %v2733
        %v2794 = vmax.f32 %v2790, %v2734
        %v2795 = vmax.f32 %v2791, %v2735
        %v2796 = vmax.f32 %v2792, %v2736
        %v2797 = vmax.f32 %v2793, %v2737
        %v2798 = vmax.f32 %v2794, %v2738
        %v2799 = vmax.f32 %v2795, %v2739
        %v2800 = vmax.f32 %v2796, %v2740
        %v2801 = vmax.f32 %v2797, %v2741
        %v2802 = vmax.f32 %v2798, %v2742
        %v2803 = vmax.f32 %v2799, %v2743
        %v2804 = vmax.f32 %v2800, %v2744
        %v2805 = vmax.f32 %v2801, %v2802
        %v2806 = vmax.f32 %v2803, %v2804
        %v2807 = vmax.f32 %v2805, %v2806
        %v2808 = vrot.slane %v2807, 4
        %v2809 = vmax.f32 %v2807, %v2808
        %v2810 = vrot.slane %v2809, 2
        %v2811 = vmax.f32 %v2809, %v2810
        %v2812 = vrot.slane %v2811, 1
        %v2813 = vmax.f32 %v2811, %v2812
        %2814 = vset.pattern.permute.xlu0 5
        %2815 = vperm.xlu0 %2814, %v805
        %v2816 = vpop.permute.xlu0 %2815
        %2817 = vset.pattern.permute.xlu0 5
        %2818 = vperm.xlu0 %2817, %v806
        %v2819 = vpop.permute.xlu0 %2818
        %2820 = vset.pattern.permute.xlu0 5
        %2821 = vperm.xlu0 %2820, %v807
        %v2822 = vpop.permute.xlu0 %2821
        %2823 = vset.pattern.permute.xlu0 5
        %2824 = vperm.xlu0 %2823, %v808
        %v2825 = vpop.permute.xlu0 %2824
        %2826 = vset.pattern.permute.xlu0 5
        %2827 = vperm.xlu0 %2826, %v809
        %v2828 = vpop.permute.xlu0 %2827
        %2829 = vset.pattern.permute.xlu0 5
        %2830 = vperm.xlu0 %2829, %v810
        %v2831 = vpop.permute.xlu0 %2830
        %2832 = vset.pattern.permute.xlu0 5
        %2833 = vperm.xlu0 %2832, %v811
        %v2834 = vpop.permute.xlu0 %2833
        %2835 = vset.pattern.permute.xlu0 5
        %2836 = vperm.xlu0 %2835, %v812
        %v2837 = vpop.permute.xlu0 %2836
        %2838 = vset.pattern.permute.xlu0 5
        %2839 = vperm.xlu0 %2838, %v813
        %v2840 = vpop.permute.xlu0 %2839
        %2841 = vset.pattern.permute.xlu0 5
        %2842 = vperm.xlu0 %2841, %v814
        %v2843 = vpop.permute.xlu0 %2842
        %2844 = vset.pattern.permute.xlu0 5
        %2845 = vperm.xlu0 %2844, %v815
        %v2846 = vpop.permute.xlu0 %2845
        %2847 = vset.pattern.permute.xlu0 5
        %2848 = vperm.xlu0 %2847, %v816
        %v2849 = vpop.permute.xlu0 %2848
        %2850 = vset.pattern.permute.xlu0 5
        %2851 = vperm.xlu0 %2850, %v817
        %v2852 = vpop.permute.xlu0 %2851
        %2853 = vset.pattern.permute.xlu0 5
        %2854 = vperm.xlu0 %2853, %v818
        %v2855 = vpop.permute.xlu0 %2854
        %2856 = vset.pattern.permute.xlu0 5
        %2857 = vperm.xlu0 %2856, %v819
        %v2858 = vpop.permute.xlu0 %2857
        %2859 = vset.pattern.permute.xlu0 5
        %2860 = vperm.xlu0 %2859, %v820
        %v2861 = vpop.permute.xlu0 %2860
        %2862 = vset.pattern.permute.xlu0 5
        %2863 = vperm.xlu0 %2862, %v821
        %v2864 = vpop.permute.xlu0 %2863
        %2865 = vset.pattern.permute.xlu0 5
        %2866 = vperm.xlu0 %2865, %v822
        %v2867 = vpop.permute.xlu0 %2866
        %2868 = vset.pattern.permute.xlu0 5
        %2869 = vperm.xlu0 %2868, %v823
        %v2870 = vpop.permute.xlu0 %2869
        %2871 = vset.pattern.permute.xlu0 5
        %2872 = vperm.xlu0 %2871, %v824
        %v2873 = vpop.permute.xlu0 %2872
        %2874 = vset.pattern.permute.xlu0 5
        %2875 = vperm.xlu0 %2874, %v825
        %v2876 = vpop.permute.xlu0 %2875
        %2877 = vset.pattern.permute.xlu0 5
        %2878 = vperm.xlu0 %2877, %v826
        %v2879 = vpop.permute.xlu0 %2878
        %2880 = vset.pattern.permute.xlu0 5
        %2881 = vperm.xlu0 %2880, %v827
        %v2882 = vpop.permute.xlu0 %2881
        %2883 = vset.pattern.permute.xlu0 5
        %2884 = vperm.xlu0 %2883, %v828
        %v2885 = vpop.permute.xlu0 %2884
        %2886 = vset.pattern.permute.xlu0 5
        %2887 = vperm.xlu0 %2886, %v829
        %v2888 = vpop.permute.xlu0 %2887
        %2889 = vset.pattern.permute.xlu0 5
        %2890 = vperm.xlu0 %2889, %v830
        %v2891 = vpop.permute.xlu0 %2890
        %2892 = vset.pattern.permute.xlu0 5
        %2893 = vperm.xlu0 %2892, %v831
        %v2894 = vpop.permute.xlu0 %2893
        %2895 = vset.pattern.permute.xlu0 5
        %2896 = vperm.xlu0 %2895, %v832
        %v2897 = vpop.permute.xlu0 %2896
        %2898 = vset.pattern.permute.xlu0 5
        %2899 = vperm.xlu0 %2898, %v833
        %v2900 = vpop.permute.xlu0 %2899
        %2901 = vset.pattern.permute.xlu0 5
        %2902 = vperm.xlu0 %2901, %v834
        %v2903 = vpop.permute.xlu0 %2902
        %2904 = vset.pattern.permute.xlu0 5
        %2905 = vperm.xlu0 %2904, %v835
        %v2906 = vpop.permute.xlu0 %2905
        %2907 = vset.pattern.permute.xlu0 5
        %2908 = vperm.xlu0 %2907, %v836
        %v2909 = vpop.permute.xlu0 %2908
        %2910 = vset.pattern.permute.xlu0 5
        %2911 = vperm.xlu0 %2910, %v837
        %v2912 = vpop.permute.xlu0 %2911
        %2913 = vset.pattern.permute.xlu0 5
        %2914 = vperm.xlu0 %2913, %v838
        %v2915 = vpop.permute.xlu0 %2914
        %2916 = vset.pattern.permute.xlu0 5
        %2917 = vperm.xlu0 %2916, %v839
        %v2918 = vpop.permute.xlu0 %2917
        %2919 = vset.pattern.permute.xlu0 5
        %2920 = vperm.xlu0 %2919, %v840
        %v2921 = vpop.permute.xlu0 %2920
        %2922 = vset.pattern.permute.xlu0 5
        %2923 = vperm.xlu0 %2922, %v841
        %v2924 = vpop.permute.xlu0 %2923
        %2925 = vset.pattern.permute.xlu0 5
        %2926 = vperm.xlu0 %2925, %v842
        %v2927 = vpop.permute.xlu0 %2926
        %2928 = vset.pattern.permute.xlu0 5
        %2929 = vperm.xlu0 %2928, %v843
        %v2930 = vpop.permute.xlu0 %2929
        %2931 = vset.pattern.permute.xlu0 5
        %2932 = vperm.xlu0 %2931, %v844
        %v2933 = vpop.permute.xlu0 %2932
        %2934 = vset.pattern.permute.xlu0 5
        %2935 = vperm.xlu0 %2934, %v845
        %v2936 = vpop.permute.xlu0 %2935
        %2937 = vset.pattern.permute.xlu0 5
        %2938 = vperm.xlu0 %2937, %v846
        %v2939 = vpop.permute.xlu0 %2938
        %2940 = vset.pattern.permute.xlu0 5
        %2941 = vperm.xlu0 %2940, %v847
        %v2942 = vpop.permute.xlu0 %2941
        %2943 = vset.pattern.permute.xlu0 5
        %2944 = vperm.xlu0 %2943, %v848
        %v2945 = vpop.permute.xlu0 %2944
        %2946 = vset.pattern.permute.xlu0 5
        %2947 = vperm.xlu0 %2946, %v849
        %v2948 = vpop.permute.xlu0 %2947
        %2949 = vset.pattern.permute.xlu0 5
        %2950 = vperm.xlu0 %2949, %v850
        %v2951 = vpop.permute.xlu0 %2950
        %2952 = vset.pattern.permute.xlu0 5
        %2953 = vperm.xlu0 %2952, %v851
        %v2954 = vpop.permute.xlu0 %2953
        %2955 = vset.pattern.permute.xlu0 5
        %2956 = vperm.xlu0 %2955, %v852
        %v2957 = vpop.permute.xlu0 %2956
        %2958 = vset.pattern.permute.xlu0 5
        %2959 = vperm.xlu0 %2958, %v853
        %v2960 = vpop.permute.xlu0 %2959
        %2961 = vset.pattern.permute.xlu0 5
        %2962 = vperm.xlu0 %2961, %v854
        %v2963 = vpop.permute.xlu0 %2962
        %2964 = vset.pattern.permute.xlu0 5
        %2965 = vperm.xlu0 %2964, %v855
        %v2966 = vpop.permute.xlu0 %2965
        %2967 = vset.pattern.permute.xlu0 5
        %2968 = vperm.xlu0 %2967, %v856
        %v2969 = vpop.permute.xlu0 %2968
        %2970 = vset.pattern.permute.xlu0 5
        %2971 = vperm.xlu0 %2970, %v857
        %v2972 = vpop.permute.xlu0 %2971
        %2973 = vset.pattern.permute.xlu0 5
        %2974 = vperm.xlu0 %2973, %v858
        %v2975 = vpop.permute.xlu0 %2974
        %2976 = vset.pattern.permute.xlu0 5
        %2977 = vperm.xlu0 %2976, %v859
        %v2978 = vpop.permute.xlu0 %2977
        %2979 = vset.pattern.permute.xlu0 5
        %2980 = vperm.xlu0 %2979, %v860
        %v2981 = vpop.permute.xlu0 %2980
        %2982 = vset.pattern.permute.xlu0 5
        %2983 = vperm.xlu0 %2982, %v861
        %v2984 = vpop.permute.xlu0 %2983
        %2985 = vset.pattern.permute.xlu0 5
        %2986 = vperm.xlu0 %2985, %v862
        %v2987 = vpop.permute.xlu0 %2986
        %2988 = vset.pattern.permute.xlu0 5
        %2989 = vperm.xlu0 %2988, %v863
        %v2990 = vpop.permute.xlu0 %2989
        %2991 = vset.pattern.permute.xlu0 5
        %2992 = vperm.xlu0 %2991, %v864
        %v2993 = vpop.permute.xlu0 %2992
        %2994 = vset.pattern.permute.xlu0 5
        %2995 = vperm.xlu0 %2994, %v865
        %v2996 = vpop.permute.xlu0 %2995
        %2997 = vset.pattern.permute.xlu0 5
        %2998 = vperm.xlu0 %2997, %v866
        %v2999 = vpop.permute.xlu0 %2998
        %3000 = vset.pattern.permute.xlu0 5
        %3001 = vperm.xlu0 %3000, %v867
        %v3002 = vpop.permute.xlu0 %3001
        %3003 = vset.pattern.permute.xlu0 5
        %3004 = vperm.xlu0 %3003, %v868
        %v3005 = vpop.permute.xlu0 %3004
        %vm3006 = vcmp.eq.s32.totalorder %v2816, 1
        %vm3007 = vcmp.eq.s32.totalorder %v2819, 1
        %vm3008 = vcmp.eq.s32.totalorder %v2822, 1
        %vm3009 = vcmp.eq.s32.totalorder %v2825, 1
        %vm3010 = vcmp.eq.s32.totalorder %v2828, 1
        %vm3011 = vcmp.eq.s32.totalorder %v2831, 1
        %vm3012 = vcmp.eq.s32.totalorder %v2834, 1
        %vm3013 = vcmp.eq.s32.totalorder %v2837, 1
        %vm3014 = vcmp.eq.s32.totalorder %v2840, 1
        %vm3015 = vcmp.eq.s32.totalorder %v2843, 1
        %vm3016 = vcmp.eq.s32.totalorder %v2846, 1
        %vm3017 = vcmp.eq.s32.totalorder %v2849, 1
        %vm3018 = vcmp.eq.s32.totalorder %v2852, 1
        %vm3019 = vcmp.eq.s32.totalorder %v2855, 1
        %vm3020 = vcmp.eq.s32.totalorder %v2858, 1
        %vm3021 = vcmp.eq.s32.totalorder %v2861, 1
        %vm3022 = vcmp.eq.s32.totalorder %v2864, 1
        %vm3023 = vcmp.eq.s32.totalorder %v2867, 1
        %vm3024 = vcmp.eq.s32.totalorder %v2870, 1
        %vm3025 = vcmp.eq.s32.totalorder %v2873, 1
        %vm3026 = vcmp.eq.s32.totalorder %v2876, 1
        %vm3027 = vcmp.eq.s32.totalorder %v2879, 1
        %vm3028 = vcmp.eq.s32.totalorder %v2882, 1
        %vm3029 = vcmp.eq.s32.totalorder %v2885, 1
        %vm3030 = vcmp.eq.s32.totalorder %v2888, 1
        %vm3031 = vcmp.eq.s32.totalorder %v2891, 1
        %vm3032 = vcmp.eq.s32.totalorder %v2894, 1
        %vm3033 = vcmp.eq.s32.totalorder %v2897, 1
        %vm3034 = vcmp.eq.s32.totalorder %v2900, 1
        %vm3035 = vcmp.eq.s32.totalorder %v2903, 1
        %vm3036 = vcmp.eq.s32.totalorder %v2906, 1
        %vm3037 = vcmp.eq.s32.totalorder %v2909, 1
        %vm3038 = vcmp.eq.s32.totalorder %v2912, 1
        %vm3039 = vcmp.eq.s32.totalorder %v2915, 1
        %vm3040 = vcmp.eq.s32.totalorder %v2918, 1
        %vm3041 = vcmp.eq.s32.totalorder %v2921, 1
        %vm3042 = vcmp.eq.s32.totalorder %v2924, 1
        %vm3043 = vcmp.eq.s32.totalorder %v2927, 1
        %vm3044 = vcmp.eq.s32.totalorder %v2930, 1
        %vm3045 = vcmp.eq.s32.totalorder %v2933, 1
        %vm3046 = vcmp.eq.s32.totalorder %v2936, 1
        %vm3047 = vcmp.eq.s32.totalorder %v2939, 1
        %vm3048 = vcmp.eq.s32.totalorder %v2942, 1
        %vm3049 = vcmp.eq.s32.totalorder %v2945, 1
        %vm3050 = vcmp.eq.s32.totalorder %v2948, 1
        %vm3051 = vcmp.eq.s32.totalorder %v2951, 1
        %vm3052 = vcmp.eq.s32.totalorder %v2954, 1
        %vm3053 = vcmp.eq.s32.totalorder %v2957, 1
        %vm3054 = vcmp.eq.s32.totalorder %v2960, 1
        %vm3055 = vcmp.eq.s32.totalorder %v2963, 1
        %vm3056 = vcmp.eq.s32.totalorder %v2966, 1
        %vm3057 = vcmp.eq.s32.totalorder %v2969, 1
        %vm3058 = vcmp.eq.s32.totalorder %v2972, 1
        %vm3059 = vcmp.eq.s32.totalorder %v2975, 1
        %vm3060 = vcmp.eq.s32.totalorder %v2978, 1
        %vm3061 = vcmp.eq.s32.totalorder %v2981, 1
        %vm3062 = vcmp.eq.s32.totalorder %v2984, 1
        %vm3063 = vcmp.eq.s32.totalorder %v2987, 1
        %vm3064 = vcmp.eq.s32.totalorder %v2990, 1
        %vm3065 = vcmp.eq.s32.totalorder %v2993, 1
        %vm3066 = vcmp.eq.s32.totalorder %v2996, 1
        %vm3067 = vcmp.eq.s32.totalorder %v2999, 1
        %vm3068 = vcmp.eq.s32.totalorder %v3002, 1
        %vm3069 = vcmp.eq.s32.totalorder %v3005, 1
        %v3070 = vsel %vm3006, %v232, -inf
        %v3071 = vsel %vm3007, %v233, -inf
        %v3072 = vsel %vm3008, %v234, -inf
        %v3073 = vsel %vm3009, %v235, -inf
        %v3074 = vsel %vm3010, %v236, -inf
        %v3075 = vsel %vm3011, %v237, -inf
        %v3076 = vsel %vm3012, %v238, -inf
        %v3077 = vsel %vm3013, %v239, -inf
        %v3078 = vsel %vm3014, %v240, -inf
        %v3079 = vsel %vm3015, %v241, -inf
        %v3080 = vsel %vm3016, %v242, -inf
        %v3081 = vsel %vm3017, %v243, -inf
        %v3082 = vsel %vm3018, %v244, -inf
        %v3083 = vsel %vm3019, %v245, -inf
        %v3084 = vsel %vm3020, %v246, -inf
        %v3085 = vsel %vm3021, %v247, -inf
        %v3086 = vsel %vm3022, %v248, -inf
        %v3087 = vsel %vm3023, %v249, -inf
        %v3088 = vsel %vm3024, %v250, -inf
        %v3089 = vsel %vm3025, %v251, -inf
        %v3090 = vsel %vm3026, %v252, -inf
        %v3091 = vsel %vm3027, %v253, -inf
        %v3092 = vsel %vm3028, %v254, -inf
        %v3093 = vsel %vm3029, %v255, -inf
        %v3094 = vsel %vm3030, %v256, -inf
        %v3095 = vsel %vm3031, %v257, -inf
        %v3096 = vsel %vm3032, %v258, -inf
        %v3097 = vsel %vm3033, %v259, -inf
        %v3098 = vsel %vm3034, %v260, -inf
        %v3099 = vsel %vm3035, %v261, -inf
        %v3100 = vsel %vm3036, %v262, -inf
        %v3101 = vsel %vm3037, %v263, -inf
        %v3102 = vsel %vm3038, %v264, -inf
        %v3103 = vsel %vm3039, %v265, -inf
        %v3104 = vsel %vm3040, %v266, -inf
        %v3105 = vsel %vm3041, %v267, -inf
        %v3106 = vsel %vm3042, %v268, -inf
        %v3107 = vsel %vm3043, %v269, -inf
        %v3108 = vsel %vm3044, %v270, -inf
        %v3109 = vsel %vm3045, %v271, -inf
        %v3110 = vsel %vm3046, %v272, -inf
        %v3111 = vsel %vm3047, %v273, -inf
        %v3112 = vsel %vm3048, %v274, -inf
        %v3113 = vsel %vm3049, %v275, -inf
        %v3114 = vsel %vm3050, %v276, -inf
        %v3115 = vsel %vm3051, %v277, -inf
        %v3116 = vsel %vm3052, %v278, -inf
        %v3117 = vsel %vm3053, %v279, -inf
        %v3118 = vsel %vm3054, %v280, -inf
        %v3119 = vsel %vm3055, %v281, -inf
        %v3120 = vsel %vm3056, %v282, -inf
        %v3121 = vsel %vm3057, %v283, -inf
        %v3122 = vsel %vm3058, %v284, -inf
        %v3123 = vsel %vm3059, %v285, -inf
        %v3124 = vsel %vm3060, %v286, -inf
        %v3125 = vsel %vm3061, %v287, -inf
        %v3126 = vsel %vm3062, %v288, -inf
        %v3127 = vsel %vm3063, %v289, -inf
        %v3128 = vsel %vm3064, %v290, -inf
        %v3129 = vsel %vm3065, %v291, -inf
        %v3130 = vsel %vm3066, %v292, -inf
        %v3131 = vsel %vm3067, %v293, -inf
        %v3132 = vsel %vm3068, %v294, -inf
        %v3133 = vsel %vm3069, %v295, -inf
        %v3134 = vmax.f32 %v3070, %v3074
        %v3135 = vmax.f32 %v3071, %v3075
        %v3136 = vmax.f32 %v3072, %v3076
        %v3137 = vmax.f32 %v3073, %v3077
        %v3138 = vmax.f32 %v3134, %v3078
        %v3139 = vmax.f32 %v3135, %v3079
        %v3140 = vmax.f32 %v3136, %v3080
        %v3141 = vmax.f32 %v3137, %v3081
        %v3142 = vmax.f32 %v3138, %v3082
        %v3143 = vmax.f32 %v3139, %v3083
        %v3144 = vmax.f32 %v3140, %v3084
        %v3145 = vmax.f32 %v3141, %v3085
        %v3146 = vmax.f32 %v3142, %v3086
        %v3147 = vmax.f32 %v3143, %v3087
        %v3148 = vmax.f32 %v3144, %v3088
        %v3149 = vmax.f32 %v3145, %v3089
        %v3150 = vmax.f32 %v3146, %v3090
        %v3151 = vmax.f32 %v3147, %v3091
        %v3152 = vmax.f32 %v3148, %v3092
        %v3153 = vmax.f32 %v3149, %v3093
        %v3154 = vmax.f32 %v3150, %v3094
        %v3155 = vmax.f32 %v3151, %v3095
        %v3156 = vmax.f32 %v3152, %v3096
        %v3157 = vmax.f32 %v3153, %v3097
        %v3158 = vmax.f32 %v3154, %v3098
        %v3159 = vmax.f32 %v3155, %v3099
        %v3160 = vmax.f32 %v3156, %v3100
        %v3161 = vmax.f32 %v3157, %v3101
        %v3162 = vmax.f32 %v3158, %v3102
        %v3163 = vmax.f32 %v3159, %v3103
        %v3164 = vmax.f32 %v3160, %v3104
        %v3165 = vmax.f32 %v3161, %v3105
        %v3166 = vmax.f32 %v3162, %v3106
        %v3167 = vmax.f32 %v3163, %v3107
        %v3168 = vmax.f32 %v3164, %v3108
        %v3169 = vmax.f32 %v3165, %v3109
        %v3170 = vmax.f32 %v3166, %v3110
        %v3171 = vmax.f32 %v3167, %v3111
        %v3172 = vmax.f32 %v3168, %v3112
        %v3173 = vmax.f32 %v3169, %v3113
        %v3174 = vmax.f32 %v3170, %v3114
        %v3175 = vmax.f32 %v3171, %v3115
        %v3176 = vmax.f32 %v3172, %v3116
        %v3177 = vmax.f32 %v3173, %v3117
        %v3178 = vmax.f32 %v3174, %v3118
        %v3179 = vmax.f32 %v3175, %v3119
        %v3180 = vmax.f32 %v3176, %v3120
        %v3181 = vmax.f32 %v3177, %v3121
        %v3182 = vmax.f32 %v3178, %v3122
        %v3183 = vmax.f32 %v3179, %v3123
        %v3184 = vmax.f32 %v3180, %v3124
        %v3185 = vmax.f32 %v3181, %v3125
        %v3186 = vmax.f32 %v3182, %v3126
        %v3187 = vmax.f32 %v3183, %v3127
        %v3188 = vmax.f32 %v3184, %v3128
        %v3189 = vmax.f32 %v3185, %v3129
        %v3190 = vmax.f32 %v3186, %v3130
        %v3191 = vmax.f32 %v3187, %v3131
        %v3192 = vmax.f32 %v3188, %v3132
        %v3193 = vmax.f32 %v3189, %v3133
        %v3194 = vmax.f32 %v3190, %v3191
        %v3195 = vmax.f32 %v3192, %v3193
        %v3196 = vmax.f32 %v3194, %v3195
        %v3197 = vrot.slane %v3196, 4
        %v3198 = vmax.f32 %v3196, %v3197
        %v3199 = vrot.slane %v3198, 2
        %v3200 = vmax.f32 %v3198, %v3199
        %v3201 = vrot.slane %v3200, 1
        %v3202 = vmax.f32 %v3200, %v3201
        %3203 = vset.pattern.permute.xlu0 6
        %3204 = vperm.xlu0 %3203, %v805
        %v3205 = vpop.permute.xlu0 %3204
        %3206 = vset.pattern.permute.xlu0 6
        %3207 = vperm.xlu0 %3206, %v806
        %v3208 = vpop.permute.xlu0 %3207
        %3209 = vset.pattern.permute.xlu0 6
        %3210 = vperm.xlu0 %3209, %v807
        %v3211 = vpop.permute.xlu0 %3210
        %3212 = vset.pattern.permute.xlu0 6
        %3213 = vperm.xlu0 %3212, %v808
        %v3214 = vpop.permute.xlu0 %3213
        %3215 = vset.pattern.permute.xlu0 6
        %3216 = vperm.xlu0 %3215, %v809
        %v3217 = vpop.permute.xlu0 %3216
        %3218 = vset.pattern.permute.xlu0 6
        %3219 = vperm.xlu0 %3218, %v810
        %v3220 = vpop.permute.xlu0 %3219
        %3221 = vset.pattern.permute.xlu0 6
        %3222 = vperm.xlu0 %3221, %v811
        %v3223 = vpop.permute.xlu0 %3222
        %3224 = vset.pattern.permute.xlu0 6
        %3225 = vperm.xlu0 %3224, %v812
        %v3226 = vpop.permute.xlu0 %3225
        %3227 = vset.pattern.permute.xlu0 6
        %3228 = vperm.xlu0 %3227, %v813
        %v3229 = vpop.permute.xlu0 %3228
        %3230 = vset.pattern.permute.xlu0 6
        %3231 = vperm.xlu0 %3230, %v814
        %v3232 = vpop.permute.xlu0 %3231
        %3233 = vset.pattern.permute.xlu0 6
        %3234 = vperm.xlu0 %3233, %v815
        %v3235 = vpop.permute.xlu0 %3234
        %3236 = vset.pattern.permute.xlu0 6
        %3237 = vperm.xlu0 %3236, %v816
        %v3238 = vpop.permute.xlu0 %3237
        %3239 = vset.pattern.permute.xlu0 6
        %3240 = vperm.xlu0 %3239, %v817
        %v3241 = vpop.permute.xlu0 %3240
        %3242 = vset.pattern.permute.xlu0 6
        %3243 = vperm.xlu0 %3242, %v818
        %v3244 = vpop.permute.xlu0 %3243
        %3245 = vset.pattern.permute.xlu0 6
        %3246 = vperm.xlu0 %3245, %v819
        %v3247 = vpop.permute.xlu0 %3246
        %3248 = vset.pattern.permute.xlu0 6
        %3249 = vperm.xlu0 %3248, %v820
        %v3250 = vpop.permute.xlu0 %3249
        %3251 = vset.pattern.permute.xlu0 6
        %3252 = vperm.xlu0 %3251, %v821
        %v3253 = vpop.permute.xlu0 %3252
        %3254 = vset.pattern.permute.xlu0 6
        %3255 = vperm.xlu0 %3254, %v822
        %v3256 = vpop.permute.xlu0 %3255
        %3257 = vset.pattern.permute.xlu0 6
        %3258 = vperm.xlu0 %3257, %v823
        %v3259 = vpop.permute.xlu0 %3258
        %3260 = vset.pattern.permute.xlu0 6
        %3261 = vperm.xlu0 %3260, %v824
        %v3262 = vpop.permute.xlu0 %3261
        %3263 = vset.pattern.permute.xlu0 6
        %3264 = vperm.xlu0 %3263, %v825
        %v3265 = vpop.permute.xlu0 %3264
        %3266 = vset.pattern.permute.xlu0 6
        %3267 = vperm.xlu0 %3266, %v826
        %v3268 = vpop.permute.xlu0 %3267
        %3269 = vset.pattern.permute.xlu0 6
        %3270 = vperm.xlu0 %3269, %v827
        %v3271 = vpop.permute.xlu0 %3270
        %3272 = vset.pattern.permute.xlu0 6
        %3273 = vperm.xlu0 %3272, %v828
        %v3274 = vpop.permute.xlu0 %3273
        %3275 = vset.pattern.permute.xlu0 6
        %3276 = vperm.xlu0 %3275, %v829
        %v3277 = vpop.permute.xlu0 %3276
        %3278 = vset.pattern.permute.xlu0 6
        %3279 = vperm.xlu0 %3278, %v830
        %v3280 = vpop.permute.xlu0 %3279
        %3281 = vset.pattern.permute.xlu0 6
        %3282 = vperm.xlu0 %3281, %v831
        %v3283 = vpop.permute.xlu0 %3282
        %3284 = vset.pattern.permute.xlu0 6
        %3285 = vperm.xlu0 %3284, %v832
        %v3286 = vpop.permute.xlu0 %3285
        %3287 = vset.pattern.permute.xlu0 6
        %3288 = vperm.xlu0 %3287, %v833
        %v3289 = vpop.permute.xlu0 %3288
        %3290 = vset.pattern.permute.xlu0 6
        %3291 = vperm.xlu0 %3290, %v834
        %v3292 = vpop.permute.xlu0 %3291
        %3293 = vset.pattern.permute.xlu0 6
        %3294 = vperm.xlu0 %3293, %v835
        %v3295 = vpop.permute.xlu0 %3294
        %3296 = vset.pattern.permute.xlu0 6
        %3297 = vperm.xlu0 %3296, %v836
        %v3298 = vpop.permute.xlu0 %3297
        %3299 = vset.pattern.permute.xlu0 6
        %3300 = vperm.xlu0 %3299, %v837
        %v3301 = vpop.permute.xlu0 %3300
        %3302 = vset.pattern.permute.xlu0 6
        %3303 = vperm.xlu0 %3302, %v838
        %v3304 = vpop.permute.xlu0 %3303
        %3305 = vset.pattern.permute.xlu0 6
        %3306 = vperm.xlu0 %3305, %v839
        %v3307 = vpop.permute.xlu0 %3306
        %3308 = vset.pattern.permute.xlu0 6
        %3309 = vperm.xlu0 %3308, %v840
        %v3310 = vpop.permute.xlu0 %3309
        %3311 = vset.pattern.permute.xlu0 6
        %3312 = vperm.xlu0 %3311, %v841
        %v3313 = vpop.permute.xlu0 %3312
        %3314 = vset.pattern.permute.xlu0 6
        %3315 = vperm.xlu0 %3314, %v842
        %v3316 = vpop.permute.xlu0 %3315
        %3317 = vset.pattern.permute.xlu0 6
        %3318 = vperm.xlu0 %3317, %v843
        %v3319 = vpop.permute.xlu0 %3318
        %3320 = vset.pattern.permute.xlu0 6
        %3321 = vperm.xlu0 %3320, %v844
        %v3322 = vpop.permute.xlu0 %3321
        %3323 = vset.pattern.permute.xlu0 6
        %3324 = vperm.xlu0 %3323, %v845
        %v3325 = vpop.permute.xlu0 %3324
        %3326 = vset.pattern.permute.xlu0 6
        %3327 = vperm.xlu0 %3326, %v846
        %v3328 = vpop.permute.xlu0 %3327
        %3329 = vset.pattern.permute.xlu0 6
        %3330 = vperm.xlu0 %3329, %v847
        %v3331 = vpop.permute.xlu0 %3330
        %3332 = vset.pattern.permute.xlu0 6
        %3333 = vperm.xlu0 %3332, %v848
        %v3334 = vpop.permute.xlu0 %3333
        %3335 = vset.pattern.permute.xlu0 6
        %3336 = vperm.xlu0 %3335, %v849
        %v3337 = vpop.permute.xlu0 %3336
        %3338 = vset.pattern.permute.xlu0 6
        %3339 = vperm.xlu0 %3338, %v850
        %v3340 = vpop.permute.xlu0 %3339
        %3341 = vset.pattern.permute.xlu0 6
        %3342 = vperm.xlu0 %3341, %v851
        %v3343 = vpop.permute.xlu0 %3342
        %3344 = vset.pattern.permute.xlu0 6
        %3345 = vperm.xlu0 %3344, %v852
        %v3346 = vpop.permute.xlu0 %3345
        %3347 = vset.pattern.permute.xlu0 6
        %3348 = vperm.xlu0 %3347, %v853
        %v3349 = vpop.permute.xlu0 %3348
        %3350 = vset.pattern.permute.xlu0 6
        %3351 = vperm.xlu0 %3350, %v854
        %v3352 = vpop.permute.xlu0 %3351
        %3353 = vset.pattern.permute.xlu0 6
        %3354 = vperm.xlu0 %3353, %v855
        %v3355 = vpop.permute.xlu0 %3354
        %3356 = vset.pattern.permute.xlu0 6
        %3357 = vperm.xlu0 %3356, %v856
        %v3358 = vpop.permute.xlu0 %3357
        %3359 = vset.pattern.permute.xlu0 6
        %3360 = vperm.xlu0 %3359, %v857
        %v3361 = vpop.permute.xlu0 %3360
        %3362 = vset.pattern.permute.xlu0 6
        %3363 = vperm.xlu0 %3362, %v858
        %v3364 = vpop.permute.xlu0 %3363
        %3365 = vset.pattern.permute.xlu0 6
        %3366 = vperm.xlu0 %3365, %v859
        %v3367 = vpop.permute.xlu0 %3366
        %3368 = vset.pattern.permute.xlu0 6
        %3369 = vperm.xlu0 %3368, %v860
        %v3370 = vpop.permute.xlu0 %3369
        %3371 = vset.pattern.permute.xlu0 6
        %3372 = vperm.xlu0 %3371, %v861
        %v3373 = vpop.permute.xlu0 %3372
        %3374 = vset.pattern.permute.xlu0 6
        %3375 = vperm.xlu0 %3374, %v862
        %v3376 = vpop.permute.xlu0 %3375
        %3377 = vset.pattern.permute.xlu0 6
        %3378 = vperm.xlu0 %3377, %v863
        %v3379 = vpop.permute.xlu0 %3378
        %3380 = vset.pattern.permute.xlu0 6
        %3381 = vperm.xlu0 %3380, %v864
        %v3382 = vpop.permute.xlu0 %3381
        %3383 = vset.pattern.permute.xlu0 6
        %3384 = vperm.xlu0 %3383, %v865
        %v3385 = vpop.permute.xlu0 %3384
        %3386 = vset.pattern.permute.xlu0 6
        %3387 = vperm.xlu0 %3386, %v866
        %v3388 = vpop.permute.xlu0 %3387
        %3389 = vset.pattern.permute.xlu0 6
        %3390 = vperm.xlu0 %3389, %v867
        %v3391 = vpop.permute.xlu0 %3390
        %3392 = vset.pattern.permute.xlu0 6
        %3393 = vperm.xlu0 %3392, %v868
        %v3394 = vpop.permute.xlu0 %3393
        %vm3395 = vcmp.eq.s32.totalorder %v3205, 1
        %vm3396 = vcmp.eq.s32.totalorder %v3208, 1
        %vm3397 = vcmp.eq.s32.totalorder %v3211, 1
        %vm3398 = vcmp.eq.s32.totalorder %v3214, 1
        %vm3399 = vcmp.eq.s32.totalorder %v3217, 1
        %vm3400 = vcmp.eq.s32.totalorder %v3220, 1
        %vm3401 = vcmp.eq.s32.totalorder %v3223, 1
        %vm3402 = vcmp.eq.s32.totalorder %v3226, 1
        %vm3403 = vcmp.eq.s32.totalorder %v3229, 1
        %vm3404 = vcmp.eq.s32.totalorder %v3232, 1
        %vm3405 = vcmp.eq.s32.totalorder %v3235, 1
        %vm3406 = vcmp.eq.s32.totalorder %v3238, 1
        %vm3407 = vcmp.eq.s32.totalorder %v3241, 1
        %vm3408 = vcmp.eq.s32.totalorder %v3244, 1
        %vm3409 = vcmp.eq.s32.totalorder %v3247, 1
        %vm3410 = vcmp.eq.s32.totalorder %v3250, 1
        %vm3411 = vcmp.eq.s32.totalorder %v3253, 1
        %vm3412 = vcmp.eq.s32.totalorder %v3256, 1
        %vm3413 = vcmp.eq.s32.totalorder %v3259, 1
        %vm3414 = vcmp.eq.s32.totalorder %v3262, 1
        %vm3415 = vcmp.eq.s32.totalorder %v3265, 1
        %vm3416 = vcmp.eq.s32.totalorder %v3268, 1
        %vm3417 = vcmp.eq.s32.totalorder %v3271, 1
        %vm3418 = vcmp.eq.s32.totalorder %v3274, 1
        %vm3419 = vcmp.eq.s32.totalorder %v3277, 1
        %vm3420 = vcmp.eq.s32.totalorder %v3280, 1
        %vm3421 = vcmp.eq.s32.totalorder %v3283, 1
        %vm3422 = vcmp.eq.s32.totalorder %v3286, 1
        %vm3423 = vcmp.eq.s32.totalorder %v3289, 1
        %vm3424 = vcmp.eq.s32.totalorder %v3292, 1
        %vm3425 = vcmp.eq.s32.totalorder %v3295, 1
        %vm3426 = vcmp.eq.s32.totalorder %v3298, 1
        %vm3427 = vcmp.eq.s32.totalorder %v3301, 1
        %vm3428 = vcmp.eq.s32.totalorder %v3304, 1
        %vm3429 = vcmp.eq.s32.totalorder %v3307, 1
        %vm3430 = vcmp.eq.s32.totalorder %v3310, 1
        %vm3431 = vcmp.eq.s32.totalorder %v3313, 1
        %vm3432 = vcmp.eq.s32.totalorder %v3316, 1
        %vm3433 = vcmp.eq.s32.totalorder %v3319, 1
        %vm3434 = vcmp.eq.s32.totalorder %v3322, 1
        %vm3435 = vcmp.eq.s32.totalorder %v3325, 1
        %vm3436 = vcmp.eq.s32.totalorder %v3328, 1
        %vm3437 = vcmp.eq.s32.totalorder %v3331, 1
        %vm3438 = vcmp.eq.s32.totalorder %v3334, 1
        %vm3439 = vcmp.eq.s32.totalorder %v3337, 1
        %vm3440 = vcmp.eq.s32.totalorder %v3340, 1
        %vm3441 = vcmp.eq.s32.totalorder %v3343, 1
        %vm3442 = vcmp.eq.s32.totalorder %v3346, 1
        %vm3443 = vcmp.eq.s32.totalorder %v3349, 1
        %vm3444 = vcmp.eq.s32.totalorder %v3352, 1
        %vm3445 = vcmp.eq.s32.totalorder %v3355, 1
        %vm3446 = vcmp.eq.s32.totalorder %v3358, 1
        %vm3447 = vcmp.eq.s32.totalorder %v3361, 1
        %vm3448 = vcmp.eq.s32.totalorder %v3364, 1
        %vm3449 = vcmp.eq.s32.totalorder %v3367, 1
        %vm3450 = vcmp.eq.s32.totalorder %v3370, 1
        %vm3451 = vcmp.eq.s32.totalorder %v3373, 1
        %vm3452 = vcmp.eq.s32.totalorder %v3376, 1
        %vm3453 = vcmp.eq.s32.totalorder %v3379, 1
        %vm3454 = vcmp.eq.s32.totalorder %v3382, 1
        %vm3455 = vcmp.eq.s32.totalorder %v3385, 1
        %vm3456 = vcmp.eq.s32.totalorder %v3388, 1
        %vm3457 = vcmp.eq.s32.totalorder %v3391, 1
        %vm3458 = vcmp.eq.s32.totalorder %v3394, 1
        %v3459 = vsel %vm3395, %v232, -inf
        %v3460 = vsel %vm3396, %v233, -inf
        %v3461 = vsel %vm3397, %v234, -inf
        %v3462 = vsel %vm3398, %v235, -inf
        %v3463 = vsel %vm3399, %v236, -inf
        %v3464 = vsel %vm3400, %v237, -inf
        %v3465 = vsel %vm3401, %v238, -inf
        %v3466 = vsel %vm3402, %v239, -inf
        %v3467 = vsel %vm3403, %v240, -inf
        %v3468 = vsel %vm3404, %v241, -inf
        %v3469 = vsel %vm3405, %v242, -inf
        %v3470 = vsel %vm3406, %v243, -inf
        %v3471 = vsel %vm3407, %v244, -inf
        %v3472 = vsel %vm3408, %v245, -inf
        %v3473 = vsel %vm3409, %v246, -inf
        %v3474 = vsel %vm3410, %v247, -inf
        %v3475 = vsel %vm3411, %v248, -inf
        %v3476 = vsel %vm3412, %v249, -inf
        %v3477 = vsel %vm3413, %v250, -inf
        %v3478 = vsel %vm3414, %v251, -inf
        %v3479 = vsel %vm3415, %v252, -inf
        %v3480 = vsel %vm3416, %v253, -inf
        %v3481 = vsel %vm3417, %v254, -inf
        %v3482 = vsel %vm3418, %v255, -inf
        %v3483 = vsel %vm3419, %v256, -inf
        %v3484 = vsel %vm3420, %v257, -inf
        %v3485 = vsel %vm3421, %v258, -inf
        %v3486 = vsel %vm3422, %v259, -inf
        %v3487 = vsel %vm3423, %v260, -inf
        %v3488 = vsel %vm3424, %v261, -inf
        %v3489 = vsel %vm3425, %v262, -inf
        %v3490 = vsel %vm3426, %v263, -inf
        %v3491 = vsel %vm3427, %v264, -inf
        %v3492 = vsel %vm3428, %v265, -inf
        %v3493 = vsel %vm3429, %v266, -inf
        %v3494 = vsel %vm3430, %v267, -inf
        %v3495 = vsel %vm3431, %v268, -inf
        %v3496 = vsel %vm3432, %v269, -inf
        %v3497 = vsel %vm3433, %v270, -inf
        %v3498 = vsel %vm3434, %v271, -inf
        %v3499 = vsel %vm3435, %v272, -inf
        %v3500 = vsel %vm3436, %v273, -inf
        %v3501 = vsel %vm3437, %v274, -inf
        %v3502 = vsel %vm3438, %v275, -inf
        %v3503 = vsel %vm3439, %v276, -inf
        %v3504 = vsel %vm3440, %v277, -inf
        %v3505 = vsel %vm3441, %v278, -inf
        %v3506 = vsel %vm3442, %v279, -inf
        %v3507 = vsel %vm3443, %v280, -inf
        %v3508 = vsel %vm3444, %v281, -inf
        %v3509 = vsel %vm3445, %v282, -inf
        %v3510 = vsel %vm3446, %v283, -inf
        %v3511 = vsel %vm3447, %v284, -inf
        %v3512 = vsel %vm3448, %v285, -inf
        %v3513 = vsel %vm3449, %v286, -inf
        %v3514 = vsel %vm3450, %v287, -inf
        %v3515 = vsel %vm3451, %v288, -inf
        %v3516 = vsel %vm3452, %v289, -inf
        %v3517 = vsel %vm3453, %v290, -inf
        %v3518 = vsel %vm3454, %v291, -inf
        %v3519 = vsel %vm3455, %v292, -inf
        %v3520 = vsel %vm3456, %v293, -inf
        %v3521 = vsel %vm3457, %v294, -inf
        %v3522 = vsel %vm3458, %v295, -inf
        %v3523 = vmax.f32 %v3459, %v3463
        %v3524 = vmax.f32 %v3460, %v3464
        %v3525 = vmax.f32 %v3461, %v3465
        %v3526 = vmax.f32 %v3462, %v3466
        %v3527 = vmax.f32 %v3523, %v3467
        %v3528 = vmax.f32 %v3524, %v3468
        %v3529 = vmax.f32 %v3525, %v3469
        %v3530 = vmax.f32 %v3526, %v3470
        %v3531 = vmax.f32 %v3527, %v3471
        %v3532 = vmax.f32 %v3528, %v3472
        %v3533 = vmax.f32 %v3529, %v3473
        %v3534 = vmax.f32 %v3530, %v3474
        %v3535 = vmax.f32 %v3531, %v3475
        %v3536 = vmax.f32 %v3532, %v3476
        %v3537 = vmax.f32 %v3533, %v3477
        %v3538 = vmax.f32 %v3534, %v3478
        %v3539 = vmax.f32 %v3535, %v3479
        %v3540 = vmax.f32 %v3536, %v3480
        %v3541 = vmax.f32 %v3537, %v3481
        %v3542 = vmax.f32 %v3538, %v3482
        %v3543 = vmax.f32 %v3539, %v3483
        %v3544 = vmax.f32 %v3540, %v3484
        %v3545 = vmax.f32 %v3541, %v3485
        %v3546 = vmax.f32 %v3542, %v3486
        %v3547 = vmax.f32 %v3543, %v3487
        %v3548 = vmax.f32 %v3544, %v3488
        %v3549 = vmax.f32 %v3545, %v3489
        %v3550 = vmax.f32 %v3546, %v3490
        %v3551 = vmax.f32 %v3547, %v3491
        %v3552 = vmax.f32 %v3548, %v3492
        %v3553 = vmax.f32 %v3549, %v3493
        %v3554 = vmax.f32 %v3550, %v3494
        %v3555 = vmax.f32 %v3551, %v3495
        %v3556 = vmax.f32 %v3552, %v3496
        %v3557 = vmax.f32 %v3553, %v3497
        %v3558 = vmax.f32 %v3554, %v3498
        %v3559 = vmax.f32 %v3555, %v3499
        %v3560 = vmax.f32 %v3556, %v3500
        %v3561 = vmax.f32 %v3557, %v3501
        %v3562 = vmax.f32 %v3558, %v3502
        %v3563 = vmax.f32 %v3559, %v3503
        %v3564 = vmax.f32 %v3560, %v3504
        %v3565 = vmax.f32 %v3561, %v3505
        %v3566 = vmax.f32 %v3562, %v3506
        %v3567 = vmax.f32 %v3563, %v3507
        %v3568 = vmax.f32 %v3564, %v3508
        %v3569 = vmax.f32 %v3565, %v3509
        %v3570 = vmax.f32 %v3566, %v3510
        %v3571 = vmax.f32 %v3567, %v3511
        %v3572 = vmax.f32 %v3568, %v3512
        %v3573 = vmax.f32 %v3569, %v3513
        %v3574 = vmax.f32 %v3570, %v3514
        %v3575 = vmax.f32 %v3571, %v3515
        %v3576 = vmax.f32 %v3572, %v3516
        %v3577 = vmax.f32 %v3573, %v3517
        %v3578 = vmax.f32 %v3574, %v3518
        %v3579 = vmax.f32 %v3575, %v3519
        %v3580 = vmax.f32 %v3576, %v3520
        %v3581 = vmax.f32 %v3577, %v3521
        %v3582 = vmax.f32 %v3578, %v3522
        %v3583 = vmax.f32 %v3579, %v3580
        %v3584 = vmax.f32 %v3581, %v3582
        %v3585 = vmax.f32 %v3583, %v3584
        %v3586 = vrot.slane %v3585, 4
        %v3587 = vmax.f32 %v3585, %v3586
        %v3588 = vrot.slane %v3587, 2
        %v3589 = vmax.f32 %v3587, %v3588
        %v3590 = vrot.slane %v3589, 1
        %v3591 = vmax.f32 %v3589, %v3590
        %3592 = vset.pattern.permute.xlu0 7
        %3593 = vperm.xlu0 %3592, %v805
        %v3594 = vpop.permute.xlu0 %3593
        %3595 = vset.pattern.permute.xlu0 7
        %3596 = vperm.xlu0 %3595, %v806
        %v3597 = vpop.permute.xlu0 %3596
        %3598 = vset.pattern.permute.xlu0 7
        %3599 = vperm.xlu0 %3598, %v807
        %v3600 = vpop.permute.xlu0 %3599
        %3601 = vset.pattern.permute.xlu0 7
        %3602 = vperm.xlu0 %3601, %v808
        %v3603 = vpop.permute.xlu0 %3602
        %3604 = vset.pattern.permute.xlu0 7
        %3605 = vperm.xlu0 %3604, %v809
        %v3606 = vpop.permute.xlu0 %3605
        %3607 = vset.pattern.permute.xlu0 7
        %3608 = vperm.xlu0 %3607, %v810
        %v3609 = vpop.permute.xlu0 %3608
        %3610 = vset.pattern.permute.xlu0 7
        %3611 = vperm.xlu0 %3610, %v811
        %v3612 = vpop.permute.xlu0 %3611
        %3613 = vset.pattern.permute.xlu0 7
        %3614 = vperm.xlu0 %3613, %v812
        %v3615 = vpop.permute.xlu0 %3614
        %3616 = vset.pattern.permute.xlu0 7
        %3617 = vperm.xlu0 %3616, %v813
        %v3618 = vpop.permute.xlu0 %3617
        %3619 = vset.pattern.permute.xlu0 7
        %3620 = vperm.xlu0 %3619, %v814
        %v3621 = vpop.permute.xlu0 %3620
        %3622 = vset.pattern.permute.xlu0 7
        %3623 = vperm.xlu0 %3622, %v815
        %v3624 = vpop.permute.xlu0 %3623
        %3625 = vset.pattern.permute.xlu0 7
        %3626 = vperm.xlu0 %3625, %v816
        %v3627 = vpop.permute.xlu0 %3626
        %3628 = vset.pattern.permute.xlu0 7
        %3629 = vperm.xlu0 %3628, %v817
        %v3630 = vpop.permute.xlu0 %3629
        %3631 = vset.pattern.permute.xlu0 7
        %3632 = vperm.xlu0 %3631, %v818
        %v3633 = vpop.permute.xlu0 %3632
        %3634 = vset.pattern.permute.xlu0 7
        %3635 = vperm.xlu0 %3634, %v819
        %v3636 = vpop.permute.xlu0 %3635
        %3637 = vset.pattern.permute.xlu0 7
        %3638 = vperm.xlu0 %3637, %v820
        %v3639 = vpop.permute.xlu0 %3638
        %3640 = vset.pattern.permute.xlu0 7
        %3641 = vperm.xlu0 %3640, %v821
        %v3642 = vpop.permute.xlu0 %3641
        %3643 = vset.pattern.permute.xlu0 7
        %3644 = vperm.xlu0 %3643, %v822
        %v3645 = vpop.permute.xlu0 %3644
        %3646 = vset.pattern.permute.xlu0 7
        %3647 = vperm.xlu0 %3646, %v823
        %v3648 = vpop.permute.xlu0 %3647
        %3649 = vset.pattern.permute.xlu0 7
        %3650 = vperm.xlu0 %3649, %v824
        %v3651 = vpop.permute.xlu0 %3650
        %3652 = vset.pattern.permute.xlu0 7
        %3653 = vperm.xlu0 %3652, %v825
        %v3654 = vpop.permute.xlu0 %3653
        %3655 = vset.pattern.permute.xlu0 7
        %3656 = vperm.xlu0 %3655, %v826
        %v3657 = vpop.permute.xlu0 %3656
        %3658 = vset.pattern.permute.xlu0 7
        %3659 = vperm.xlu0 %3658, %v827
        %v3660 = vpop.permute.xlu0 %3659
        %3661 = vset.pattern.permute.xlu0 7
        %3662 = vperm.xlu0 %3661, %v828
        %v3663 = vpop.permute.xlu0 %3662
        %3664 = vset.pattern.permute.xlu0 7
        %3665 = vperm.xlu0 %3664, %v829
        %v3666 = vpop.permute.xlu0 %3665
        %3667 = vset.pattern.permute.xlu0 7
        %3668 = vperm.xlu0 %3667, %v830
        %v3669 = vpop.permute.xlu0 %3668
        %3670 = vset.pattern.permute.xlu0 7
        %3671 = vperm.xlu0 %3670, %v831
        %v3672 = vpop.permute.xlu0 %3671
        %3673 = vset.pattern.permute.xlu0 7
        %3674 = vperm.xlu0 %3673, %v832
        %v3675 = vpop.permute.xlu0 %3674
        %3676 = vset.pattern.permute.xlu0 7
        %3677 = vperm.xlu0 %3676, %v833
        %v3678 = vpop.permute.xlu0 %3677
        %3679 = vset.pattern.permute.xlu0 7
        %3680 = vperm.xlu0 %3679, %v834
        %v3681 = vpop.permute.xlu0 %3680
        %3682 = vset.pattern.permute.xlu0 7
        %3683 = vperm.xlu0 %3682, %v835
        %v3684 = vpop.permute.xlu0 %3683
        %3685 = vset.pattern.permute.xlu0 7
        %3686 = vperm.xlu0 %3685, %v836
        %v3687 = vpop.permute.xlu0 %3686
        %3688 = vset.pattern.permute.xlu0 7
        %3689 = vperm.xlu0 %3688, %v837
        %v3690 = vpop.permute.xlu0 %3689
        %3691 = vset.pattern.permute.xlu0 7
        %3692 = vperm.xlu0 %3691, %v838
        %v3693 = vpop.permute.xlu0 %3692
        %3694 = vset.pattern.permute.xlu0 7
        %3695 = vperm.xlu0 %3694, %v839
        %v3696 = vpop.permute.xlu0 %3695
        %3697 = vset.pattern.permute.xlu0 7
        %3698 = vperm.xlu0 %3697, %v840
        %v3699 = vpop.permute.xlu0 %3698
        %3700 = vset.pattern.permute.xlu0 7
        %3701 = vperm.xlu0 %3700, %v841
        %v3702 = vpop.permute.xlu0 %3701
        %3703 = vset.pattern.permute.xlu0 7
        %3704 = vperm.xlu0 %3703, %v842
        %v3705 = vpop.permute.xlu0 %3704
        %3706 = vset.pattern.permute.xlu0 7
        %3707 = vperm.xlu0 %3706, %v843
        %v3708 = vpop.permute.xlu0 %3707
        %3709 = vset.pattern.permute.xlu0 7
        %3710 = vperm.xlu0 %3709, %v844
        %v3711 = vpop.permute.xlu0 %3710
        %3712 = vset.pattern.permute.xlu0 7
        %3713 = vperm.xlu0 %3712, %v845
        %v3714 = vpop.permute.xlu0 %3713
        %3715 = vset.pattern.permute.xlu0 7
        %3716 = vperm.xlu0 %3715, %v846
        %v3717 = vpop.permute.xlu0 %3716
        %3718 = vset.pattern.permute.xlu0 7
        %3719 = vperm.xlu0 %3718, %v847
        %v3720 = vpop.permute.xlu0 %3719
        %3721 = vset.pattern.permute.xlu0 7
        %3722 = vperm.xlu0 %3721, %v848
        %v3723 = vpop.permute.xlu0 %3722
        %3724 = vset.pattern.permute.xlu0 7
        %3725 = vperm.xlu0 %3724, %v849
        %v3726 = vpop.permute.xlu0 %3725
        %3727 = vset.pattern.permute.xlu0 7
        %3728 = vperm.xlu0 %3727, %v850
        %v3729 = vpop.permute.xlu0 %3728
        %3730 = vset.pattern.permute.xlu0 7
        %3731 = vperm.xlu0 %3730, %v851
        %v3732 = vpop.permute.xlu0 %3731
        %3733 = vset.pattern.permute.xlu0 7
        %3734 = vperm.xlu0 %3733, %v852
        %v3735 = vpop.permute.xlu0 %3734
        %3736 = vset.pattern.permute.xlu0 7
        %3737 = vperm.xlu0 %3736, %v853
        %v3738 = vpop.permute.xlu0 %3737
        %3739 = vset.pattern.permute.xlu0 7
        %3740 = vperm.xlu0 %3739, %v854
        %v3741 = vpop.permute.xlu0 %3740
        %3742 = vset.pattern.permute.xlu0 7
        %3743 = vperm.xlu0 %3742, %v855
        %v3744 = vpop.permute.xlu0 %3743
        %3745 = vset.pattern.permute.xlu0 7
        %3746 = vperm.xlu0 %3745, %v856
        %v3747 = vpop.permute.xlu0 %3746
        %3748 = vset.pattern.permute.xlu0 7
        %3749 = vperm.xlu0 %3748, %v857
        %v3750 = vpop.permute.xlu0 %3749
        %3751 = vset.pattern.permute.xlu0 7
        %3752 = vperm.xlu0 %3751, %v858
        %v3753 = vpop.permute.xlu0 %3752
        %3754 = vset.pattern.permute.xlu0 7
        %3755 = vperm.xlu0 %3754, %v859
        %v3756 = vpop.permute.xlu0 %3755
        %3757 = vset.pattern.permute.xlu0 7
        %3758 = vperm.xlu0 %3757, %v860
        %v3759 = vpop.permute.xlu0 %3758
        %3760 = vset.pattern.permute.xlu0 7
        %3761 = vperm.xlu0 %3760, %v861
        %v3762 = vpop.permute.xlu0 %3761
        %3763 = vset.pattern.permute.xlu0 7
        %3764 = vperm.xlu0 %3763, %v862
        %v3765 = vpop.permute.xlu0 %3764
        %3766 = vset.pattern.permute.xlu0 7
        %3767 = vperm.xlu0 %3766, %v863
        %v3768 = vpop.permute.xlu0 %3767
        %3769 = vset.pattern.permute.xlu0 7
        %3770 = vperm.xlu0 %3769, %v864
        %v3771 = vpop.permute.xlu0 %3770
        %3772 = vset.pattern.permute.xlu0 7
        %3773 = vperm.xlu0 %3772, %v865
        %v3774 = vpop.permute.xlu0 %3773
        %3775 = vset.pattern.permute.xlu0 7
        %3776 = vperm.xlu0 %3775, %v866
        %v3777 = vpop.permute.xlu0 %3776
        %3778 = vset.pattern.permute.xlu0 7
        %3779 = vperm.xlu0 %3778, %v867
        %v3780 = vpop.permute.xlu0 %3779
        %3781 = vset.pattern.permute.xlu0 7
        %3782 = vperm.xlu0 %3781, %v868
        %v3783 = vpop.permute.xlu0 %3782
        %vm3784 = vcmp.eq.s32.totalorder %v3594, 1
        %vm3785 = vcmp.eq.s32.totalorder %v3597, 1
        %vm3786 = vcmp.eq.s32.totalorder %v3600, 1
        %vm3787 = vcmp.eq.s32.totalorder %v3603, 1
        %vm3788 = vcmp.eq.s32.totalorder %v3606, 1
        %vm3789 = vcmp.eq.s32.totalorder %v3609, 1
        %vm3790 = vcmp.eq.s32.totalorder %v3612, 1
        %vm3791 = vcmp.eq.s32.totalorder %v3615, 1
        %vm3792 = vcmp.eq.s32.totalorder %v3618, 1
        %vm3793 = vcmp.eq.s32.totalorder %v3621, 1
        %vm3794 = vcmp.eq.s32.totalorder %v3624, 1
        %vm3795 = vcmp.eq.s32.totalorder %v3627, 1
        %vm3796 = vcmp.eq.s32.totalorder %v3630, 1
        %vm3797 = vcmp.eq.s32.totalorder %v3633, 1
        %vm3798 = vcmp.eq.s32.totalorder %v3636, 1
        %vm3799 = vcmp.eq.s32.totalorder %v3639, 1
        %vm3800 = vcmp.eq.s32.totalorder %v3642, 1
        %vm3801 = vcmp.eq.s32.totalorder %v3645, 1
        %vm3802 = vcmp.eq.s32.totalorder %v3648, 1
        %vm3803 = vcmp.eq.s32.totalorder %v3651, 1
        %vm3804 = vcmp.eq.s32.totalorder %v3654, 1
        %vm3805 = vcmp.eq.s32.totalorder %v3657, 1
        %vm3806 = vcmp.eq.s32.totalorder %v3660, 1
        %vm3807 = vcmp.eq.s32.totalorder %v3663, 1
        %vm3808 = vcmp.eq.s32.totalorder %v3666, 1
        %vm3809 = vcmp.eq.s32.totalorder %v3669, 1
        %vm3810 = vcmp.eq.s32.totalorder %v3672, 1
        %vm3811 = vcmp.eq.s32.totalorder %v3675, 1
        %vm3812 = vcmp.eq.s32.totalorder %v3678, 1
        %vm3813 = vcmp.eq.s32.totalorder %v3681, 1
        %vm3814 = vcmp.eq.s32.totalorder %v3684, 1
        %vm3815 = vcmp.eq.s32.totalorder %v3687, 1
        %vm3816 = vcmp.eq.s32.totalorder %v3690, 1
        %vm3817 = vcmp.eq.s32.totalorder %v3693, 1
        %vm3818 = vcmp.eq.s32.totalorder %v3696, 1
        %vm3819 = vcmp.eq.s32.totalorder %v3699, 1
        %vm3820 = vcmp.eq.s32.totalorder %v3702, 1
        %vm3821 = vcmp.eq.s32.totalorder %v3705, 1
        %vm3822 = vcmp.eq.s32.totalorder %v3708, 1
        %vm3823 = vcmp.eq.s32.totalorder %v3711, 1
        %vm3824 = vcmp.eq.s32.totalorder %v3714, 1
        %vm3825 = vcmp.eq.s32.totalorder %v3717, 1
        %vm3826 = vcmp.eq.s32.totalorder %v3720, 1
        %vm3827 = vcmp.eq.s32.totalorder %v3723, 1
        %vm3828 = vcmp.eq.s32.totalorder %v3726, 1
        %vm3829 = vcmp.eq.s32.totalorder %v3729, 1
        %vm3830 = vcmp.eq.s32.totalorder %v3732, 1
        %vm3831 = vcmp.eq.s32.totalorder %v3735, 1
        %vm3832 = vcmp.eq.s32.totalorder %v3738, 1
        %vm3833 = vcmp.eq.s32.totalorder %v3741, 1
        %vm3834 = vcmp.eq.s32.totalorder %v3744, 1
        %vm3835 = vcmp.eq.s32.totalorder %v3747, 1
        %vm3836 = vcmp.eq.s32.totalorder %v3750, 1
        %vm3837 = vcmp.eq.s32.totalorder %v3753, 1
        %vm3838 = vcmp.eq.s32.totalorder %v3756, 1
        %vm3839 = vcmp.eq.s32.totalorder %v3759, 1
        %vm3840 = vcmp.eq.s32.totalorder %v3762, 1
        %vm3841 = vcmp.eq.s32.totalorder %v3765, 1
        %vm3842 = vcmp.eq.s32.totalorder %v3768, 1
        %vm3843 = vcmp.eq.s32.totalorder %v3771, 1
        %vm3844 = vcmp.eq.s32.totalorder %v3774, 1
        %vm3845 = vcmp.eq.s32.totalorder %v3777, 1
        %vm3846 = vcmp.eq.s32.totalorder %v3780, 1
        %vm3847 = vcmp.eq.s32.totalorder %v3783, 1
        %v3848 = vsel %vm3784, %v232, -inf
        %v3849 = vsel %vm3785, %v233, -inf
        %v3850 = vsel %vm3786, %v234, -inf
        %v3851 = vsel %vm3787, %v235, -inf
        %v3852 = vsel %vm3788, %v236, -inf
        %v3853 = vsel %vm3789, %v237, -inf
        %v3854 = vsel %vm3790, %v238, -inf
        %v3855 = vsel %vm3791, %v239, -inf
        %v3856 = vsel %vm3792, %v240, -inf
        %v3857 = vsel %vm3793, %v241, -inf
        %v3858 = vsel %vm3794, %v242, -inf
        %v3859 = vsel %vm3795, %v243, -inf
        %v3860 = vsel %vm3796, %v244, -inf
        %v3861 = vsel %vm3797, %v245, -inf
        %v3862 = vsel %vm3798, %v246, -inf
        %v3863 = vsel %vm3799, %v247, -inf
        %v3864 = vsel %vm3800, %v248, -inf
        %v3865 = vsel %vm3801, %v249, -inf
        %v3866 = vsel %vm3802, %v250, -inf
        %v3867 = vsel %vm3803, %v251, -inf
        %v3868 = vsel %vm3804, %v252, -inf
        %v3869 = vsel %vm3805, %v253, -inf
        %v3870 = vsel %vm3806, %v254, -inf
        %v3871 = vsel %vm3807, %v255, -inf
        %v3872 = vsel %vm3808, %v256, -inf
        %v3873 = vsel %vm3809, %v257, -inf
        %v3874 = vsel %vm3810, %v258, -inf
        %v3875 = vsel %vm3811, %v259, -inf
        %v3876 = vsel %vm3812, %v260, -inf
        %v3877 = vsel %vm3813, %v261, -inf
        %v3878 = vsel %vm3814, %v262, -inf
        %v3879 = vsel %vm3815, %v263, -inf
        %v3880 = vsel %vm3816, %v264, -inf
        %v3881 = vsel %vm3817, %v265, -inf
        %v3882 = vsel %vm3818, %v266, -inf
        %v3883 = vsel %vm3819, %v267, -inf
        %v3884 = vsel %vm3820, %v268, -inf
        %v3885 = vsel %vm3821, %v269, -inf
        %v3886 = vsel %vm3822, %v270, -inf
        %v3887 = vsel %vm3823, %v271, -inf
        %v3888 = vsel %vm3824, %v272, -inf
        %v3889 = vsel %vm3825, %v273, -inf
        %v3890 = vsel %vm3826, %v274, -inf
        %v3891 = vsel %vm3827, %v275, -inf
        %v3892 = vsel %vm3828, %v276, -inf
        %v3893 = vsel %vm3829, %v277, -inf
        %v3894 = vsel %vm3830, %v278, -inf
        %v3895 = vsel %vm3831, %v279, -inf
        %v3896 = vsel %vm3832, %v280, -inf
        %v3897 = vsel %vm3833, %v281, -inf
        %v3898 = vsel %vm3834, %v282, -inf
        %v3899 = vsel %vm3835, %v283, -inf
        %v3900 = vsel %vm3836, %v284, -inf
        %v3901 = vsel %vm3837, %v285, -inf
        %v3902 = vsel %vm3838, %v286, -inf
        %v3903 = vsel %vm3839, %v287, -inf
        %v3904 = vsel %vm3840, %v288, -inf
        %v3905 = vsel %vm3841, %v289, -inf
        %v3906 = vsel %vm3842, %v290, -inf
        %v3907 = vsel %vm3843, %v291, -inf
        %v3908 = vsel %vm3844, %v292, -inf
        %v3909 = vsel %vm3845, %v293, -inf
        %v3910 = vsel %vm3846, %v294, -inf
        %v3911 = vsel %vm3847, %v295, -inf
        %v3912 = vmax.f32 %v3848, %v3852
        %v3913 = vmax.f32 %v3849, %v3853
        %v3914 = vmax.f32 %v3850, %v3854
        %v3915 = vmax.f32 %v3851, %v3855
        %v3916 = vmax.f32 %v3912, %v3856
        %v3917 = vmax.f32 %v3913, %v3857
        %v3918 = vmax.f32 %v3914, %v3858
        %v3919 = vmax.f32 %v3915, %v3859
        %v3920 = vmax.f32 %v3916, %v3860
        %v3921 = vmax.f32 %v3917, %v3861
        %v3922 = vmax.f32 %v3918, %v3862
        %v3923 = vmax.f32 %v3919, %v3863
        %v3924 = vmax.f32 %v3920, %v3864
        %v3925 = vmax.f32 %v3921, %v3865
        %v3926 = vmax.f32 %v3922, %v3866
        %v3927 = vmax.f32 %v3923, %v3867
        %v3928 = vmax.f32 %v3924, %v3868
        %v3929 = vmax.f32 %v3925, %v3869
        %v3930 = vmax.f32 %v3926, %v3870
        %v3931 = vmax.f32 %v3927, %v3871
        %v3932 = vmax.f32 %v3928, %v3872
        %v3933 = vmax.f32 %v3929, %v3873
        %v3934 = vmax.f32 %v3930, %v3874
        %v3935 = vmax.f32 %v3931, %v3875
        %v3936 = vmax.f32 %v3932, %v3876
        %v3937 = vmax.f32 %v3933, %v3877
        %v3938 = vmax.f32 %v3934, %v3878
        %v3939 = vmax.f32 %v3935, %v3879
        %v3940 = vmax.f32 %v3936, %v3880
        %v3941 = vmax.f32 %v3937, %v3881
        %v3942 = vmax.f32 %v3938, %v3882
        %v3943 = vmax.f32 %v3939, %v3883
        %v3944 = vmax.f32 %v3940, %v3884
        %v3945 = vmax.f32 %v3941, %v3885
        %v3946 = vmax.f32 %v3942, %v3886
        %v3947 = vmax.f32 %v3943, %v3887
        %v3948 = vmax.f32 %v3944, %v3888
        %v3949 = vmax.f32 %v3945, %v3889
        %v3950 = vmax.f32 %v3946, %v3890
        %v3951 = vmax.f32 %v3947, %v3891
        %v3952 = vmax.f32 %v3948, %v3892
        %v3953 = vmax.f32 %v3949, %v3893
        %v3954 = vmax.f32 %v3950, %v3894
        %v3955 = vmax.f32 %v3951, %v3895
        %v3956 = vmax.f32 %v3952, %v3896
        %v3957 = vmax.f32 %v3953, %v3897
        %v3958 = vmax.f32 %v3954, %v3898
        %v3959 = vmax.f32 %v3955, %v3899
        %v3960 = vmax.f32 %v3956, %v3900
        %v3961 = vmax.f32 %v3957, %v3901
        %v3962 = vmax.f32 %v3958, %v3902
        %v3963 = vmax.f32 %v3959, %v3903
        %v3964 = vmax.f32 %v3960, %v3904
        %v3965 = vmax.f32 %v3961, %v3905
        %v3966 = vmax.f32 %v3962, %v3906
        %v3967 = vmax.f32 %v3963, %v3907
        %v3968 = vmax.f32 %v3964, %v3908
        %v3969 = vmax.f32 %v3965, %v3909
        %v3970 = vmax.f32 %v3966, %v3910
        %v3971 = vmax.f32 %v3967, %v3911
        %v3972 = vmax.f32 %v3968, %v3969
        %v3973 = vmax.f32 %v3970, %v3971
        %v3974 = vmax.f32 %v3972, %v3973
        %v3975 = vrot.slane %v3974, 4
        %v3976 = vmax.f32 %v3974, %v3975
        %v3977 = vrot.slane %v3976, 2
        %v3978 = vmax.f32 %v3976, %v3977
        %v3979 = vrot.slane %v3978, 1
        %v3980 = vmax.f32 %v3978, %v3979
        %v3981 = vld [vmem:[#allocation3] sm:$0xff]
        %vm3982 = vcmask 1040384
        %v3983 = vsel %vm3982, %v1257, %v1646
        %vm3984 = vcmask 1041408
        %v3985 = vsel %vm3984, %v3983, %v2035
        %vm3986 = vcmask 1042432
        %v3987 = vsel %vm3986, %v3985, %v2424
        %vm3988 = vcmask 1043456
        %v3989 = vsel %vm3988, %v3987, %v2813
        %vm3990 = vcmask 1044480
        %v3991 = vsel %vm3990, %v3989, %v3202
        %vm3992 = vcmask 1045504
        %v3993 = vsel %vm3992, %v3991, %v3591
        %vm3994 = vcmask 1046528
        %v3995 = vsel %vm3994, %v3993, %v3980
        %v3996 = vmax.f32 %v3981, %v3995
        %3997 = vst [vmem:[#allocation3] sm:$0xff] %v3996
        // Predicated region
        $region37: #{tpu_custom_call.1} parent=31 // pred_check
          %p3998 = pneg %p224
        $region38: #{tpu_custom_call.1} parent=31 // pred_check_branch
          %4000 = sbr.rel (%p3998) target = $region40
        $region39: #{tpu_custom_call.1} parent=31 // pred_region
          %v4001 = vld [vmem:[#allocation2] sm:$0xff]
          %v4002 = vld [vmem:[#allocation4] sm:$0xff]
          %v4003 = vmax.f32 %v4002, 1.0
          %v4004 = vrcp.pop %v4003
          %vm4005 = vcmp.gt.f32.partialorder %v4002, 0.0
          %v4006 = vld [vmem:[#allocation3] sm:$0xff]
          %v4007 = vsel %vm4005, 1, 0
          %4008 = vset.pattern.permute.xlu0 0
          %4009 = vperm.xlu0 %4008, %v4007
          %v4010 = vpop.permute.xlu0 %4009
          %vm4011 = vcmp.eq.s32.totalorder %v4010, 1
          %v4012 = vsel %vm4011, %v4006, 0.0
          %4013 = vst [vmem:[%s206] sm:$0xff] %v4001
          %4014 = vst [vmem:[%s206 + $0x8] sm:$0xff] %v4012
          %4016 = vset.pattern.permute.xlu0 0
          %4017 = vperm.xlu0 %4016, %v4004
          %v4018 = vpop.permute.xlu0 %4017
          %v4020 = vmul.f32 %v4001, %v4018
          %4021 = vst [vmem:[%s206 + $0x10] sm:$0xff] %v4020
        $region40: #{tpu_custom_call.1} parent=31 // pred_fallthru
          _
        %s4022 = sand.u32 %s115, 1
        %s4023 = scalar_lea.sflag [#allocation6], %s4022
        %s4024 = sand.u32 %s115, 1
        %s4025 = smul.addr %s4024, 24
        %s4026 = scalar_lea.vmem [#allocation5], %s4025
        // Predicated region
        $region41: #{tpu_custom_call.1} parent=31 // pred_check
          %p4027 = pneg %p125
        $region42: #{tpu_custom_call.1} parent=31 // pred_check_branch
          %4029 = sbr.rel (%p4027) target = $region44
        $region43: #{tpu_custom_call.1} parent=31 // pred_region
          %s4031 = ssub.s32 384, 384
          %4032 = vsyncadd %s4023, %s4031
          %s4033 = smul.addr %s21, 3
          %s4034 = smul.addr %s4033, 128
          %s4035 = scalar_lea.hbm %s3, %s4034
          %s4037 = sshll.u32 %s4026, 4
          %s4038 = int_to_ptr.vmem [resolvable:$true] %s4037
          %4040 = dma.vmem_to_hbm [thread:$0]  %s4038, 384, %s4035, %s4023
        $region44: #{tpu_custom_call.1} parent=31 // pred_fallthru
          _
      $region32: #{tpu_custom_call.1} parent=5 // pred_fallthru
        _
      %p4041 = scmp.le.s32.totalorder 2, %s12
      // Predicated region
      $region45: #{tpu_custom_call.1} parent=5 // pred_check
        %p4042 = pneg %p4041
      $region46: #{tpu_custom_call.1} parent=5 // pred_check_branch
        %4044 = sbr.rel (%p4042) target = $region48
      $region47: #{tpu_custom_call.1} parent=5 // pred_region
        %s4045 = ssub.s32 %s12, 2
        // Predicated region
        $region49: #{tpu_custom_call.1} parent=47 // pred_check
          %p4046 = pneg %p131
        $region50: #{tpu_custom_call.1} parent=47 // pred_check_branch
          %4048 = sbr.rel (%p4046) target = $region52
        $region51: #{tpu_custom_call.1} parent=47 // pred_region
          %s4049 = sand.u32 %s116, 1
          %s4050 = scalar_lea.sflag [#allocation6], %s4049
          %s4051 = sand.u32 %s116, 1
          %s4052 = smul.addr %s4051, 24
          %s4053 = scalar_lea.vmem [#allocation5], %s4052
          %4054 = dma.done %s4050, 384
        $region52: #{tpu_custom_call.1} parent=47 // pred_fallthru
          _
      $region48: #{tpu_custom_call.1} parent=5 // pred_fallthru
        _
    $region6: #{tpu_custom_call.1} parent=1 // loop_footer
      %s16 = sadd.s32 1, %s12
    $region7: #{tpu_custom_call.1} parent=1 // loop_footer_branch
      %11 = sbr.rel target = $region3
    $region8: #{tpu_custom_call.1} parent=1 // loop_exit
      _
    %4055 = vsyncpa [#allocation6], 1
    %s4056 = scalar_lea.sflag [#allocation6], 1
    %4057 = vsyncpa %s4056, 1

</llo_original>
